<compile_context>
chip_gen: v6e
topology: v6e:2x2x1
jax: 0.10.0
libtpu: 0.0.40
codegen_flags: <defaults>
</compile_context>

<pallas_src>
import functools

import jax
import jax.numpy as jnp
import numpy as np
from jax import lax
from jax.experimental import pallas as pl
from jax.experimental.pallas import tpu as pltpu


def _round_up(n, m):
    return ((n + m - 1) // m) * m


def crossnet_mix_kernel(x_ref, v_ref, c_ref, u_ref, b_ref, o_ref, *,
                        num_layers, compute_dtype, unroll):
    x0 = x_ref[...].astype(jnp.float32)                 # (tb, D), initial state

    def layer_body(l, h):
        # Fused experts: one lane-dense MXU chain per layer.
        hc = h.astype(compute_dtype)
        t = jnp.tanh(jnp.dot(hc, v_ref[l],
                             preferred_element_type=jnp.float32))
        t = jnp.tanh(jnp.dot(t.astype(compute_dtype), c_ref[l],
                             preferred_element_type=jnp.float32))
        u = jnp.dot(t.astype(compute_dtype), u_ref[l],
                    preferred_element_type=jnp.float32)
        # Gate softmax over a size-1 axis == 1.0, so the MoE combine reduces to
        # x0 * (sum_e u_e + E * bias_l); the bias is pre-scaled by E at pack time.
        return x0 * (u + b_ref[l]) + h

    h = lax.fori_loop(0, num_layers, layer_body, x0, unroll=unroll)
    o_ref[...] = h.astype(o_ref.dtype)


def pack_crossnet_mix_params(V, C, U, bias, *, compute_dtype=jnp.bfloat16):
    """Pack weights ONCE at parameter init/update time (not per forward call).

    V, U: (L, E, D, R); C: (L, E, R, R); bias: (L, D, 1).
    Returns (Vc, Cbd, Uc, b3) ready for crossnet_mix_apply.
    """
    L, E, D, R = V.shape
    ER = E * R
    ERp = _round_up(ER, 128)                       # lane-dense fused-rank width

    # h @ Vc == concat_e (V[l,e]^T x)
    Vc = jnp.transpose(V, (0, 2, 1, 3)).reshape(L, D, ER)
    Vc = jnp.zeros((L, D, ERp), compute_dtype).at[:, :, :ER].set(
        Vc.astype(compute_dtype))
    # Block-diagonal C^T: t @ Cbd == concat_e (C[l,e] t_e).  Dense form is the
    # right trade for small E; revisit only if ERp >= D or E is large.
    Ct = jnp.swapaxes(C, -1, -2)
    Cbd = jnp.einsum('ef,leij->leifj', jnp.eye(E, dtype=C.dtype),
                     Ct).reshape(L, ER, ER)
    Cbd = jnp.zeros((L, ERp, ERp), compute_dtype).at[:, :ER, :ER].set(
        Cbd.astype(compute_dtype))
    # t @ Uc == sum_e U[l,e] t_e (the expert sum falls out of the matmul).
    Uc = jnp.transpose(U, (0, 1, 3, 2)).reshape(L, ER, D)
    Uc = jnp.zeros((L, ERp, D), compute_dtype).at[:, :ER, :].set(
        Uc.astype(compute_dtype))
    # Bias pre-scaled by E (each expert adds it once, gate weights == 1).
    b3 = (float(E) * bias[:, :, 0].astype(jnp.float32))[:, None, :]   # (L,1,D)
    return Vc, Cbd, Uc, b3


def _default_vmem_limit_bytes():
    # ~3/4 of physical per-core VMEM: ~48 MiB on v7x (64 MiB/TC), ~96 MiB on
    # v5e/v6e (128 MiB).  Leaves headroom for compiler scratch / double buffers.
    try:
        cap = int(pltpu.get_tpu_info().vmem_capacity_bytes)
    except Exception:
        cap = 128 * 1024 * 1024
    return min((cap * 3) // 4, 100 * 1024 * 1024)


def crossnet_mix_apply(x, packed, *, tb=256, vmem_limit_bytes=None):
    """x: (B, D) activations; packed: output of pack_crossnet_mix_params."""
    Vc, Cbd, Uc, b3 = packed
    B, D = x.shape
    L, Dw, ERp = Vc.shape
    assert Dw == D and Cbd.shape == (L, ERp, ERp)
    assert Uc.shape == (L, ERp, D) and b3.shape == (L, 1, D)
    compute_dtype = Vc.dtype

    # Batch tile: 256 fills the 2x256x256 MXU on v6e/v7x; clamp for small B.
    tb = max(8, min(_round_up(tb, 8), _round_up(B, 8)))
    grid = (pl.cdiv(B, tb),)
    if vmem_limit_bytes is None:
        vmem_limit_bytes = _default_vmem_limit_bytes()

    kernel = functools.partial(crossnet_mix_kernel, num_layers=L,
                               compute_dtype=compute_dtype,
                               unroll=(L <= 4))

    def weight_spec(shape, pipeline_mode):
        index_map = lambda i: (0,) * len(shape)
        if pipeline_mode is None:
            return pl.BlockSpec(shape, index_map)
        return pl.BlockSpec(shape, index_map, pipeline_mode=pipeline_mode)

    def run(weight_pipeline_mode):
        return pl.pallas_call(
            kernel,
            out_shape=jax.ShapeDtypeStruct((B, D), x.dtype),
            grid_spec=pltpu.PrefetchScalarGridSpec(
                num_scalar_prefetch=0,
                grid=grid,
                in_specs=[
                    pl.BlockSpec((tb, D), lambda i: (i, 0)),          # activations
                    weight_spec((L, D, ERp), weight_pipeline_mode),   # Vcat
                    weight_spec((L, ERp, ERp), weight_pipeline_mode),  # block-diag C^T
                    weight_spec((L, ERp, D), weight_pipeline_mode),   # Utcat
                    weight_spec((L, 1, D), weight_pipeline_mode),     # E * bias
                ],
                out_specs=pl.BlockSpec((tb, D), lambda i: (i, 0)),
            ),
            compiler_params=pltpu.CompilerParams(
                dimension_semantics=("parallel",),
                vmem_limit_bytes=vmem_limit_bytes),
        )(x, Vc, Cbd, Uc, b3)

    try:
        # Single-buffer the resident weights: constant index maps mean the
        # second pipeline buffer is never used; this halves weight VMEM.
        return run(pl.Buffered(1))
    except Exception:
        # Fallback: default double buffering (only costs VMEM, never wrong).
        return run(None)


def crossnet_mix(x, V, C, U, Wg, bias, *, tb=256,
                 compute_dtype=jnp.bfloat16, vmem_limit_bytes=None):
    """One-shot convenience wrapper (repacks weights every call; prefer
    pack_crossnet_mix_params + crossnet_mix_apply in production)."""
    del Wg  # gate softmax over a size-1 axis is identically 1.0 -> dead compute
    packed = pack_crossnet_mix_params(V, C, U, bias, compute_dtype=compute_dtype)
    return crossnet_mix_apply(x, packed, tb=tb, vmem_limit_bytes=vmem_limit_bytes)


def crossnet_mix_ref(x, V, C, U, Wg, bias):
    """Pure-JAX literal transcription of the PyTorch forward."""
    L, E, D, R = V.shape
    x0 = x[:, :, None]                     # (B, D, 1)
    h = x0
    for l in range(L):
        outs, gates = [], []
        for e in range(E):
            gates.append(h[:, :, 0] @ Wg[e][:, None])             # (B, 1)
            t = jnp.matmul(V[l, e].T, h)                          # (B, R, 1)
            t = jnp.tanh(t)
            t = jnp.matmul(C[l, e], t)
            t = jnp.tanh(t)
            t = jnp.matmul(U[l, e], t)                            # (B, D, 1)
            t = t + bias[l]                                       # (D, 1)
            t = x0 * t
            outs.append(t[:, :, 0])
        outs = jnp.stack(outs, -1)                                # (B, D, E)
        gates = jnp.stack(gates, -2)                              # (B, E, 1)
        moe = jnp.matmul(outs, jax.nn.softmax(gates, axis=-1))    # (B, D, 1)
        h = moe + h
    return h[:, :, 0]


def _xavier_normal(key, shape):
    # torch.nn.init.xavier_normal_ fan computation for >2-D tensors.
    recv = int(np.prod(shape[2:])) if len(shape) > 2 else 1
    fan_in = shape[1] * recv
    fan_out = shape[0] * recv
    std = float(np.sqrt(2.0 / (fan_in + fan_out)))
    return std * jax.random.normal(key, shape, dtype=jnp.float32)


if __name__ == "__main__":
    # batch, in_features, low_rank, experts, layers (module defaults: L=2, R=32, E=4).
    # B=200 exercises the ragged-last-tile path (tb=128 -> grid of 2 batch tiles).
    B, D, R, E, L = 200, 64, 32, 4, 2

    key = jax.random.PRNGKey(0)
    kx, ku, kv, kc, kg, kb = jax.random.split(key, 6)

    x = jax.random.normal(kx, (B, D), dtype=jnp.float32)
    U = _xavier_normal(ku, (L * E, D, R)).reshape(L, E, D, R)
    V = _xavier_normal(kv, (L * E, D, R)).reshape(L, E, D, R)
    C = _xavier_normal(kc, (L * E, R, R)).reshape(L, E, R, R)
    Wg = 0.1 * jax.random.normal(kg, (E, D), dtype=jnp.float32)   # Linear(D,1) weights
    bias = 0.05 * jax.random.normal(kb, (L, D, 1), dtype=jnp.float32)

    ref = crossnet_mix_ref(x, V, C, U, Wg, bias)

    # Debug/reference path: f32 MXU inputs, tb=128 -> 2 grid steps, ragged tail.
    packed_f32 = pack_crossnet_mix_params(V, C, U, bias,
                                          compute_dtype=jnp.float32)
    out = jax.block_until_ready(crossnet_mix_apply(x, packed_f32, tb=128))
    np.testing.assert_allclose(np.asarray(out), np.asarray(ref),
                               rtol=1e-4, atol=1e-4)

    # Production default: bf16 weights / MXU inputs, f32 accumulation, tb=256.
    packed_bf16 = pack_crossnet_mix_params(V, C, U, bias)   # bf16 default
    out_bf16 = jax.block_until_ready(crossnet_mix_apply(x, packed_bf16))
    rel = (np.linalg.norm(np.asarray(out_bf16, np.float32) - np.asarray(ref)) /
           np.linalg.norm(np.asarray(ref)))
    assert rel < 3e-2, f"bf16 path relative L2 error too large: {rel}"

    print("KERNEL_OK")
</pallas_src>

<mosaic_0001>
module attributes {stable_mosaic.version = 11 : i64} {
  func.func @crossnet_mix_kernel(%arg0: i32, %arg1: memref<128x64xf32, #tpu.memory_space<vmem>>, %arg2: memref<2x64x128xf32, #tpu.memory_space<vmem>>, %arg3: memref<2x128x128xf32, #tpu.memory_space<vmem>>, %arg4: memref<2x128x64xf32, #tpu.memory_space<vmem>>, %arg5: memref<2x1x64xf32, #tpu.memory_space<vmem>>, %arg6: memref<128x64xf32, #tpu.memory_space<vmem>>) attributes {dimension_semantics = [#tpu.dimension_semantics<parallel>], iteration_bounds = array<i64: 2>, scalar_prefetch = 0 : i64, scratch_operands = 0 : i64, tpu.core_type = #tpu.core_type<tc>, window_params = [{transform_indices = @transform_0, window_bounds = array<i64: 128, 64>}, {pipeline_mode = #tpu.pipeline_mode<synchronous>, transform_indices = @transform_1, window_bounds = array<i64: 2, 64, 128>}, {pipeline_mode = #tpu.pipeline_mode<synchronous>, transform_indices = @transform_2, window_bounds = array<i64: 2, 128, 128>}, {pipeline_mode = #tpu.pipeline_mode<synchronous>, transform_indices = @transform_3, window_bounds = array<i64: 2, 128, 64>}, {pipeline_mode = #tpu.pipeline_mode<synchronous>, transform_indices = @transform_4, window_bounds = array<i64: 2, 1, 64>}, {transform_indices = @transform_5, window_bounds = array<i64: 128, 64>}]} {
    %c0 = arith.constant 0 : index
    %c0_0 = arith.constant 0 : index
    %0 = vector.load %arg1[%c0, %c0_0] : memref<128x64xf32, #tpu.memory_space<vmem>>, vector<128x64xf32>
    %c0_i32 = arith.constant 0 : i32
    %1 = arith.index_cast %c0_i32 : i32 to index
    %c0_1 = arith.constant 0 : index
    %c0_2 = arith.constant 0 : index
    %2 = vector.load %arg2[%1, %c0_1, %c0_2] : memref<2x64x128xf32, #tpu.memory_space<vmem>>, vector<1x64x128xf32>
    %3 = vector.shape_cast %2 : vector<1x64x128xf32> to vector<64x128xf32>
    %cst = arith.constant dense<0.000000e+00> : vector<128x128xf32>
    %4 = tpu.matmul %0, %3, %cst {dimension_numbers = #tpu.dot_dimension_numbers<[1], [0], [0], [1], [0, 0, 1, 1], [], []>} : vector<128x64xf32>, vector<64x128xf32>, vector<128x128xf32> -> vector<128x128xf32>
    %5 = math.tanh %4 : vector<128x128xf32>
    %6 = arith.index_cast %c0_i32 : i32 to index
    %c0_3 = arith.constant 0 : index
    %c0_4 = arith.constant 0 : index
    %7 = vector.load %arg3[%6, %c0_3, %c0_4] : memref<2x128x128xf32, #tpu.memory_space<vmem>>, vector<1x128x128xf32>
    %8 = vector.shape_cast %7 : vector<1x128x128xf32> to vector<128x128xf32>
    %cst_5 = arith.constant dense<0.000000e+00> : vector<128x128xf32>
    %9 = tpu.matmul %5, %8, %cst_5 {dimension_numbers = #tpu.dot_dimension_numbers<[1], [0], [0], [1], [0, 0, 1, 1], [], []>} : vector<128x128xf32>, vector<128x128xf32>, vector<128x128xf32> -> vector<128x128xf32>
    %10 = math.tanh %9 : vector<128x128xf32>
    %11 = arith.index_cast %c0_i32 : i32 to index
    %c0_6 = arith.constant 0 : index
    %c0_7 = arith.constant 0 : index
    %12 = vector.load %arg4[%11, %c0_6, %c0_7] : memref<2x128x64xf32, #tpu.memory_space<vmem>>, vector<1x128x64xf32>
    %13 = vector.shape_cast %12 : vector<1x128x64xf32> to vector<128x64xf32>
    %cst_8 = arith.constant dense<0.000000e+00> : vector<128x64xf32>
    %14 = tpu.matmul %10, %13, %cst_8 {dimension_numbers = #tpu.dot_dimension_numbers<[1], [0], [0], [1], [0, 0, 1, 1], [], []>} : vector<128x128xf32>, vector<128x64xf32>, vector<128x64xf32> -> vector<128x64xf32>
    %15 = arith.index_cast %c0_i32 : i32 to index
    %c0_9 = arith.constant 0 : index
    %c0_10 = arith.constant 0 : index
    %16 = vector.load %arg5[%15, %c0_9, %c0_10] : memref<2x1x64xf32, #tpu.memory_space<vmem>>, vector<1x1x64xf32>
    %17 = vector.shape_cast %16 : vector<1x1x64xf32> to vector<1x64xf32>
    %18 = vector.broadcast %17 : vector<1x64xf32> to vector<128x64xf32>
    %19 = arith.addf %14, %18 : vector<128x64xf32>
    %20 = arith.mulf %0, %19 : vector<128x64xf32>
    %21 = arith.addf %20, %0 : vector<128x64xf32>
    %c1_i32 = arith.constant 1 : i32
    %22 = arith.index_cast %c1_i32 : i32 to index
    %c0_11 = arith.constant 0 : index
    %c0_12 = arith.constant 0 : index
    %23 = vector.load %arg2[%22, %c0_11, %c0_12] : memref<2x64x128xf32, #tpu.memory_space<vmem>>, vector<1x64x128xf32>
    %24 = vector.shape_cast %23 : vector<1x64x128xf32> to vector<64x128xf32>
    %cst_13 = arith.constant dense<0.000000e+00> : vector<128x128xf32>
    %25 = tpu.matmul %21, %24, %cst_13 {dimension_numbers = #tpu.dot_dimension_numbers<[1], [0], [0], [1], [0, 0, 1, 1], [], []>} : vector<128x64xf32>, vector<64x128xf32>, vector<128x128xf32> -> vector<128x128xf32>
    %26 = math.tanh %25 : vector<128x128xf32>
    %27 = arith.index_cast %c1_i32 : i32 to index
    %c0_14 = arith.constant 0 : index
    %c0_15 = arith.constant 0 : index
    %28 = vector.load %arg3[%27, %c0_14, %c0_15] : memref<2x128x128xf32, #tpu.memory_space<vmem>>, vector<1x128x128xf32>
    %29 = vector.shape_cast %28 : vector<1x128x128xf32> to vector<128x128xf32>
    %cst_16 = arith.constant dense<0.000000e+00> : vector<128x128xf32>
    %30 = tpu.matmul %26, %29, %cst_16 {dimension_numbers = #tpu.dot_dimension_numbers<[1], [0], [0], [1], [0, 0, 1, 1], [], []>} : vector<128x128xf32>, vector<128x128xf32>, vector<128x128xf32> -> vector<128x128xf32>
    %31 = math.tanh %30 : vector<128x128xf32>
    %32 = arith.index_cast %c1_i32 : i32 to index
    %c0_17 = arith.constant 0 : index
    %c0_18 = arith.constant 0 : index
    %33 = vector.load %arg4[%32, %c0_17, %c0_18] : memref<2x128x64xf32, #tpu.memory_space<vmem>>, vector<1x128x64xf32>
    %34 = vector.shape_cast %33 : vector<1x128x64xf32> to vector<128x64xf32>
    %cst_19 = arith.constant dense<0.000000e+00> : vector<128x64xf32>
    %35 = tpu.matmul %31, %34, %cst_19 {dimension_numbers = #tpu.dot_dimension_numbers<[1], [0], [0], [1], [0, 0, 1, 1], [], []>} : vector<128x128xf32>, vector<128x64xf32>, vector<128x64xf32> -> vector<128x64xf32>
    %36 = arith.index_cast %c1_i32 : i32 to index
    %c0_20 = arith.constant 0 : index
    %c0_21 = arith.constant 0 : index
    %37 = vector.load %arg5[%36, %c0_20, %c0_21] : memref<2x1x64xf32, #tpu.memory_space<vmem>>, vector<1x1x64xf32>
    %38 = vector.shape_cast %37 : vector<1x1x64xf32> to vector<1x64xf32>
    %39 = vector.broadcast %38 : vector<1x64xf32> to vector<128x64xf32>
    %40 = arith.addf %35, %39 : vector<128x64xf32>
    %41 = arith.mulf %0, %40 : vector<128x64xf32>
    %42 = arith.addf %41, %21 : vector<128x64xf32>
    %c2_i32 = arith.constant 2 : i32
    %c0_22 = arith.constant 0 : index
    %c0_23 = arith.constant 0 : index
    %43 = vector.load %arg6[%c0_22, %c0_23] : memref<128x64xf32, #tpu.memory_space<vmem>>, vector<128x64xf32>
    tpu.vector_store %arg6[%c0_22, %c0_23], %42 {strides = array<i32>} : memref<128x64xf32, #tpu.memory_space<vmem>>, vector<128x64xf32>,
    return
  }
  func.func @transform_0(%arg0: i32) -> (i32, i32) {
    %c0_i32 = arith.constant 0 : i32
    %c0_i32_0 = arith.constant 0 : i32
    return %arg0, %c0_i32 : i32, i32
  }
  func.func @transform_1(%arg0: i32) -> (i32, i32, i32) {
    %c0_i32 = arith.constant 0 : i32
    %c0_i32_0 = arith.constant 0 : i32
    %c0_i32_1 = arith.constant 0 : i32
    %c0_i32_2 = arith.constant 0 : i32
    return %c0_i32, %c0_i32_0, %c0_i32_1 : i32, i32, i32
  }
  func.func @transform_2(%arg0: i32) -> (i32, i32, i32) {
    %c0_i32 = arith.constant 0 : i32
    %c0_i32_0 = arith.constant 0 : i32
    %c0_i32_1 = arith.constant 0 : i32
    %c0_i32_2 = arith.constant 0 : i32
    return %c0_i32, %c0_i32_0, %c0_i32_1 : i32, i32, i32
  }
  func.func @transform_3(%arg0: i32) -> (i32, i32, i32) {
    %c0_i32 = arith.constant 0 : i32
    %c0_i32_0 = arith.constant 0 : i32
    %c0_i32_1 = arith.constant 0 : i32
    %c0_i32_2 = arith.constant 0 : i32
    return %c0_i32, %c0_i32_0, %c0_i32_1 : i32, i32, i32
  }
  func.func @transform_4(%arg0: i32) -> (i32, i32, i32) {
    %c0_i32 = arith.constant 0 : i32
    %c0_i32_0 = arith.constant 0 : i32
    %c0_i32_1 = arith.constant 0 : i32
    %c0_i32_2 = arith.constant 0 : i32
    return %c0_i32, %c0_i32_0, %c0_i32_1 : i32, i32, i32
  }
  func.func @transform_5(%arg0: i32) -> (i32, i32) {
    %c0_i32 = arith.constant 0 : i32
    %c0_i32_0 = arith.constant 0 : i32
    return %arg0, %c0_i32 : i32, i32
  }
}

module attributes {stable_mosaic.version = 11 : i64} {
  func.func @crossnet_mix_kernel(%arg0: i32, %arg1: memref<128x64xf32, #tpu.memory_space<vmem>>, %arg2: memref<2x64x128xf32, #tpu.memory_space<vmem>>, %arg3: memref<2x128x128xf32, #tpu.memory_space<vmem>>, %arg4: memref<2x128x64xf32, #tpu.memory_space<vmem>>, %arg5: memref<2x1x64xf32, #tpu.memory_space<vmem>>, %arg6: memref<128x64xf32, #tpu.memory_space<vmem>>) attributes {dimension_semantics = [#tpu.dimension_semantics<parallel>], iteration_bounds = array<i64: 2>, scalar_prefetch = 0 : i64, scratch_operands = 0 : i64, tpu.core_type = #tpu.core_type<tc>, window_params = [{transform_indices = @transform_0, window_bounds = array<i64: 128, 64>}, {pipeline_mode = #tpu.pipeline_mode<synchronous>, transform_indices = @transform_1, window_bounds = array<i64: 2, 64, 128>}, {pipeline_mode = #tpu.pipeline_mode<synchronous>, transform_indices = @transform_2, window_bounds = array<i64: 2, 128, 128>}, {pipeline_mode = #tpu.pipeline_mode<synchronous>, transform_indices = @transform_3, window_bounds = array<i64: 2, 128, 64>}, {pipeline_mode = #tpu.pipeline_mode<synchronous>, transform_indices = @transform_4, window_bounds = array<i64: 2, 1, 64>}, {transform_indices = @transform_5, window_bounds = array<i64: 128, 64>}]} {
    %c0 = arith.constant 0 : index
    %c0_0 = arith.constant 0 : index
    %0 = vector.load %arg1[%c0, %c0_0] : memref<128x64xf32, #tpu.memory_space<vmem>>, vector<128x64xf32>
    %c0_i32 = arith.constant 0 : i32
    %1 = arith.index_cast %c0_i32 : i32 to index
    %c0_1 = arith.constant 0 : index
    %c0_2 = arith.constant 0 : index
    %2 = vector.load %arg2[%1, %c0_1, %c0_2] : memref<2x64x128xf32, #tpu.memory_space<vmem>>, vector<1x64x128xf32>
    %3 = vector.shape_cast %2 : vector<1x64x128xf32> to vector<64x128xf32>
    %cst = arith.constant dense<0.000000e+00> : vector<128x128xf32>
    %4 = tpu.matmul %0, %3, %cst {dimension_numbers = #tpu.dot_dimension_numbers<[1], [0], [0], [1], [0, 0, 1, 1], [], []>} : vector<128x64xf32>, vector<64x128xf32>, vector<128x128xf32> -> vector<128x128xf32>
    %5 = math.tanh %4 : vector<128x128xf32>
    %6 = arith.index_cast %c0_i32 : i32 to index
    %c0_3 = arith.constant 0 : index
    %c0_4 = arith.constant 0 : index
    %7 = vector.load %arg3[%6, %c0_3, %c0_4] : memref<2x128x128xf32, #tpu.memory_space<vmem>>, vector<1x128x128xf32>
    %8 = vector.shape_cast %7 : vector<1x128x128xf32> to vector<128x128xf32>
    %cst_5 = arith.constant dense<0.000000e+00> : vector<128x128xf32>
    %9 = tpu.matmul %5, %8, %cst_5 {dimension_numbers = #tpu.dot_dimension_numbers<[1], [0], [0], [1], [0, 0, 1, 1], [], []>} : vector<128x128xf32>, vector<128x128xf32>, vector<128x128xf32> -> vector<128x128xf32>
    %10 = math.tanh %9 : vector<128x128xf32>
    %11 = arith.index_cast %c0_i32 : i32 to index
    %c0_6 = arith.constant 0 : index
    %c0_7 = arith.constant 0 : index
    %12 = vector.load %arg4[%11, %c0_6, %c0_7] : memref<2x128x64xf32, #tpu.memory_space<vmem>>, vector<1x128x64xf32>
    %13 = vector.shape_cast %12 : vector<1x128x64xf32> to vector<128x64xf32>
    %cst_8 = arith.constant dense<0.000000e+00> : vector<128x64xf32>
    %14 = tpu.matmul %10, %13, %cst_8 {dimension_numbers = #tpu.dot_dimension_numbers<[1], [0], [0], [1], [0, 0, 1, 1], [], []>} : vector<128x128xf32>, vector<128x64xf32>, vector<128x64xf32> -> vector<128x64xf32>
    %15 = arith.index_cast %c0_i32 : i32 to index
    %c0_9 = arith.constant 0 : index
    %c0_10 = arith.constant 0 : index
    %16 = vector.load %arg5[%15, %c0_9, %c0_10] : memref<2x1x64xf32, #tpu.memory_space<vmem>>, vector<1x1x64xf32>
    %17 = vector.shape_cast %16 : vector<1x1x64xf32> to vector<1x64xf32>
    %18 = vector.broadcast %17 : vector<1x64xf32> to vector<128x64xf32>
    %19 = arith.addf %14, %18 : vector<128x64xf32>
    %20 = arith.mulf %0, %19 : vector<128x64xf32>
    %21 = arith.addf %20, %0 : vector<128x64xf32>
    %c1_i32 = arith.constant 1 : i32
    %22 = arith.index_cast %c1_i32 : i32 to index
    %c0_11 = arith.constant 0 : index
    %c0_12 = arith.constant 0 : index
    %23 = vector.load %arg2[%22, %c0_11, %c0_12] : memref<2x64x128xf32, #tpu.memory_space<vmem>>, vector<1x64x128xf32>
    %24 = vector.shape_cast %23 : vector<1x64x128xf32> to vector<64x128xf32>
    %cst_13 = arith.constant dense<0.000000e+00> : vector<128x128xf32>
    %25 = tpu.matmul %21, %24, %cst_13 {dimension_numbers = #tpu.dot_dimension_numbers<[1], [0], [0], [1], [0, 0, 1, 1], [], []>} : vector<128x64xf32>, vector<64x128xf32>, vector<128x128xf32> -> vector<128x128xf32>
    %26 = math.tanh %25 : vector<128x128xf32>
    %27 = arith.index_cast %c1_i32 : i32 to index
    %c0_14 = arith.constant 0 : index
    %c0_15 = arith.constant 0 : index
    %28 = vector.load %arg3[%27, %c0_14, %c0_15] : memref<2x128x128xf32, #tpu.memory_space<vmem>>, vector<1x128x128xf32>
    %29 = vector.shape_cast %28 : vector<1x128x128xf32> to vector<128x128xf32>
    %cst_16 = arith.constant dense<0.000000e+00> : vector<128x128xf32>
    %30 = tpu.matmul %26, %29, %cst_16 {dimension_numbers = #tpu.dot_dimension_numbers<[1], [0], [0], [1], [0, 0, 1, 1], [], []>} : vector<128x128xf32>, vector<128x128xf32>, vector<128x128xf32> -> vector<128x128xf32>
    %31 = math.tanh %30 : vector<128x128xf32>
    %32 = arith.index_cast %c1_i32 : i32 to index
    %c0_17 = arith.constant 0 : index
    %c0_18 = arith.constant 0 : index
    %33 = vector.load %arg4[%32, %c0_17, %c0_18] : memref<2x128x64xf32, #tpu.memory_space<vmem>>, vector<1x128x64xf32>
    %34 = vector.shape_cast %33 : vector<1x128x64xf32> to vector<128x64xf32>
    %cst_19 = arith.constant dense<0.000000e+00> : vector<128x64xf32>
    %35 = tpu.matmul %31, %34, %cst_19 {dimension_numbers = #tpu.dot_dimension_numbers<[1], [0], [0], [1], [0, 0, 1, 1], [], []>} : vector<128x128xf32>, vector<128x64xf32>, vector<128x64xf32> -> vector<128x64xf32>
    %36 = arith.index_cast %c1_i32 : i32 to index
    %c0_20 = arith.constant 0 : index
    %c0_21 = arith.constant 0 : index
    %37 = vector.load %arg5[%36, %c0_20, %c0_21] : memref<2x1x64xf32, #tpu.memory_space<vmem>>, vector<1x1x64xf32>
    %38 = vector.shape_cast %37 : vector<1x1x64xf32> to vector<1x64xf32>
    %39 = vector.broadcast %38 : vector<1x64xf32> to vector<128x64xf32>
    %40 = arith.addf %35, %39 : vector<128x64xf32>
    %41 = arith.mulf %0, %40 : vector<128x64xf32>
    %42 = arith.addf %41, %21 : vector<128x64xf32>
    %c2_i32 = arith.constant 2 : i32
    %c0_22 = arith.constant 0 : index
    %c0_23 = arith.constant 0 : index
    %43 = vector.load %arg6[%c0_22, %c0_23] : memref<128x64xf32, #tpu.memory_space<vmem>>, vector<128x64xf32>
    tpu.vector_store %arg6[%c0_22, %c0_23], %42 {strides = array<i32>} : memref<128x64xf32, #tpu.memory_space<vmem>>, vector<128x64xf32>,
    return
  }
  func.func @transform_0(%arg0: i32) -> (i32, i32) {
    %c0_i32 = arith.constant 0 : i32
    %c0_i32_0 = arith.constant 0 : i32
    return %arg0, %c0_i32 : i32, i32
  }
  func.func @transform_1(%arg0: i32) -> (i32, i32, i32) {
    %c0_i32 = arith.constant 0 : i32
    %c0_i32_0 = arith.constant 0 : i32
    %c0_i32_1 = arith.constant 0 : i32
    %c0_i32_2 = arith.constant 0 : i32
    return %c0_i32, %c0_i32_0, %c0_i32_1 : i32, i32, i32
  }
  func.func @transform_2(%arg0: i32) -> (i32, i32, i32) {
    %c0_i32 = arith.constant 0 : i32
    %c0_i32_0 = arith.constant 0 : i32
    %c0_i32_1 = arith.constant 0 : i32
    %c0_i32_2 = arith.constant 0 : i32
    return %c0_i32, %c0_i32_0, %c0_i32_1 : i32, i32, i32
  }
  func.func @transform_3(%arg0: i32) -> (i32, i32, i32) {
    %c0_i32 = arith.constant 0 : i32
    %c0_i32_0 = arith.constant 0 : i32
    %c0_i32_1 = arith.constant 0 : i32
    %c0_i32_2 = arith.constant 0 : i32
    return %c0_i32, %c0_i32_0, %c0_i32_1 : i32, i32, i32
  }
  func.func @transform_4(%arg0: i32) -> (i32, i32, i32) {
    %c0_i32 = arith.constant 0 : i32
    %c0_i32_0 = arith.constant 0 : i32
    %c0_i32_1 = arith.constant 0 : i32
    %c0_i32_2 = arith.constant 0 : i32
    return %c0_i32, %c0_i32_0, %c0_i32_1 : i32, i32, i32
  }
  func.func @transform_5(%arg0: i32) -> (i32, i32) {
    %c0_i32 = arith.constant 0 : i32
    %c0_i32_0 = arith.constant 0 : i32
    return %arg0, %c0_i32 : i32, i32
  }
}

</mosaic_0001>

<llo_original>
// kernel: tpu_custom_call.1
$region0: #{tpu_custom_call.1}
  #allocation0 [shape = 'u32[]', space=smem, size = 0x4, offset = 0x4, fixed_abs, tag = 'smem constant byte address 0x4 - core index']
  #allocation1 [shape = 'u32[144,128]{1,0:T(1,128)}', space=vmem, size = 0x12000, scoped, tag = 'internal scratch']
  %s0 = inlined_call_operand.vmem [shape: f32[200,64], index: 0, kind: input, shape index: {}]
  %s1 = inlined_call_operand.vmem [shape: f32[2,64,128], index: 1, kind: input, shape index: {}]
  %s2 = inlined_call_operand.vmem [shape: f32[2,128,128], index: 2, kind: input, shape index: {}]
  %s3 = inlined_call_operand.vmem [shape: f32[2,128,64], index: 3, kind: input, shape index: {}]
  %s4 = inlined_call_operand.vmem [shape: f32[2,1,64], index: 4, kind: input, shape index: {}]
  %s5 = inlined_call_operand.vmem [shape: f32[200,64], index: 5, kind: output, shape index: {}]
  %s6 = sld [smem:[#allocation0]]
  $region101: #{tpu_custom_call.1} parent=0
    _
  %s8 = ssub.s32 1, %s6
  %s9 = scalar_select 0, %s8, %s6
  $region1: #{tpu_custom_call.1} parent=0
    #allocation2 [shape = 'u8[131072]{0}', space=vmem, size = 0x20000, scoped, tag = 'output window, operand 0']
    loop: start=0, step=1, limit=4
    $region2: #{tpu_custom_call.1} parent=1 // loop_pre_header
      _
    $region3: #{tpu_custom_call.1} parent=1 // loop_header
      %s11 = sphi 0, %s15
      %p12 = scmp.ge.s32.totalorder %s11, 4
      %s21 = sphi 0, %s23
      %s24 = sphi 0, %s21
      %s25 = sphi 0, %s24
      %s41 = sphi 0, %s25
      %s45 = sphi 0, %s45
      %s47 = sphi 0, %s45
      %s48 = sphi 0, %s47
      %s62 = sphi 0, %s48
      %s66 = sphi 0, %s66
      %s68 = sphi 0, %s66
      %s69 = sphi 0, %s68
      %s83 = sphi 0, %s69
      %s87 = sphi 0, %s87
      %s89 = sphi 0, %s87
      %s90 = sphi 0, %s89
      %s104 = sphi 0, %s90
      %s108 = sphi 0, %s108
      %s110 = sphi 0, %s108
      %s111 = sphi 0, %s110
      %s125 = sphi 0, %s111
      %s131 = sphi 0, %s133
      %s134 = sphi 0, %s131
      %s135 = sphi 0, %s134
      %s151 = sphi 0, %s135
    $region4: #{tpu_custom_call.1} parent=1 // loop_header_branch
      %14 = sbr.rel (%p12) target = $region8
    $region5: #{tpu_custom_call.1} parent=1 // loop_body
      %s16 = ssub.s32 %s11, 1
      %s17 = ssub.s32 %s11, 2
      %s18 = sadd.s32 %s11, 1
      %s19 = ssub.s32 %s11, %s18
      %p20 = scmp.eq.s32.totalorder %s19, 0
      %s22 = sadd.s32 %s21, 1
      %s23 = scalar_select %p20, %s21, %s22
      %p26 = pneg %p20
      %p27 = scmp.eq.s32.totalorder %s11, 1
      %p28 = por %p26, %p27
      %p29 = scmp.ne.s32.totalorder %s21, %s24
      %p30 = scmp.eq.s32.totalorder %s11, 0
      %p31 = por %p29, %p30
      %p32 = scmp.ne.s32.totalorder %s21, %s24
      %p33 = scmp.eq.s32.totalorder %s16, 1
      %p34 = por %p32, %p33
      %p35 = scmp.ne.s32.totalorder %s24, %s25
      %p36 = scmp.eq.s32.totalorder %s16, 0
      %p37 = por %p35, %p36
      %p38 = scmp.ne.s32.totalorder %s24, %s25
      %p39 = scmp.eq.s32.totalorder %s17, 1
      %p40 = por %p38, %p39
      %p42 = scmp.ne.s32.totalorder %s25, %s41
      %p43 = scmp.eq.s32.totalorder %s17, 0
      %p44 = por %p42, %p43
      %s46 = sadd.s32 %s45, 1
      %p49 = scmp.eq.s32.totalorder %s11, 1
      %p50 = scmp.ne.s32.totalorder %s45, %s47
      %p51 = scmp.eq.s32.totalorder %s11, 0
      %p52 = por %p50, %p51
      %p53 = scmp.ne.s32.totalorder %s45, %s47
      %p54 = scmp.eq.s32.totalorder %s16, 1
      %p55 = por %p53, %p54
      %p56 = scmp.ne.s32.totalorder %s47, %s48
      %p57 = scmp.eq.s32.totalorder %s16, 0
      %p58 = por %p56, %p57
      %p59 = scmp.ne.s32.totalorder %s47, %s48
      %p60 = scmp.eq.s32.totalorder %s17, 1
      %p61 = por %p59, %p60
      %p63 = scmp.ne.s32.totalorder %s48, %s62
      %p64 = scmp.eq.s32.totalorder %s17, 0
      %p65 = por %p63, %p64
      %s67 = sadd.s32 %s66, 1
      %p70 = scmp.eq.s32.totalorder %s11, 1
      %p71 = scmp.ne.s32.totalorder %s66, %s68
      %p72 = scmp.eq.s32.totalorder %s11, 0
      %p73 = por %p71, %p72
      %p74 = scmp.ne.s32.totalorder %s66, %s68
      %p75 = scmp.eq.s32.totalorder %s16, 1
      %p76 = por %p74, %p75
      %p77 = scmp.ne.s32.totalorder %s68, %s69
      %p78 = scmp.eq.s32.totalorder %s16, 0
      %p79 = por %p77, %p78
      %p80 = scmp.ne.s32.totalorder %s68, %s69
      %p81 = scmp.eq.s32.totalorder %s17, 1
      %p82 = por %p80, %p81
      %p84 = scmp.ne.s32.totalorder %s69, %s83
      %p85 = scmp.eq.s32.totalorder %s17, 0
      %p86 = por %p84, %p85
      %s88 = sadd.s32 %s87, 1
      %p91 = scmp.eq.s32.totalorder %s11, 1
      %p92 = scmp.ne.s32.totalorder %s87, %s89
      %p93 = scmp.eq.s32.totalorder %s11, 0
      %p94 = por %p92, %p93
      %p95 = scmp.ne.s32.totalorder %s87, %s89
      %p96 = scmp.eq.s32.totalorder %s16, 1
      %p97 = por %p95, %p96
      %p98 = scmp.ne.s32.totalorder %s89, %s90
      %p99 = scmp.eq.s32.totalorder %s16, 0
      %p100 = por %p98, %p99
      %p101 = scmp.ne.s32.totalorder %s89, %s90
      %p102 = scmp.eq.s32.totalorder %s17, 1
      %p103 = por %p101, %p102
      %p105 = scmp.ne.s32.totalorder %s90, %s104
      %p106 = scmp.eq.s32.totalorder %s17, 0
      %p107 = por %p105, %p106
      %s109 = sadd.s32 %s108, 1
      %p112 = scmp.eq.s32.totalorder %s11, 1
      %p113 = scmp.ne.s32.totalorder %s108, %s110
      %p114 = scmp.eq.s32.totalorder %s11, 0
      %p115 = por %p113, %p114
      %p116 = scmp.ne.s32.totalorder %s108, %s110
      %p117 = scmp.eq.s32.totalorder %s16, 1
      %p118 = por %p116, %p117
      %p119 = scmp.ne.s32.totalorder %s110, %s111
      %p120 = scmp.eq.s32.totalorder %s16, 0
      %p121 = por %p119, %p120
      %p122 = scmp.ne.s32.totalorder %s110, %s111
      %p123 = scmp.eq.s32.totalorder %s17, 1
      %p124 = por %p122, %p123
      %p126 = scmp.ne.s32.totalorder %s111, %s125
      %p127 = scmp.eq.s32.totalorder %s17, 0
      %p128 = por %p126, %p127
      %s129 = ssub.s32 %s11, %s18
      %p130 = scmp.eq.s32.totalorder %s129, 0
      %s132 = sadd.s32 %s131, 1
      %s133 = scalar_select %p130, %s131, %s132
      %p136 = pneg %p130
      %p137 = scmp.eq.s32.totalorder %s11, 1
      %p138 = por %p136, %p137
      %p139 = scmp.ne.s32.totalorder %s131, %s134
      %p140 = scmp.eq.s32.totalorder %s11, 0
      %p141 = por %p139, %p140
      %p142 = scmp.ne.s32.totalorder %s131, %s134
      %p143 = scmp.eq.s32.totalorder %s16, 1
      %p144 = por %p142, %p143
      %p145 = scmp.ne.s32.totalorder %s134, %s135
      %p146 = scmp.eq.s32.totalorder %s16, 0
      %p147 = por %p145, %p146
      %p148 = scmp.ne.s32.totalorder %s134, %s135
      %p149 = scmp.eq.s32.totalorder %s17, 1
      %p150 = por %p148, %p149
      %p152 = scmp.ne.s32.totalorder %s135, %s151
      %p153 = scmp.eq.s32.totalorder %s17, 0
      %p154 = por %p152, %p153
      %p155 = scmp.le.s32.totalorder 1, %s11
      %p156 = scmp.lt.s32.totalorder %s11, 3
      %p157 = pnand %p155, %p156
      %p158 = pneg %p157
      // Predicated region
      $region9: #{tpu_custom_call.1} parent=5 // pred_check
        _
      $region10: #{tpu_custom_call.1} parent=5 // pred_check_branch
        %160 = sbr.rel (%p157) target = $region12
      $region11: #{tpu_custom_call.1} parent=5 // pred_region
        %s161 = ssub.s32 %s11, 1
        // Predicated region
        $region13: #{tpu_custom_call.1} parent=11 // pred_check
          %p162 = pneg %p58
        $region14: #{tpu_custom_call.1} parent=11 // pred_check_branch
          %164 = sbr.rel (%p162) target = $region16
        $region15: #{tpu_custom_call.1} parent=11 // pred_region
          _
        $region16: #{tpu_custom_call.1} parent=11 // pred_fallthru
          _
        // Predicated region
        $region17: #{tpu_custom_call.1} parent=11 // pred_check
          %p165 = pneg %p79
        $region18: #{tpu_custom_call.1} parent=11 // pred_check_branch
          %167 = sbr.rel (%p165) target = $region20
        $region19: #{tpu_custom_call.1} parent=11 // pred_region
          _
        $region20: #{tpu_custom_call.1} parent=11 // pred_fallthru
          _
        // Predicated region
        $region21: #{tpu_custom_call.1} parent=11 // pred_check
          %p168 = pneg %p100
        $region22: #{tpu_custom_call.1} parent=11 // pred_check_branch
          %170 = sbr.rel (%p168) target = $region24
        $region23: #{tpu_custom_call.1} parent=11 // pred_region
          _
        $region24: #{tpu_custom_call.1} parent=11 // pred_fallthru
          _
        // Predicated region
        $region25: #{tpu_custom_call.1} parent=11 // pred_check
          %p171 = pneg %p121
        $region26: #{tpu_custom_call.1} parent=11 // pred_check_branch
          %173 = sbr.rel (%p171) target = $region28
        $region27: #{tpu_custom_call.1} parent=11 // pred_region
          _
        $region28: #{tpu_custom_call.1} parent=11 // pred_fallthru
          _
      $region12: #{tpu_custom_call.1} parent=5 // pred_fallthru
        _
      %p174 = scmp.lt.s32.totalorder %s11, 2
      // Predicated region
      $region29: #{tpu_custom_call.1} parent=5 // pred_check
        %p175 = pneg %p174
      $region30: #{tpu_custom_call.1} parent=5 // pred_check_branch
        %177 = sbr.rel (%p175) target = $region32
      $region31: #{tpu_custom_call.1} parent=5 // pred_region
        // Predicated region
        $region33: #{tpu_custom_call.1} parent=31 // pred_check
          %p178 = pneg %p31
        $region34: #{tpu_custom_call.1} parent=31 // pred_check_branch
          %180 = sbr.rel (%p178) target = $region36
        $region35: #{tpu_custom_call.1} parent=31 // pred_region
          %s181 = smul.u32 16, %s11
          %s182 = ssub.s32 25, %s181
          %p183 = scmp.lt.s32.totalorder %s182, 16
          %s184 = scalar_select %p183, %s182, 16
          %s185 = smul.u32 128, %s184
          %p186 = scmp.lt.s32.totalorder %s181, 24
          %s187 = scalar_select %p186, %s181, 24
          %s188 = smul.addr %s187, 8
          %s189 = scalar_lea.vmem %s0, %s188
          %s190 = smul.u32 16, %s11
          %s191 = ssub.s32 25, %s190
          %p192 = scmp.lt.s32.totalorder %s191, 16
          %s193 = scalar_select %p192, %s191, 16
          %s194 = smul.u32 128, %s193
        $region36: #{tpu_custom_call.1} parent=31 // pred_fallthru
          _
      $region32: #{tpu_custom_call.1} parent=5 // pred_fallthru
        _
      %p195 = scmp.le.s32.totalorder 1, %s11
      %p196 = scmp.lt.s32.totalorder %s11, 3
      %p197 = pnand %p195, %p196
      %p198 = pneg %p197
      // Predicated region
      $region37: #{tpu_custom_call.1} parent=5 // pred_check
        _
      $region38: #{tpu_custom_call.1} parent=5 // pred_check_branch
        %200 = sbr.rel (%p197) target = $region40
      $region39: #{tpu_custom_call.1} parent=5 // pred_region
        %s201 = ssub.s32 %s11, 1
        %s202 = smul.u32 16, %s16
        %s203 = ssub.s32 25, %s202
        %p204 = scmp.lt.s32.totalorder %s203, 16
        %s205 = scalar_select %p204, %s203, 16
        %s206 = smul.u32 128, %s205
        %p207 = scmp.lt.s32.totalorder %s202, 24
        %s208 = scalar_select %p207, %s202, 24
        %s209 = smul.addr %s208, 8
        %s210 = scalar_lea.vmem %s0, %s209
        %p211 = pneg %p37
        %p212 = pneg %p34
        %p213 = pneg %p58
        %p214 = pneg %p55
        %p215 = pneg %p79
        %p216 = pneg %p76
        %p217 = pneg %p100
        %p218 = pneg %p97
        %p219 = pneg %p121
        %p220 = pneg %p118
        %p221 = pneg %p147
        %p222 = pneg %p144
        %s223 = sand.u32 %s134, 1
        %s224 = sand.u32 %s134, 1
        %s225 = smul.addr %s224, 128
        %s226 = scalar_lea.vmem [#allocation2], %s225
        %s227 = smul.u32 16, %s16
        %s228 = ssub.s32 25, %s227
        %p229 = scmp.lt.s32.totalorder %s228, 16
        %s230 = scalar_select %p229, %s228, 16
        %s231 = smul.u32 128, %s230
        %p232 = scmp.lt.s32.totalorder %s227, 24
        %s233 = scalar_select %p232, %s227, 24
        %s234 = smul.addr %s233, 8
        %s235 = scalar_lea.vmem %s0, %s234
        %s236 = smul.u32 16, %s16
        %s237 = ssub.s32 25, %s236
        %p238 = scmp.lt.s32.totalorder %s237, 16
        %s239 = scalar_select %p238, %s237, 16
        %s240 = smul.u32 128, %s239
        %s241 = smul.u32 16, %s16
        %s242 = ssub.s32 25, %s241
        %p243 = scmp.lt.s32.totalorder %s242, 16
        %s244 = scalar_select %p243, %s242, 16
        %s245 = smul.u32 128, %s244
        %v246 = vld [vmem:[%s235] sm:$0xff]
        %v247 = vld [vmem:[%s235 + $0x8] sm:$0xff]
        %v248 = vld [vmem:[%s235 + $0x10] sm:$0xff]
        %v249 = vld [vmem:[%s235 + $0x18] sm:$0xff]
        %v250 = vld [vmem:[%s235 + $0x20] sm:$0xff]
        %v251 = vld [vmem:[%s235 + $0x28] sm:$0xff]
        %v252 = vld [vmem:[%s235 + $0x30] sm:$0xff]
        %v253 = vld [vmem:[%s235 + $0x38] sm:$0xff]
        %v254 = vld [vmem:[%s235 + $0x40] sm:$0xff]
        %v255 = vld [vmem:[%s235 + $0x48] sm:$0xff]
        %v256 = vld [vmem:[%s235 + $0x50] sm:$0xff]
        %v257 = vld [vmem:[%s235 + $0x58] sm:$0xff]
        %v258 = vld [vmem:[%s235 + $0x60] sm:$0xff]
        %v259 = vld [vmem:[%s235 + $0x68] sm:$0xff]
        %v260 = vld [vmem:[%s235 + $0x70] sm:$0xff]
        %v261 = vld [vmem:[%s235 + $0x78] sm:$0xff]
        %v262 = vld [vmem:[%s1] sm:$0xff]
        %v263 = vld [vmem:[%s1 + $0x8] sm:$0xff]
        %v264 = vld [vmem:[%s1 + $0x10] sm:$0xff]
        %v265 = vld [vmem:[%s1 + $0x18] sm:$0xff]
        %v266 = vld [vmem:[%s1 + $0x20] sm:$0xff]
        %v267 = vld [vmem:[%s1 + $0x28] sm:$0xff]
        %v268 = vld [vmem:[%s1 + $0x30] sm:$0xff]
        %v269 = vld [vmem:[%s1 + $0x38] sm:$0xff]
        %vm270 = vcmask 523264
        %v272 = vsel %vm270, %v246, 0
        %v275 = vsel %vm270, %v247, 0
        %v278 = vsel %vm270, %v248, 0
        %v281 = vsel %vm270, %v249, 0
        %v284 = vsel %vm270, %v250, 0
        %v287 = vsel %vm270, %v251, 0
        %v290 = vsel %vm270, %v252, 0
        %v293 = vsel %vm270, %v253, 0
        %v296 = vsel %vm270, %v254, 0
        %v299 = vsel %vm270, %v255, 0
        %v302 = vsel %vm270, %v256, 0
        %v305 = vsel %vm270, %v257, 0
        %v308 = vsel %vm270, %v258, 0
        %v311 = vsel %vm270, %v259, 0
        %v314 = vsel %vm270, %v260, 0
        %v317 = vsel %vm270, %v261, 0
        %319 = vmatprep.subr.mxu0 0.0
        %320 = vmatpush1.msra.mxu0 0.0
        %321 = vmatprep.subr.mxu0 0.0
        %322 = vmatpush1.msra.mxu0 0.0
        %323 = vmatprep.subr.mxu0 0.0
        %324 = vmatpush1.msra.mxu0 0.0
        %325 = vmatprep.subr.mxu0 0.0
        %326 = vmatpush1.msra.mxu0 0.0
        %327 = vmatprep.subr.mxu0 0.0
        %328 = vmatpush1.msra.mxu0 0.0
        %329 = vmatprep.subr.mxu0 0.0
        %330 = vmatpush1.msra.mxu0 0.0
        %331 = vmatprep.subr.mxu0 0.0
        %332 = vmatpush1.msra.mxu0 0.0
        %333 = vmatprep.subr.mxu0 0.0
        %334 = vmatpush1.msra.mxu0 0.0
        %335 = vmatprep.subr.mxu0 0.0
        %336 = vmatpush1.msra.mxu0 %v269
        %337 = vmatprep.subr.mxu0 0.0
        %338 = vmatpush1.msra.mxu0 %v268
        %339 = vmatprep.subr.mxu0 0.0
        %340 = vmatpush1.msra.mxu0 %v267
        %341 = vmatprep.subr.mxu0 0.0
        %342 = vmatpush1.msra.mxu0 %v266
        %343 = vmatprep.subr.mxu0 0.0
        %344 = vmatpush1.msra.mxu0 %v265
        %345 = vmatprep.subr.mxu0 0.0
        %346 = vmatpush1.msra.mxu0 %v264
        %347 = vmatprep.subr.mxu0 0.0
        %348 = vmatpush1.msra.mxu0 %v263
        %349 = vmatprep.subr.mxu0 0.0
        %350 = vmatpush1.msra.mxu0 %v262
        %351 = vmatprep.subr.mxu0 0.0
        %352 = vmatpush2.msra.mxu0 0.0
        %353 = vmatprep.subr.mxu0 0.0
        %354 = vmatpush2.msra.mxu0 0.0
        %355 = vmatprep.subr.mxu0 0.0
        %356 = vmatpush2.msra.mxu0 0.0
        %357 = vmatprep.subr.mxu0 0.0
        %358 = vmatpush2.msra.mxu0 0.0
        %359 = vmatprep.subr.mxu0 0.0
        %360 = vmatpush2.msra.mxu0 0.0
        %361 = vmatprep.subr.mxu0 0.0
        %362 = vmatpush2.msra.mxu0 0.0
        %363 = vmatprep.subr.mxu0 0.0
        %364 = vmatpush2.msra.mxu0 0.0
        %365 = vmatprep.subr.mxu0 0.0
        %366 = vmatpush2.msra.mxu0 0.0
        %367 = vmatprep.subr.mxu0 0.0
        %368 = vmatpush2.msra.mxu0 0.0
        %369 = vmatprep.subr.mxu0 0.0
        %370 = vmatpush2.msra.mxu0 0.0
        %371 = vmatprep.subr.mxu0 0.0
        %372 = vmatpush2.msra.mxu0 0.0
        %373 = vmatprep.subr.mxu0 0.0
        %374 = vmatpush2.msra.mxu0 0.0
        %375 = vmatprep.subr.mxu0 0.0
        %376 = vmatpush2.msra.mxu0 0.0
        %377 = vmatprep.subr.mxu0 0.0
        %378 = vmatpush2.msra.mxu0 0.0
        %379 = vmatprep.subr.mxu0 0.0
        %380 = vmatpush2.msra.mxu0 0.0
        %381 = vmatprep.subr.mxu0 0.0
        %382 = vmatpush2.msra.mxu0 0.0
        %383 = vmatprep.mubr.f32.mxu0 0.0
        %384 = vmatmul.mubr.f32.gmra.mxu0 %v272
        %v385 = vpop.f32.mrf.mxu0
        %v386 = vadd.f32 0.0, %v385
        %v387 = vpop.f32.mrf.mxu0
        %388 = vmatprep.mubr.f32.mxu0 0.0
        %389 = vmatmul.mubr.f32.gmra.mxu0 %v275
        %v390 = vpop.f32.mrf.mxu0
        %v391 = vadd.f32 0.0, %v390
        %v392 = vpop.f32.mrf.mxu0
        %393 = vmatprep.mubr.f32.mxu0 0.0
        %394 = vmatmul.mubr.f32.gmra.mxu0 %v278
        %v395 = vpop.f32.mrf.mxu0
        %v396 = vadd.f32 0.0, %v395
        %v397 = vpop.f32.mrf.mxu0
        %398 = vmatprep.mubr.f32.mxu0 0.0
        %399 = vmatmul.mubr.f32.gmra.mxu0 %v281
        %v400 = vpop.f32.mrf.mxu0
        %v401 = vadd.f32 0.0, %v400
        %v402 = vpop.f32.mrf.mxu0
        %403 = vmatprep.mubr.f32.mxu0 0.0
        %404 = vmatmul.mubr.f32.gmra.mxu0 %v284
        %v405 = vpop.f32.mrf.mxu0
        %v406 = vadd.f32 0.0, %v405
        %v407 = vpop.f32.mrf.mxu0
        %408 = vmatprep.mubr.f32.mxu0 0.0
        %409 = vmatmul.mubr.f32.gmra.mxu0 %v287
        %v410 = vpop.f32.mrf.mxu0
        %v411 = vadd.f32 0.0, %v410
        %v412 = vpop.f32.mrf.mxu0
        %413 = vmatprep.mubr.f32.mxu0 0.0
        %414 = vmatmul.mubr.f32.gmra.mxu0 %v290
        %v415 = vpop.f32.mrf.mxu0
        %v416 = vadd.f32 0.0, %v415
        %v417 = vpop.f32.mrf.mxu0
        %418 = vmatprep.mubr.f32.mxu0 0.0
        %419 = vmatmul.mubr.f32.gmra.mxu0 %v293
        %v420 = vpop.f32.mrf.mxu0
        %v421 = vadd.f32 0.0, %v420
        %v422 = vpop.f32.mrf.mxu0
        %423 = vmatprep.mubr.f32.mxu0 0.0
        %424 = vmatmul.mubr.f32.gmra.mxu0 %v296
        %v425 = vpop.f32.mrf.mxu0
        %v426 = vadd.f32 0.0, %v425
        %v427 = vpop.f32.mrf.mxu0
        %428 = vmatprep.mubr.f32.mxu0 0.0
        %429 = vmatmul.mubr.f32.gmra.mxu0 %v299
        %v430 = vpop.f32.mrf.mxu0
        %v431 = vadd.f32 0.0, %v430
        %v432 = vpop.f32.mrf.mxu0
        %433 = vmatprep.mubr.f32.mxu0 0.0
        %434 = vmatmul.mubr.f32.gmra.mxu0 %v302
        %v435 = vpop.f32.mrf.mxu0
        %v436 = vadd.f32 0.0, %v435
        %v437 = vpop.f32.mrf.mxu0
        %438 = vmatprep.mubr.f32.mxu0 0.0
        %439 = vmatmul.mubr.f32.gmra.mxu0 %v305
        %v440 = vpop.f32.mrf.mxu0
        %v441 = vadd.f32 0.0, %v440
        %v442 = vpop.f32.mrf.mxu0
        %443 = vmatprep.mubr.f32.mxu0 0.0
        %444 = vmatmul.mubr.f32.gmra.mxu0 %v308
        %v445 = vpop.f32.mrf.mxu0
        %v446 = vadd.f32 0.0, %v445
        %v447 = vpop.f32.mrf.mxu0
        %448 = vmatprep.mubr.f32.mxu0 0.0
        %449 = vmatmul.mubr.f32.gmra.mxu0 %v311
        %v450 = vpop.f32.mrf.mxu0
        %v451 = vadd.f32 0.0, %v450
        %v452 = vpop.f32.mrf.mxu0
        %453 = vmatprep.mubr.f32.mxu0 0.0
        %454 = vmatmul.mubr.f32.gmra.mxu0 %v314
        %v455 = vpop.f32.mrf.mxu0
        %v456 = vadd.f32 0.0, %v455
        %v457 = vpop.f32.mrf.mxu0
        %458 = vmatprep.mubr.f32.mxu0 0.0
        %459 = vmatmul.mubr.f32.gmra.mxu0 %v317
        %v460 = vpop.f32.mrf.mxu0
        %v461 = vadd.f32 0.0, %v460
        %v462 = vpop.f32.mrf.mxu0
        %463 = vdwg.mxu0
        %v464 = vtanh.pop %v386
        %v465 = vtanh.pop %v391
        %v466 = vtanh.pop %v396
        %v467 = vtanh.pop %v401
        %v468 = vtanh.pop %v406
        %v469 = vtanh.pop %v411
        %v470 = vtanh.pop %v416
        %v471 = vtanh.pop %v421
        %v472 = vtanh.pop %v426
        %v473 = vtanh.pop %v431
        %v474 = vtanh.pop %v436
        %v475 = vtanh.pop %v441
        %v476 = vtanh.pop %v446
        %v477 = vtanh.pop %v451
        %v478 = vtanh.pop %v456
        %v479 = vtanh.pop %v461
        %v480 = vld [vmem:[%s2] sm:$0xff]
        %v481 = vld [vmem:[%s2 + $0x8] sm:$0xff]
        %v482 = vld [vmem:[%s2 + $0x10] sm:$0xff]
        %v483 = vld [vmem:[%s2 + $0x18] sm:$0xff]
        %v484 = vld [vmem:[%s2 + $0x20] sm:$0xff]
        %v485 = vld [vmem:[%s2 + $0x28] sm:$0xff]
        %v486 = vld [vmem:[%s2 + $0x30] sm:$0xff]
        %v487 = vld [vmem:[%s2 + $0x38] sm:$0xff]
        %v488 = vld [vmem:[%s2 + $0x40] sm:$0xff]
        %v489 = vld [vmem:[%s2 + $0x48] sm:$0xff]
        %v490 = vld [vmem:[%s2 + $0x50] sm:$0xff]
        %v491 = vld [vmem:[%s2 + $0x58] sm:$0xff]
        %v492 = vld [vmem:[%s2 + $0x60] sm:$0xff]
        %v493 = vld [vmem:[%s2 + $0x68] sm:$0xff]
        %v494 = vld [vmem:[%s2 + $0x70] sm:$0xff]
        %v495 = vld [vmem:[%s2 + $0x78] sm:$0xff]
        %496 = vmatprep.subr.mxu0 0.0
        %497 = vmatpush1.msra.mxu0 %v495
        %498 = vmatprep.subr.mxu0 0.0
        %499 = vmatpush1.msra.mxu0 %v494
        %500 = vmatprep.subr.mxu0 0.0
        %501 = vmatpush1.msra.mxu0 %v493
        %502 = vmatprep.subr.mxu0 0.0
        %503 = vmatpush1.msra.mxu0 %v492
        %504 = vmatprep.subr.mxu0 0.0
        %505 = vmatpush1.msra.mxu0 %v491
        %506 = vmatprep.subr.mxu0 0.0
        %507 = vmatpush1.msra.mxu0 %v490
        %508 = vmatprep.subr.mxu0 0.0
        %509 = vmatpush1.msra.mxu0 %v489
        %510 = vmatprep.subr.mxu0 0.0
        %511 = vmatpush1.msra.mxu0 %v488
        %512 = vmatprep.subr.mxu0 0.0
        %513 = vmatpush1.msra.mxu0 %v487
        %514 = vmatprep.subr.mxu0 0.0
        %515 = vmatpush1.msra.mxu0 %v486
        %516 = vmatprep.subr.mxu0 0.0
        %517 = vmatpush1.msra.mxu0 %v485
        %518 = vmatprep.subr.mxu0 0.0
        %519 = vmatpush1.msra.mxu0 %v484
        %520 = vmatprep.subr.mxu0 0.0
        %521 = vmatpush1.msra.mxu0 %v483
        %522 = vmatprep.subr.mxu0 0.0
        %523 = vmatpush1.msra.mxu0 %v482
        %524 = vmatprep.subr.mxu0 0.0
        %525 = vmatpush1.msra.mxu0 %v481
        %526 = vmatprep.subr.mxu0 0.0
        %527 = vmatpush1.msra.mxu0 %v480
        %528 = vmatprep.subr.mxu0 0.0
        %529 = vmatpush2.msra.mxu0 0.0
        %530 = vmatprep.subr.mxu0 0.0
        %531 = vmatpush2.msra.mxu0 0.0
        %532 = vmatprep.subr.mxu0 0.0
        %533 = vmatpush2.msra.mxu0 0.0
        %534 = vmatprep.subr.mxu0 0.0
        %535 = vmatpush2.msra.mxu0 0.0
        %536 = vmatprep.subr.mxu0 0.0
        %537 = vmatpush2.msra.mxu0 0.0
        %538 = vmatprep.subr.mxu0 0.0
        %539 = vmatpush2.msra.mxu0 0.0
        %540 = vmatprep.subr.mxu0 0.0
        %541 = vmatpush2.msra.mxu0 0.0
        %542 = vmatprep.subr.mxu0 0.0
        %543 = vmatpush2.msra.mxu0 0.0
        %544 = vmatprep.subr.mxu0 0.0
        %545 = vmatpush2.msra.mxu0 0.0
        %546 = vmatprep.subr.mxu0 0.0
        %547 = vmatpush2.msra.mxu0 0.0
        %548 = vmatprep.subr.mxu0 0.0
        %549 = vmatpush2.msra.mxu0 0.0
        %550 = vmatprep.subr.mxu0 0.0
        %551 = vmatpush2.msra.mxu0 0.0
        %552 = vmatprep.subr.mxu0 0.0
        %553 = vmatpush2.msra.mxu0 0.0
        %554 = vmatprep.subr.mxu0 0.0
        %555 = vmatpush2.msra.mxu0 0.0
        %556 = vmatprep.subr.mxu0 0.0
        %557 = vmatpush2.msra.mxu0 0.0
        %558 = vmatprep.subr.mxu0 0.0
        %559 = vmatpush2.msra.mxu0 0.0
        %560 = vmatprep.mubr.f32.mxu0 0.0
        %561 = vmatmul.mubr.f32.gmra.mxu0 %v464
        %v562 = vpop.f32.mrf.mxu0
        %v563 = vadd.f32 0.0, %v562
        %v564 = vpop.f32.mrf.mxu0
        %565 = vmatprep.mubr.f32.mxu0 0.0
        %566 = vmatmul.mubr.f32.gmra.mxu0 %v465
        %v567 = vpop.f32.mrf.mxu0
        %v568 = vadd.f32 0.0, %v567
        %v569 = vpop.f32.mrf.mxu0
        %570 = vmatprep.mubr.f32.mxu0 0.0
        %571 = vmatmul.mubr.f32.gmra.mxu0 %v466
        %v572 = vpop.f32.mrf.mxu0
        %v573 = vadd.f32 0.0, %v572
        %v574 = vpop.f32.mrf.mxu0
        %575 = vmatprep.mubr.f32.mxu0 0.0
        %576 = vmatmul.mubr.f32.gmra.mxu0 %v467
        %v577 = vpop.f32.mrf.mxu0
        %v578 = vadd.f32 0.0, %v577
        %v579 = vpop.f32.mrf.mxu0
        %580 = vmatprep.mubr.f32.mxu0 0.0
        %581 = vmatmul.mubr.f32.gmra.mxu0 %v468
        %v582 = vpop.f32.mrf.mxu0
        %v583 = vadd.f32 0.0, %v582
        %v584 = vpop.f32.mrf.mxu0
        %585 = vmatprep.mubr.f32.mxu0 0.0
        %586 = vmatmul.mubr.f32.gmra.mxu0 %v469
        %v587 = vpop.f32.mrf.mxu0
        %v588 = vadd.f32 0.0, %v587
        %v589 = vpop.f32.mrf.mxu0
        %590 = vmatprep.mubr.f32.mxu0 0.0
        %591 = vmatmul.mubr.f32.gmra.mxu0 %v470
        %v592 = vpop.f32.mrf.mxu0
        %v593 = vadd.f32 0.0, %v592
        %v594 = vpop.f32.mrf.mxu0
        %595 = vmatprep.mubr.f32.mxu0 0.0
        %596 = vmatmul.mubr.f32.gmra.mxu0 %v471
        %v597 = vpop.f32.mrf.mxu0
        %v598 = vadd.f32 0.0, %v597
        %v599 = vpop.f32.mrf.mxu0
        %600 = vmatprep.mubr.f32.mxu0 0.0
        %601 = vmatmul.mubr.f32.gmra.mxu0 %v472
        %v602 = vpop.f32.mrf.mxu0
        %v603 = vadd.f32 0.0, %v602
        %v604 = vpop.f32.mrf.mxu0
        %605 = vmatprep.mubr.f32.mxu0 0.0
        %606 = vmatmul.mubr.f32.gmra.mxu0 %v473
        %v607 = vpop.f32.mrf.mxu0
        %v608 = vadd.f32 0.0, %v607
        %v609 = vpop.f32.mrf.mxu0
        %610 = vmatprep.mubr.f32.mxu0 0.0
        %611 = vmatmul.mubr.f32.gmra.mxu0 %v474
        %v612 = vpop.f32.mrf.mxu0
        %v613 = vadd.f32 0.0, %v612
        %v614 = vpop.f32.mrf.mxu0
        %615 = vmatprep.mubr.f32.mxu0 0.0
        %616 = vmatmul.mubr.f32.gmra.mxu0 %v475
        %v617 = vpop.f32.mrf.mxu0
        %v618 = vadd.f32 0.0, %v617
        %v619 = vpop.f32.mrf.mxu0
        %620 = vmatprep.mubr.f32.mxu0 0.0
        %621 = vmatmul.mubr.f32.gmra.mxu0 %v476
        %v622 = vpop.f32.mrf.mxu0
        %v623 = vadd.f32 0.0, %v622
        %v624 = vpop.f32.mrf.mxu0
        %625 = vmatprep.mubr.f32.mxu0 0.0
        %626 = vmatmul.mubr.f32.gmra.mxu0 %v477
        %v627 = vpop.f32.mrf.mxu0
        %v628 = vadd.f32 0.0, %v627
        %v629 = vpop.f32.mrf.mxu0
        %630 = vmatprep.mubr.f32.mxu0 0.0
        %631 = vmatmul.mubr.f32.gmra.mxu0 %v478
        %v632 = vpop.f32.mrf.mxu0
        %v633 = vadd.f32 0.0, %v632
        %v634 = vpop.f32.mrf.mxu0
        %635 = vmatprep.mubr.f32.mxu0 0.0
        %636 = vmatmul.mubr.f32.gmra.mxu0 %v479
        %v637 = vpop.f32.mrf.mxu0
        %v638 = vadd.f32 0.0, %v637
        %v639 = vpop.f32.mrf.mxu0
        %640 = vdwg.mxu0
        %v641 = vtanh.pop %v563
        %v642 = vtanh.pop %v568
        %v643 = vtanh.pop %v573
        %v644 = vtanh.pop %v578
        %v645 = vtanh.pop %v583
        %v646 = vtanh.pop %v588
        %v647 = vtanh.pop %v593
        %v648 = vtanh.pop %v598
        %v649 = vtanh.pop %v603
        %v650 = vtanh.pop %v608
        %v651 = vtanh.pop %v613
        %v652 = vtanh.pop %v618
        %v653 = vtanh.pop %v623
        %v654 = vtanh.pop %v628
        %v655 = vtanh.pop %v633
        %v656 = vtanh.pop %v638
        %v657 = vld [vmem:[%s3] sm:$0xff]
        %v658 = vld [vmem:[%s3 + $0x8] sm:$0xff]
        %v659 = vld [vmem:[%s3 + $0x10] sm:$0xff]
        %v660 = vld [vmem:[%s3 + $0x18] sm:$0xff]
        %v661 = vld [vmem:[%s3 + $0x20] sm:$0xff]
        %v662 = vld [vmem:[%s3 + $0x28] sm:$0xff]
        %v663 = vld [vmem:[%s3 + $0x30] sm:$0xff]
        %v664 = vld [vmem:[%s3 + $0x38] sm:$0xff]
        %v665 = vld [vmem:[%s3 + $0x40] sm:$0xff]
        %v666 = vld [vmem:[%s3 + $0x48] sm:$0xff]
        %v667 = vld [vmem:[%s3 + $0x50] sm:$0xff]
        %v668 = vld [vmem:[%s3 + $0x58] sm:$0xff]
        %v669 = vld [vmem:[%s3 + $0x60] sm:$0xff]
        %v670 = vld [vmem:[%s3 + $0x68] sm:$0xff]
        %v671 = vld [vmem:[%s3 + $0x70] sm:$0xff]
        %v672 = vld [vmem:[%s3 + $0x78] sm:$0xff]
        %v673 = vld [vmem:[%s4] sm:$0x1]
        %v675 = vlaneseq
        %v676 = vshrl.u32 %v675, 7
        %v677 = vsub.s32 0, %v676
        %v678 = vrot.slane %v673, %v677
        %680 = vmatprep.subr.mxu0 0.0
        %681 = vmatpush1.msra.mxu0 %v672
        %682 = vmatprep.subr.mxu0 0.0
        %683 = vmatpush1.msra.mxu0 %v671
        %684 = vmatprep.subr.mxu0 0.0
        %685 = vmatpush1.msra.mxu0 %v670
        %686 = vmatprep.subr.mxu0 0.0
        %687 = vmatpush1.msra.mxu0 %v669
        %688 = vmatprep.subr.mxu0 0.0
        %689 = vmatpush1.msra.mxu0 %v668
        %690 = vmatprep.subr.mxu0 0.0
        %691 = vmatpush1.msra.mxu0 %v667
        %692 = vmatprep.subr.mxu0 0.0
        %693 = vmatpush1.msra.mxu0 %v666
        %694 = vmatprep.subr.mxu0 0.0
        %695 = vmatpush1.msra.mxu0 %v665
        %696 = vmatprep.subr.mxu0 0.0
        %697 = vmatpush1.msra.mxu0 %v664
        %698 = vmatprep.subr.mxu0 0.0
        %699 = vmatpush1.msra.mxu0 %v663
        %700 = vmatprep.subr.mxu0 0.0
        %701 = vmatpush1.msra.mxu0 %v662
        %702 = vmatprep.subr.mxu0 0.0
        %703 = vmatpush1.msra.mxu0 %v661
        %704 = vmatprep.subr.mxu0 0.0
        %705 = vmatpush1.msra.mxu0 %v660
        %706 = vmatprep.subr.mxu0 0.0
        %707 = vmatpush1.msra.mxu0 %v659
        %708 = vmatprep.subr.mxu0 0.0
        %709 = vmatpush1.msra.mxu0 %v658
        %710 = vmatprep.subr.mxu0 0.0
        %711 = vmatpush1.msra.mxu0 %v657
        %712 = vmatprep.subr.mxu0 0.0
        %713 = vmatpush2.msra.mxu0 0.0
        %714 = vmatprep.subr.mxu0 0.0
        %715 = vmatpush2.msra.mxu0 0.0
        %716 = vmatprep.subr.mxu0 0.0
        %717 = vmatpush2.msra.mxu0 0.0
        %718 = vmatprep.subr.mxu0 0.0
        %719 = vmatpush2.msra.mxu0 0.0
        %720 = vmatprep.subr.mxu0 0.0
        %721 = vmatpush2.msra.mxu0 0.0
        %722 = vmatprep.subr.mxu0 0.0
        %723 = vmatpush2.msra.mxu0 0.0
        %724 = vmatprep.subr.mxu0 0.0
        %725 = vmatpush2.msra.mxu0 0.0
        %726 = vmatprep.subr.mxu0 0.0
        %727 = vmatpush2.msra.mxu0 0.0
        %728 = vmatprep.subr.mxu0 0.0
        %729 = vmatpush2.msra.mxu0 0.0
        %730 = vmatprep.subr.mxu0 0.0
        %731 = vmatpush2.msra.mxu0 0.0
        %732 = vmatprep.subr.mxu0 0.0
        %733 = vmatpush2.msra.mxu0 0.0
        %734 = vmatprep.subr.mxu0 0.0
        %735 = vmatpush2.msra.mxu0 0.0
        %736 = vmatprep.subr.mxu0 0.0
        %737 = vmatpush2.msra.mxu0 0.0
        %738 = vmatprep.subr.mxu0 0.0
        %739 = vmatpush2.msra.mxu0 0.0
        %740 = vmatprep.subr.mxu0 0.0
        %741 = vmatpush2.msra.mxu0 0.0
        %742 = vmatprep.subr.mxu0 0.0
        %743 = vmatpush2.msra.mxu0 0.0
        %744 = vmatprep.mubr.f32.mxu0 0.0
        %745 = vmatmul.mubr.f32.gmra.mxu0 %v641
        %v746 = vpop.f32.mrf.mxu0
        %v747 = vadd.f32 %v678, %v746
        %v748 = vpop.f32.mrf.mxu0
        %749 = vmatprep.mubr.f32.mxu0 0.0
        %750 = vmatmul.mubr.f32.gmra.mxu0 %v642
        %v751 = vpop.f32.mrf.mxu0
        %v752 = vadd.f32 %v678, %v751
        %v753 = vpop.f32.mrf.mxu0
        %754 = vmatprep.mubr.f32.mxu0 0.0
        %755 = vmatmul.mubr.f32.gmra.mxu0 %v643
        %v756 = vpop.f32.mrf.mxu0
        %v757 = vadd.f32 %v678, %v756
        %v758 = vpop.f32.mrf.mxu0
        %759 = vmatprep.mubr.f32.mxu0 0.0
        %760 = vmatmul.mubr.f32.gmra.mxu0 %v644
        %v761 = vpop.f32.mrf.mxu0
        %v762 = vadd.f32 %v678, %v761
        %v763 = vpop.f32.mrf.mxu0
        %764 = vmatprep.mubr.f32.mxu0 0.0
        %765 = vmatmul.mubr.f32.gmra.mxu0 %v645
        %v766 = vpop.f32.mrf.mxu0
        %v767 = vadd.f32 %v678, %v766
        %v768 = vpop.f32.mrf.mxu0
        %769 = vmatprep.mubr.f32.mxu0 0.0
        %770 = vmatmul.mubr.f32.gmra.mxu0 %v646
        %v771 = vpop.f32.mrf.mxu0
        %v772 = vadd.f32 %v678, %v771
        %v773 = vpop.f32.mrf.mxu0
        %774 = vmatprep.mubr.f32.mxu0 0.0
        %775 = vmatmul.mubr.f32.gmra.mxu0 %v647
        %v776 = vpop.f32.mrf.mxu0
        %v777 = vadd.f32 %v678, %v776
        %v778 = vpop.f32.mrf.mxu0
        %779 = vmatprep.mubr.f32.mxu0 0.0
        %780 = vmatmul.mubr.f32.gmra.mxu0 %v648
        %v781 = vpop.f32.mrf.mxu0
        %v782 = vadd.f32 %v678, %v781
        %v783 = vpop.f32.mrf.mxu0
        %784 = vmatprep.mubr.f32.mxu0 0.0
        %785 = vmatmul.mubr.f32.gmra.mxu0 %v649
        %v786 = vpop.f32.mrf.mxu0
        %v787 = vadd.f32 %v678, %v786
        %v788 = vpop.f32.mrf.mxu0
        %789 = vmatprep.mubr.f32.mxu0 0.0
        %790 = vmatmul.mubr.f32.gmra.mxu0 %v650
        %v791 = vpop.f32.mrf.mxu0
        %v792 = vadd.f32 %v678, %v791
        %v793 = vpop.f32.mrf.mxu0
        %794 = vmatprep.mubr.f32.mxu0 0.0
        %795 = vmatmul.mubr.f32.gmra.mxu0 %v651
        %v796 = vpop.f32.mrf.mxu0
        %v797 = vadd.f32 %v678, %v796
        %v798 = vpop.f32.mrf.mxu0
        %799 = vmatprep.mubr.f32.mxu0 0.0
        %800 = vmatmul.mubr.f32.gmra.mxu0 %v652
        %v801 = vpop.f32.mrf.mxu0
        %v802 = vadd.f32 %v678, %v801
        %v803 = vpop.f32.mrf.mxu0
        %804 = vmatprep.mubr.f32.mxu0 0.0
        %805 = vmatmul.mubr.f32.gmra.mxu0 %v653
        %v806 = vpop.f32.mrf.mxu0
        %v807 = vadd.f32 %v678, %v806
        %v808 = vpop.f32.mrf.mxu0
        %809 = vmatprep.mubr.f32.mxu0 0.0
        %810 = vmatmul.mubr.f32.gmra.mxu0 %v654
        %v811 = vpop.f32.mrf.mxu0
        %v812 = vadd.f32 %v678, %v811
        %v813 = vpop.f32.mrf.mxu0
        %814 = vmatprep.mubr.f32.mxu0 0.0
        %815 = vmatmul.mubr.f32.gmra.mxu0 %v655
        %v816 = vpop.f32.mrf.mxu0
        %v817 = vadd.f32 %v678, %v816
        %v818 = vpop.f32.mrf.mxu0
        %819 = vmatprep.mubr.f32.mxu0 0.0
        %820 = vmatmul.mubr.f32.gmra.mxu0 %v656
        %v821 = vpop.f32.mrf.mxu0
        %v822 = vadd.f32 %v678, %v821
        %v823 = vpop.f32.mrf.mxu0
        %824 = vdwg.mxu0
        %v825 = vmul.f32 %v246, %v747
        %v826 = vmul.f32 %v247, %v752
        %v827 = vmul.f32 %v248, %v757
        %v828 = vmul.f32 %v249, %v762
        %v829 = vmul.f32 %v250, %v767
        %v830 = vmul.f32 %v251, %v772
        %v831 = vmul.f32 %v252, %v777
        %v832 = vmul.f32 %v253, %v782
        %v833 = vmul.f32 %v254, %v787
        %v834 = vmul.f32 %v255, %v792
        %v835 = vmul.f32 %v256, %v797
        %v836 = vmul.f32 %v257, %v802
        %v837 = vmul.f32 %v258, %v807
        %v838 = vmul.f32 %v259, %v812
        %v839 = vmul.f32 %v260, %v817
        %v840 = vmul.f32 %v261, %v822
        %v841 = vadd.f32 %v825, %v246
        %v842 = vadd.f32 %v826, %v247
        %v843 = vadd.f32 %v827, %v248
        %v844 = vadd.f32 %v828, %v249
        %v845 = vadd.f32 %v829, %v250
        %v846 = vadd.f32 %v830, %v251
        %v847 = vadd.f32 %v831, %v252
        %v848 = vadd.f32 %v832, %v253
        %v849 = vadd.f32 %v833, %v254
        %v850 = vadd.f32 %v834, %v255
        %v851 = vadd.f32 %v835, %v256
        %v852 = vadd.f32 %v836, %v257
        %v853 = vadd.f32 %v837, %v258
        %v854 = vadd.f32 %v838, %v259
        %v855 = vadd.f32 %v839, %v260
        %v856 = vadd.f32 %v840, %v261
        %s857 = scalar_lea.vmem %s1, 64
        %v858 = vld [vmem:[%s857] sm:$0xff]
        %v859 = vld [vmem:[%s857 + $0x8] sm:$0xff]
        %v860 = vld [vmem:[%s857 + $0x10] sm:$0xff]
        %v861 = vld [vmem:[%s857 + $0x18] sm:$0xff]
        %v862 = vld [vmem:[%s857 + $0x20] sm:$0xff]
        %v863 = vld [vmem:[%s857 + $0x28] sm:$0xff]
        %v864 = vld [vmem:[%s857 + $0x30] sm:$0xff]
        %v865 = vld [vmem:[%s857 + $0x38] sm:$0xff]
        %v867 = vsel %vm270, %v841, 0
        %v870 = vsel %vm270, %v842, 0
        %v873 = vsel %vm270, %v843, 0
        %v876 = vsel %vm270, %v844, 0
        %v879 = vsel %vm270, %v845, 0
        %v882 = vsel %vm270, %v846, 0
        %v885 = vsel %vm270, %v847, 0
        %v888 = vsel %vm270, %v848, 0
        %v891 = vsel %vm270, %v849, 0
        %v894 = vsel %vm270, %v850, 0
        %v897 = vsel %vm270, %v851, 0
        %v900 = vsel %vm270, %v852, 0
        %v903 = vsel %vm270, %v853, 0
        %v906 = vsel %vm270, %v854, 0
        %v909 = vsel %vm270, %v855, 0
        %v912 = vsel %vm270, %v856, 0
        %914 = vmatprep.subr.mxu0 0.0
        %915 = vmatpush1.msra.mxu0 0.0
        %916 = vmatprep.subr.mxu0 0.0
        %917 = vmatpush1.msra.mxu0 0.0
        %918 = vmatprep.subr.mxu0 0.0
        %919 = vmatpush1.msra.mxu0 0.0
        %920 = vmatprep.subr.mxu0 0.0
        %921 = vmatpush1.msra.mxu0 0.0
        %922 = vmatprep.subr.mxu0 0.0
        %923 = vmatpush1.msra.mxu0 0.0
        %924 = vmatprep.subr.mxu0 0.0
        %925 = vmatpush1.msra.mxu0 0.0
        %926 = vmatprep.subr.mxu0 0.0
        %927 = vmatpush1.msra.mxu0 0.0
        %928 = vmatprep.subr.mxu0 0.0
        %929 = vmatpush1.msra.mxu0 0.0
        %930 = vmatprep.subr.mxu0 0.0
        %931 = vmatpush1.msra.mxu0 %v865
        %932 = vmatprep.subr.mxu0 0.0
        %933 = vmatpush1.msra.mxu0 %v864
        %934 = vmatprep.subr.mxu0 0.0
        %935 = vmatpush1.msra.mxu0 %v863
        %936 = vmatprep.subr.mxu0 0.0
        %937 = vmatpush1.msra.mxu0 %v862
        %938 = vmatprep.subr.mxu0 0.0
        %939 = vmatpush1.msra.mxu0 %v861
        %940 = vmatprep.subr.mxu0 0.0
        %941 = vmatpush1.msra.mxu0 %v860
        %942 = vmatprep.subr.mxu0 0.0
        %943 = vmatpush1.msra.mxu0 %v859
        %944 = vmatprep.subr.mxu0 0.0
        %945 = vmatpush1.msra.mxu0 %v858
        %946 = vmatprep.subr.mxu0 0.0
        %947 = vmatpush2.msra.mxu0 0.0
        %948 = vmatprep.subr.mxu0 0.0
        %949 = vmatpush2.msra.mxu0 0.0
        %950 = vmatprep.subr.mxu0 0.0
        %951 = vmatpush2.msra.mxu0 0.0
        %952 = vmatprep.subr.mxu0 0.0
        %953 = vmatpush2.msra.mxu0 0.0
        %954 = vmatprep.subr.mxu0 0.0
        %955 = vmatpush2.msra.mxu0 0.0
        %956 = vmatprep.subr.mxu0 0.0
        %957 = vmatpush2.msra.mxu0 0.0
        %958 = vmatprep.subr.mxu0 0.0
        %959 = vmatpush2.msra.mxu0 0.0
        %960 = vmatprep.subr.mxu0 0.0
        %961 = vmatpush2.msra.mxu0 0.0
        %962 = vmatprep.subr.mxu0 0.0
        %963 = vmatpush2.msra.mxu0 0.0
        %964 = vmatprep.subr.mxu0 0.0
        %965 = vmatpush2.msra.mxu0 0.0
        %966 = vmatprep.subr.mxu0 0.0
        %967 = vmatpush2.msra.mxu0 0.0
        %968 = vmatprep.subr.mxu0 0.0
        %969 = vmatpush2.msra.mxu0 0.0
        %970 = vmatprep.subr.mxu0 0.0
        %971 = vmatpush2.msra.mxu0 0.0
        %972 = vmatprep.subr.mxu0 0.0
        %973 = vmatpush2.msra.mxu0 0.0
        %974 = vmatprep.subr.mxu0 0.0
        %975 = vmatpush2.msra.mxu0 0.0
        %976 = vmatprep.subr.mxu0 0.0
        %977 = vmatpush2.msra.mxu0 0.0
        %978 = vmatprep.mubr.f32.mxu0 0.0
        %979 = vmatmul.mubr.f32.gmra.mxu0 %v867
        %v980 = vpop.f32.mrf.mxu0
        %v981 = vadd.f32 0.0, %v980
        %v982 = vpop.f32.mrf.mxu0
        %983 = vmatprep.mubr.f32.mxu0 0.0
        %984 = vmatmul.mubr.f32.gmra.mxu0 %v870
        %v985 = vpop.f32.mrf.mxu0
        %v986 = vadd.f32 0.0, %v985
        %v987 = vpop.f32.mrf.mxu0
        %988 = vmatprep.mubr.f32.mxu0 0.0
        %989 = vmatmul.mubr.f32.gmra.mxu0 %v873
        %v990 = vpop.f32.mrf.mxu0
        %v991 = vadd.f32 0.0, %v990
        %v992 = vpop.f32.mrf.mxu0
        %993 = vmatprep.mubr.f32.mxu0 0.0
        %994 = vmatmul.mubr.f32.gmra.mxu0 %v876
        %v995 = vpop.f32.mrf.mxu0
        %v996 = vadd.f32 0.0, %v995
        %v997 = vpop.f32.mrf.mxu0
        %998 = vmatprep.mubr.f32.mxu0 0.0
        %999 = vmatmul.mubr.f32.gmra.mxu0 %v879
        %v1000 = vpop.f32.mrf.mxu0
        %v1001 = vadd.f32 0.0, %v1000
        %v1002 = vpop.f32.mrf.mxu0
        %1003 = vmatprep.mubr.f32.mxu0 0.0
        %1004 = vmatmul.mubr.f32.gmra.mxu0 %v882
        %v1005 = vpop.f32.mrf.mxu0
        %v1006 = vadd.f32 0.0, %v1005
        %v1007 = vpop.f32.mrf.mxu0
        %1008 = vmatprep.mubr.f32.mxu0 0.0
        %1009 = vmatmul.mubr.f32.gmra.mxu0 %v885
        %v1010 = vpop.f32.mrf.mxu0
        %v1011 = vadd.f32 0.0, %v1010
        %v1012 = vpop.f32.mrf.mxu0
        %1013 = vmatprep.mubr.f32.mxu0 0.0
        %1014 = vmatmul.mubr.f32.gmra.mxu0 %v888
        %v1015 = vpop.f32.mrf.mxu0
        %v1016 = vadd.f32 0.0, %v1015
        %v1017 = vpop.f32.mrf.mxu0
        %1018 = vmatprep.mubr.f32.mxu0 0.0
        %1019 = vmatmul.mubr.f32.gmra.mxu0 %v891
        %v1020 = vpop.f32.mrf.mxu0
        %v1021 = vadd.f32 0.0, %v1020
        %v1022 = vpop.f32.mrf.mxu0
        %1023 = vmatprep.mubr.f32.mxu0 0.0
        %1024 = vmatmul.mubr.f32.gmra.mxu0 %v894
        %v1025 = vpop.f32.mrf.mxu0
        %v1026 = vadd.f32 0.0, %v1025
        %v1027 = vpop.f32.mrf.mxu0
        %1028 = vmatprep.mubr.f32.mxu0 0.0
        %1029 = vmatmul.mubr.f32.gmra.mxu0 %v897
        %v1030 = vpop.f32.mrf.mxu0
        %v1031 = vadd.f32 0.0, %v1030
        %v1032 = vpop.f32.mrf.mxu0
        %1033 = vmatprep.mubr.f32.mxu0 0.0
        %1034 = vmatmul.mubr.f32.gmra.mxu0 %v900
        %v1035 = vpop.f32.mrf.mxu0
        %v1036 = vadd.f32 0.0, %v1035
        %v1037 = vpop.f32.mrf.mxu0
        %1038 = vmatprep.mubr.f32.mxu0 0.0
        %1039 = vmatmul.mubr.f32.gmra.mxu0 %v903
        %v1040 = vpop.f32.mrf.mxu0
        %v1041 = vadd.f32 0.0, %v1040
        %v1042 = vpop.f32.mrf.mxu0
        %1043 = vmatprep.mubr.f32.mxu0 0.0
        %1044 = vmatmul.mubr.f32.gmra.mxu0 %v906
        %v1045 = vpop.f32.mrf.mxu0
        %v1046 = vadd.f32 0.0, %v1045
        %v1047 = vpop.f32.mrf.mxu0
        %1048 = vmatprep.mubr.f32.mxu0 0.0
        %1049 = vmatmul.mubr.f32.gmra.mxu0 %v909
        %v1050 = vpop.f32.mrf.mxu0
        %v1051 = vadd.f32 0.0, %v1050
        %v1052 = vpop.f32.mrf.mxu0
        %1053 = vmatprep.mubr.f32.mxu0 0.0
        %1054 = vmatmul.mubr.f32.gmra.mxu0 %v912
        %v1055 = vpop.f32.mrf.mxu0
        %v1056 = vadd.f32 0.0, %v1055
        %v1057 = vpop.f32.mrf.mxu0
        %1058 = vdwg.mxu0
        %v1059 = vtanh.pop %v981
        %v1060 = vtanh.pop %v986
        %v1061 = vtanh.pop %v991
        %v1062 = vtanh.pop %v996
        %v1063 = vtanh.pop %v1001
        %v1064 = vtanh.pop %v1006
        %v1065 = vtanh.pop %v1011
        %v1066 = vtanh.pop %v1016
        %v1067 = vtanh.pop %v1021
        %v1068 = vtanh.pop %v1026
        %v1069 = vtanh.pop %v1031
        %v1070 = vtanh.pop %v1036
        %v1071 = vtanh.pop %v1041
        %v1072 = vtanh.pop %v1046
        %v1073 = vtanh.pop %v1051
        %v1074 = vtanh.pop %v1056
        %s1075 = scalar_lea.vmem %s2, 128
        %v1076 = vld [vmem:[%s1075] sm:$0xff]
        %v1077 = vld [vmem:[%s1075 + $0x8] sm:$0xff]
        %v1078 = vld [vmem:[%s1075 + $0x10] sm:$0xff]
        %v1079 = vld [vmem:[%s1075 + $0x18] sm:$0xff]
        %v1080 = vld [vmem:[%s1075 + $0x20] sm:$0xff]
        %v1081 = vld [vmem:[%s1075 + $0x28] sm:$0xff]
        %v1082 = vld [vmem:[%s1075 + $0x30] sm:$0xff]
        %v1083 = vld [vmem:[%s1075 + $0x38] sm:$0xff]
        %v1084 = vld [vmem:[%s1075 + $0x40] sm:$0xff]
        %v1085 = vld [vmem:[%s1075 + $0x48] sm:$0xff]
        %v1086 = vld [vmem:[%s1075 + $0x50] sm:$0xff]
        %v1087 = vld [vmem:[%s1075 + $0x58] sm:$0xff]
        %v1088 = vld [vmem:[%s1075 + $0x60] sm:$0xff]
        %v1089 = vld [vmem:[%s1075 + $0x68] sm:$0xff]
        %v1090 = vld [vmem:[%s1075 + $0x70] sm:$0xff]
        %v1091 = vld [vmem:[%s1075 + $0x78] sm:$0xff]
        %1092 = vmatprep.subr.mxu0 0.0
        %1093 = vmatpush1.msra.mxu0 %v1091
        %1094 = vmatprep.subr.mxu0 0.0
        %1095 = vmatpush1.msra.mxu0 %v1090
        %1096 = vmatprep.subr.mxu0 0.0
        %1097 = vmatpush1.msra.mxu0 %v1089
        %1098 = vmatprep.subr.mxu0 0.0
        %1099 = vmatpush1.msra.mxu0 %v1088
        %1100 = vmatprep.subr.mxu0 0.0
        %1101 = vmatpush1.msra.mxu0 %v1087
        %1102 = vmatprep.subr.mxu0 0.0
        %1103 = vmatpush1.msra.mxu0 %v1086
        %1104 = vmatprep.subr.mxu0 0.0
        %1105 = vmatpush1.msra.mxu0 %v1085
        %1106 = vmatprep.subr.mxu0 0.0
        %1107 = vmatpush1.msra.mxu0 %v1084
        %1108 = vmatprep.subr.mxu0 0.0
        %1109 = vmatpush1.msra.mxu0 %v1083
        %1110 = vmatprep.subr.mxu0 0.0
        %1111 = vmatpush1.msra.mxu0 %v1082
        %1112 = vmatprep.subr.mxu0 0.0
        %1113 = vmatpush1.msra.mxu0 %v1081
        %1114 = vmatprep.subr.mxu0 0.0
        %1115 = vmatpush1.msra.mxu0 %v1080
        %1116 = vmatprep.subr.mxu0 0.0
        %1117 = vmatpush1.msra.mxu0 %v1079
        %1118 = vmatprep.subr.mxu0 0.0
        %1119 = vmatpush1.msra.mxu0 %v1078
        %1120 = vmatprep.subr.mxu0 0.0
        %1121 = vmatpush1.msra.mxu0 %v1077
        %1122 = vmatprep.subr.mxu0 0.0
        %1123 = vmatpush1.msra.mxu0 %v1076
        %1124 = vmatprep.subr.mxu0 0.0
        %1125 = vmatpush2.msra.mxu0 0.0
        %1126 = vmatprep.subr.mxu0 0.0
        %1127 = vmatpush2.msra.mxu0 0.0
        %1128 = vmatprep.subr.mxu0 0.0
        %1129 = vmatpush2.msra.mxu0 0.0
        %1130 = vmatprep.subr.mxu0 0.0
        %1131 = vmatpush2.msra.mxu0 0.0
        %1132 = vmatprep.subr.mxu0 0.0
        %1133 = vmatpush2.msra.mxu0 0.0
        %1134 = vmatprep.subr.mxu0 0.0
        %1135 = vmatpush2.msra.mxu0 0.0
        %1136 = vmatprep.subr.mxu0 0.0
        %1137 = vmatpush2.msra.mxu0 0.0
        %1138 = vmatprep.subr.mxu0 0.0
        %1139 = vmatpush2.msra.mxu0 0.0
        %1140 = vmatprep.subr.mxu0 0.0
        %1141 = vmatpush2.msra.mxu0 0.0
        %1142 = vmatprep.subr.mxu0 0.0
        %1143 = vmatpush2.msra.mxu0 0.0
        %1144 = vmatprep.subr.mxu0 0.0
        %1145 = vmatpush2.msra.mxu0 0.0
        %1146 = vmatprep.subr.mxu0 0.0
        %1147 = vmatpush2.msra.mxu0 0.0
        %1148 = vmatprep.subr.mxu0 0.0
        %1149 = vmatpush2.msra.mxu0 0.0
        %1150 = vmatprep.subr.mxu0 0.0
        %1151 = vmatpush2.msra.mxu0 0.0
        %1152 = vmatprep.subr.mxu0 0.0
        %1153 = vmatpush2.msra.mxu0 0.0
        %1154 = vmatprep.subr.mxu0 0.0
        %1155 = vmatpush2.msra.mxu0 0.0
        %1156 = vmatprep.mubr.f32.mxu0 0.0
        %1157 = vmatmul.mubr.f32.gmra.mxu0 %v1059
        %v1158 = vpop.f32.mrf.mxu0
        %v1159 = vadd.f32 0.0, %v1158
        %v1160 = vpop.f32.mrf.mxu0
        %1161 = vmatprep.mubr.f32.mxu0 0.0
        %1162 = vmatmul.mubr.f32.gmra.mxu0 %v1060
        %v1163 = vpop.f32.mrf.mxu0
        %v1164 = vadd.f32 0.0, %v1163
        %v1165 = vpop.f32.mrf.mxu0
        %1166 = vmatprep.mubr.f32.mxu0 0.0
        %1167 = vmatmul.mubr.f32.gmra.mxu0 %v1061
        %v1168 = vpop.f32.mrf.mxu0
        %v1169 = vadd.f32 0.0, %v1168
        %v1170 = vpop.f32.mrf.mxu0
        %1171 = vmatprep.mubr.f32.mxu0 0.0
        %1172 = vmatmul.mubr.f32.gmra.mxu0 %v1062
        %v1173 = vpop.f32.mrf.mxu0
        %v1174 = vadd.f32 0.0, %v1173
        %v1175 = vpop.f32.mrf.mxu0
        %1176 = vmatprep.mubr.f32.mxu0 0.0
        %1177 = vmatmul.mubr.f32.gmra.mxu0 %v1063
        %v1178 = vpop.f32.mrf.mxu0
        %v1179 = vadd.f32 0.0, %v1178
        %v1180 = vpop.f32.mrf.mxu0
        %1181 = vmatprep.mubr.f32.mxu0 0.0
        %1182 = vmatmul.mubr.f32.gmra.mxu0 %v1064
        %v1183 = vpop.f32.mrf.mxu0
        %v1184 = vadd.f32 0.0, %v1183
        %v1185 = vpop.f32.mrf.mxu0
        %1186 = vmatprep.mubr.f32.mxu0 0.0
        %1187 = vmatmul.mubr.f32.gmra.mxu0 %v1065
        %v1188 = vpop.f32.mrf.mxu0
        %v1189 = vadd.f32 0.0, %v1188
        %v1190 = vpop.f32.mrf.mxu0
        %1191 = vmatprep.mubr.f32.mxu0 0.0
        %1192 = vmatmul.mubr.f32.gmra.mxu0 %v1066
        %v1193 = vpop.f32.mrf.mxu0
        %v1194 = vadd.f32 0.0, %v1193
        %v1195 = vpop.f32.mrf.mxu0
        %1196 = vmatprep.mubr.f32.mxu0 0.0
        %1197 = vmatmul.mubr.f32.gmra.mxu0 %v1067
        %v1198 = vpop.f32.mrf.mxu0
        %v1199 = vadd.f32 0.0, %v1198
        %v1200 = vpop.f32.mrf.mxu0
        %1201 = vmatprep.mubr.f32.mxu0 0.0
        %1202 = vmatmul.mubr.f32.gmra.mxu0 %v1068
        %v1203 = vpop.f32.mrf.mxu0
        %v1204 = vadd.f32 0.0, %v1203
        %v1205 = vpop.f32.mrf.mxu0
        %1206 = vmatprep.mubr.f32.mxu0 0.0
        %1207 = vmatmul.mubr.f32.gmra.mxu0 %v1069
        %v1208 = vpop.f32.mrf.mxu0
        %v1209 = vadd.f32 0.0, %v1208
        %v1210 = vpop.f32.mrf.mxu0
        %1211 = vmatprep.mubr.f32.mxu0 0.0
        %1212 = vmatmul.mubr.f32.gmra.mxu0 %v1070
        %v1213 = vpop.f32.mrf.mxu0
        %v1214 = vadd.f32 0.0, %v1213
        %v1215 = vpop.f32.mrf.mxu0
        %1216 = vmatprep.mubr.f32.mxu0 0.0
        %1217 = vmatmul.mubr.f32.gmra.mxu0 %v1071
        %v1218 = vpop.f32.mrf.mxu0
        %v1219 = vadd.f32 0.0, %v1218
        %v1220 = vpop.f32.mrf.mxu0
        %1221 = vmatprep.mubr.f32.mxu0 0.0
        %1222 = vmatmul.mubr.f32.gmra.mxu0 %v1072
        %v1223 = vpop.f32.mrf.mxu0
        %v1224 = vadd.f32 0.0, %v1223
        %v1225 = vpop.f32.mrf.mxu0
        %1226 = vmatprep.mubr.f32.mxu0 0.0
        %1227 = vmatmul.mubr.f32.gmra.mxu0 %v1073
        %v1228 = vpop.f32.mrf.mxu0
        %v1229 = vadd.f32 0.0, %v1228
        %v1230 = vpop.f32.mrf.mxu0
        %1231 = vmatprep.mubr.f32.mxu0 0.0
        %1232 = vmatmul.mubr.f32.gmra.mxu0 %v1074
        %v1233 = vpop.f32.mrf.mxu0
        %v1234 = vadd.f32 0.0, %v1233
        %v1235 = vpop.f32.mrf.mxu0
        %1236 = vdwg.mxu0
        %v1237 = vtanh.pop %v1159
        %v1238 = vtanh.pop %v1164
        %v1239 = vtanh.pop %v1169
        %v1240 = vtanh.pop %v1174
        %v1241 = vtanh.pop %v1179
        %v1242 = vtanh.pop %v1184
        %v1243 = vtanh.pop %v1189
        %v1244 = vtanh.pop %v1194
        %v1245 = vtanh.pop %v1199
        %v1246 = vtanh.pop %v1204
        %v1247 = vtanh.pop %v1209
        %v1248 = vtanh.pop %v1214
        %v1249 = vtanh.pop %v1219
        %v1250 = vtanh.pop %v1224
        %v1251 = vtanh.pop %v1229
        %v1252 = vtanh.pop %v1234
        %s1253 = scalar_lea.vmem %s3, 128
        %v1254 = vld [vmem:[%s1253] sm:$0xff]
        %v1255 = vld [vmem:[%s1253 + $0x8] sm:$0xff]
        %v1256 = vld [vmem:[%s1253 + $0x10] sm:$0xff]
        %v1257 = vld [vmem:[%s1253 + $0x18] sm:$0xff]
        %v1258 = vld [vmem:[%s1253 + $0x20] sm:$0xff]
        %v1259 = vld [vmem:[%s1253 + $0x28] sm:$0xff]
        %v1260 = vld [vmem:[%s1253 + $0x30] sm:$0xff]
        %v1261 = vld [vmem:[%s1253 + $0x38] sm:$0xff]
        %v1262 = vld [vmem:[%s1253 + $0x40] sm:$0xff]
        %v1263 = vld [vmem:[%s1253 + $0x48] sm:$0xff]
        %v1264 = vld [vmem:[%s1253 + $0x50] sm:$0xff]
        %v1265 = vld [vmem:[%s1253 + $0x58] sm:$0xff]
        %v1266 = vld [vmem:[%s1253 + $0x60] sm:$0xff]
        %v1267 = vld [vmem:[%s1253 + $0x68] sm:$0xff]
        %v1268 = vld [vmem:[%s1253 + $0x70] sm:$0xff]
        %v1269 = vld [vmem:[%s1253 + $0x78] sm:$0xff]
        %s1270 = scalar_lea.vmem %s4, 1
        %v1271 = vld [vmem:[%s1270] sm:$0x1]
        %v1273 = vlaneseq
        %v1274 = vshrl.u32 %v1273, 7
        %v1275 = vsub.s32 0, %v1274
        %v1276 = vrot.slane %v1271, %v1275
        %1278 = vmatprep.subr.mxu0 0.0
        %1279 = vmatpush1.msra.mxu0 %v1269
        %1280 = vmatprep.subr.mxu0 0.0
        %1281 = vmatpush1.msra.mxu0 %v1268
        %1282 = vmatprep.subr.mxu0 0.0
        %1283 = vmatpush1.msra.mxu0 %v1267
        %1284 = vmatprep.subr.mxu0 0.0
        %1285 = vmatpush1.msra.mxu0 %v1266
        %1286 = vmatprep.subr.mxu0 0.0
        %1287 = vmatpush1.msra.mxu0 %v1265
        %1288 = vmatprep.subr.mxu0 0.0
        %1289 = vmatpush1.msra.mxu0 %v1264
        %1290 = vmatprep.subr.mxu0 0.0
        %1291 = vmatpush1.msra.mxu0 %v1263
        %1292 = vmatprep.subr.mxu0 0.0
        %1293 = vmatpush1.msra.mxu0 %v1262
        %1294 = vmatprep.subr.mxu0 0.0
        %1295 = vmatpush1.msra.mxu0 %v1261
        %1296 = vmatprep.subr.mxu0 0.0
        %1297 = vmatpush1.msra.mxu0 %v1260
        %1298 = vmatprep.subr.mxu0 0.0
        %1299 = vmatpush1.msra.mxu0 %v1259
        %1300 = vmatprep.subr.mxu0 0.0
        %1301 = vmatpush1.msra.mxu0 %v1258
        %1302 = vmatprep.subr.mxu0 0.0
        %1303 = vmatpush1.msra.mxu0 %v1257
        %1304 = vmatprep.subr.mxu0 0.0
        %1305 = vmatpush1.msra.mxu0 %v1256
        %1306 = vmatprep.subr.mxu0 0.0
        %1307 = vmatpush1.msra.mxu0 %v1255
        %1308 = vmatprep.subr.mxu0 0.0
        %1309 = vmatpush1.msra.mxu0 %v1254
        %1310 = vmatprep.subr.mxu0 0.0
        %1311 = vmatpush2.msra.mxu0 0.0
        %1312 = vmatprep.subr.mxu0 0.0
        %1313 = vmatpush2.msra.mxu0 0.0
        %1314 = vmatprep.subr.mxu0 0.0
        %1315 = vmatpush2.msra.mxu0 0.0
        %1316 = vmatprep.subr.mxu0 0.0
        %1317 = vmatpush2.msra.mxu0 0.0
        %1318 = vmatprep.subr.mxu0 0.0
        %1319 = vmatpush2.msra.mxu0 0.0
        %1320 = vmatprep.subr.mxu0 0.0
        %1321 = vmatpush2.msra.mxu0 0.0
        %1322 = vmatprep.subr.mxu0 0.0
        %1323 = vmatpush2.msra.mxu0 0.0
        %1324 = vmatprep.subr.mxu0 0.0
        %1325 = vmatpush2.msra.mxu0 0.0
        %1326 = vmatprep.subr.mxu0 0.0
        %1327 = vmatpush2.msra.mxu0 0.0
        %1328 = vmatprep.subr.mxu0 0.0
        %1329 = vmatpush2.msra.mxu0 0.0
        %1330 = vmatprep.subr.mxu0 0.0
        %1331 = vmatpush2.msra.mxu0 0.0
        %1332 = vmatprep.subr.mxu0 0.0
        %1333 = vmatpush2.msra.mxu0 0.0
        %1334 = vmatprep.subr.mxu0 0.0
        %1335 = vmatpush2.msra.mxu0 0.0
        %1336 = vmatprep.subr.mxu0 0.0
        %1337 = vmatpush2.msra.mxu0 0.0
        %1338 = vmatprep.subr.mxu0 0.0
        %1339 = vmatpush2.msra.mxu0 0.0
        %1340 = vmatprep.subr.mxu0 0.0
        %1341 = vmatpush2.msra.mxu0 0.0
        %1342 = vmatprep.mubr.f32.mxu0 0.0
        %1343 = vmatmul.mubr.f32.gmra.mxu0 %v1237
        %v1344 = vpop.f32.mrf.mxu0
        %v1345 = vadd.f32 %v1276, %v1344
        %v1346 = vpop.f32.mrf.mxu0
        %1347 = vmatprep.mubr.f32.mxu0 0.0
        %1348 = vmatmul.mubr.f32.gmra.mxu0 %v1238
        %v1349 = vpop.f32.mrf.mxu0
        %v1350 = vadd.f32 %v1276, %v1349
        %v1351 = vpop.f32.mrf.mxu0
        %1352 = vmatprep.mubr.f32.mxu0 0.0
        %1353 = vmatmul.mubr.f32.gmra.mxu0 %v1239
        %v1354 = vpop.f32.mrf.mxu0
        %v1355 = vadd.f32 %v1276, %v1354
        %v1356 = vpop.f32.mrf.mxu0
        %1357 = vmatprep.mubr.f32.mxu0 0.0
        %1358 = vmatmul.mubr.f32.gmra.mxu0 %v1240
        %v1359 = vpop.f32.mrf.mxu0
        %v1360 = vadd.f32 %v1276, %v1359
        %v1361 = vpop.f32.mrf.mxu0
        %1362 = vmatprep.mubr.f32.mxu0 0.0
        %1363 = vmatmul.mubr.f32.gmra.mxu0 %v1241
        %v1364 = vpop.f32.mrf.mxu0
        %v1365 = vadd.f32 %v1276, %v1364
        %v1366 = vpop.f32.mrf.mxu0
        %1367 = vmatprep.mubr.f32.mxu0 0.0
        %1368 = vmatmul.mubr.f32.gmra.mxu0 %v1242
        %v1369 = vpop.f32.mrf.mxu0
        %v1370 = vadd.f32 %v1276, %v1369
        %v1371 = vpop.f32.mrf.mxu0
        %1372 = vmatprep.mubr.f32.mxu0 0.0
        %1373 = vmatmul.mubr.f32.gmra.mxu0 %v1243
        %v1374 = vpop.f32.mrf.mxu0
        %v1375 = vadd.f32 %v1276, %v1374
        %v1376 = vpop.f32.mrf.mxu0
        %1377 = vmatprep.mubr.f32.mxu0 0.0
        %1378 = vmatmul.mubr.f32.gmra.mxu0 %v1244
        %v1379 = vpop.f32.mrf.mxu0
        %v1380 = vadd.f32 %v1276, %v1379
        %v1381 = vpop.f32.mrf.mxu0
        %1382 = vmatprep.mubr.f32.mxu0 0.0
        %1383 = vmatmul.mubr.f32.gmra.mxu0 %v1245
        %v1384 = vpop.f32.mrf.mxu0
        %v1385 = vadd.f32 %v1276, %v1384
        %v1386 = vpop.f32.mrf.mxu0
        %1387 = vmatprep.mubr.f32.mxu0 0.0
        %1388 = vmatmul.mubr.f32.gmra.mxu0 %v1246
        %v1389 = vpop.f32.mrf.mxu0
        %v1390 = vadd.f32 %v1276, %v1389
        %v1391 = vpop.f32.mrf.mxu0
        %1392 = vmatprep.mubr.f32.mxu0 0.0
        %1393 = vmatmul.mubr.f32.gmra.mxu0 %v1247
        %v1394 = vpop.f32.mrf.mxu0
        %v1395 = vadd.f32 %v1276, %v1394
        %v1396 = vpop.f32.mrf.mxu0
        %1397 = vmatprep.mubr.f32.mxu0 0.0
        %1398 = vmatmul.mubr.f32.gmra.mxu0 %v1248
        %v1399 = vpop.f32.mrf.mxu0
        %v1400 = vadd.f32 %v1276, %v1399
        %v1401 = vpop.f32.mrf.mxu0
        %1402 = vmatprep.mubr.f32.mxu0 0.0
        %1403 = vmatmul.mubr.f32.gmra.mxu0 %v1249
        %v1404 = vpop.f32.mrf.mxu0
        %v1405 = vadd.f32 %v1276, %v1404
        %v1406 = vpop.f32.mrf.mxu0
        %1407 = vmatprep.mubr.f32.mxu0 0.0
        %1408 = vmatmul.mubr.f32.gmra.mxu0 %v1250
        %v1409 = vpop.f32.mrf.mxu0
        %v1410 = vadd.f32 %v1276, %v1409
        %v1411 = vpop.f32.mrf.mxu0
        %1412 = vmatprep.mubr.f32.mxu0 0.0
        %1413 = vmatmul.mubr.f32.gmra.mxu0 %v1251
        %v1414 = vpop.f32.mrf.mxu0
        %v1415 = vadd.f32 %v1276, %v1414
        %v1416 = vpop.f32.mrf.mxu0
        %1417 = vmatprep.mubr.f32.mxu0 0.0
        %1418 = vmatmul.mubr.f32.gmra.mxu0 %v1252
        %v1419 = vpop.f32.mrf.mxu0
        %v1420 = vadd.f32 %v1276, %v1419
        %v1421 = vpop.f32.mrf.mxu0
        %1422 = vdwg.mxu0
        %v1423 = vmul.f32 %v246, %v1345
        %v1424 = vmul.f32 %v247, %v1350
        %v1425 = vmul.f32 %v248, %v1355
        %v1426 = vmul.f32 %v249, %v1360
        %v1427 = vmul.f32 %v250, %v1365
        %v1428 = vmul.f32 %v251, %v1370
        %v1429 = vmul.f32 %v252, %v1375
        %v1430 = vmul.f32 %v253, %v1380
        %v1431 = vmul.f32 %v254, %v1385
        %v1432 = vmul.f32 %v255, %v1390
        %v1433 = vmul.f32 %v256, %v1395
        %v1434 = vmul.f32 %v257, %v1400
        %v1435 = vmul.f32 %v258, %v1405
        %v1436 = vmul.f32 %v259, %v1410
        %v1437 = vmul.f32 %v260, %v1415
        %v1438 = vmul.f32 %v261, %v1420
        %v1439 = vadd.f32 %v1423, %v841
        %v1440 = vadd.f32 %v1424, %v842
        %v1441 = vadd.f32 %v1425, %v843
        %v1442 = vadd.f32 %v1426, %v844
        %v1443 = vadd.f32 %v1427, %v845
        %v1444 = vadd.f32 %v1428, %v846
        %v1445 = vadd.f32 %v1429, %v847
        %v1446 = vadd.f32 %v1430, %v848
        %v1447 = vadd.f32 %v1431, %v849
        %v1448 = vadd.f32 %v1432, %v850
        %v1449 = vadd.f32 %v1433, %v851
        %v1450 = vadd.f32 %v1434, %v852
        %v1451 = vadd.f32 %v1435, %v853
        %v1452 = vadd.f32 %v1436, %v854
        %v1453 = vadd.f32 %v1437, %v855
        %v1454 = vadd.f32 %v1438, %v856
        %1455 = vst.msk [vmem:[%s226] sm:$0xff] %vm270, %v1439
        %1456 = vst.msk [vmem:[%s226 + $0x8] sm:$0xff] %vm270, %v1440
        %1457 = vst.msk [vmem:[%s226 + $0x10] sm:$0xff] %vm270, %v1441
        %1458 = vst.msk [vmem:[%s226 + $0x18] sm:$0xff] %vm270, %v1442
        %1459 = vst.msk [vmem:[%s226 + $0x20] sm:$0xff] %vm270, %v1443
        %1460 = vst.msk [vmem:[%s226 + $0x28] sm:$0xff] %vm270, %v1444
        %1461 = vst.msk [vmem:[%s226 + $0x30] sm:$0xff] %vm270, %v1445
        %1462 = vst.msk [vmem:[%s226 + $0x38] sm:$0xff] %vm270, %v1446
        %1463 = vst.msk [vmem:[%s226 + $0x40] sm:$0xff] %vm270, %v1447
        %1464 = vst.msk [vmem:[%s226 + $0x48] sm:$0xff] %vm270, %v1448
        %1465 = vst.msk [vmem:[%s226 + $0x50] sm:$0xff] %vm270, %v1449
        %1466 = vst.msk [vmem:[%s226 + $0x58] sm:$0xff] %vm270, %v1450
        %1467 = vst.msk [vmem:[%s226 + $0x60] sm:$0xff] %vm270, %v1451
        %1468 = vst.msk [vmem:[%s226 + $0x68] sm:$0xff] %vm270, %v1452
        %1469 = vst.msk [vmem:[%s226 + $0x70] sm:$0xff] %vm270, %v1453
        %1470 = vst.msk [vmem:[%s226 + $0x78] sm:$0xff] %vm270, %v1454
        %s1471 = sand.u32 %s134, 1
        %s1472 = sand.u32 %s134, 1
        %s1473 = smul.addr %s1472, 128
        %s1474 = scalar_lea.vmem [#allocation2], %s1473
        // Predicated region
        $region41: #{tpu_custom_call.1} parent=39 // pred_check
          %p1475 = pneg %p144
        $region42: #{tpu_custom_call.1} parent=39 // pred_check_branch
          %1477 = sbr.rel (%p1475) target = $region44
        $region43: #{tpu_custom_call.1} parent=39 // pred_region
          %s1478 = smul.u32 16, %s16
          %s1479 = ssub.s32 25, %s1478
          %p1480 = scmp.lt.s32.totalorder %s1479, 16
          %s1481 = scalar_select %p1480, %s1479, 16
          %s1482 = smul.u32 128, %s1481
          %p1483 = scmp.ne.s32.totalorder 0, %s1482
          %s1484 = smul.addr %s1478, 8
          %s1485 = scalar_lea.vmem %s5, %s1484
          // Predicated region
          $region45: #{tpu_custom_call.1} parent=43 // pred_check
            %p1486 = pneg %p1483
          $region46: #{tpu_custom_call.1} parent=43 // pred_check_branch
            %1488 = sbr.rel (%p1486) target = $region48
          $region47: #{tpu_custom_call.1} parent=43 // pred_region
            // Predicated region
            $region49: #{tpu_custom_call.1} parent=47 // pred_check
              _
            $region50: #{tpu_custom_call.1} parent=47 // pred_check_branch
              %1490 = sbr.rel (0) target = $region52
            $region51: #{tpu_custom_call.1} parent=47 // pred_region
              // Predicated region
              $region71: #{tpu_custom_call.1} parent=51 // pred_check
                _
              $region72: #{tpu_custom_call.1} parent=51 // pred_check_branch
                %1570 = sbr.rel (0) target = $region74
              $region73: #{tpu_custom_call.1} parent=51 // pred_region
                %s1571 = sshrl.u32 %s1481, 4
                // While loop
                $region75: #{tpu_custom_call.1} parent=73 // loop_pre_header
                  _
                $region76: #{tpu_custom_call.1} parent=73 // loop_header
                  %s1573 = sphi 0, %s1575
                  %p1574 = scmp.ge.s32.totalorder %s1573, %s1571
                  %s1578 = sphi 0, %s1615
                  %s1579 = sphi %s1474, %s1618
                  %s1580 = sphi %s1485, %s1619
                $region77: #{tpu_custom_call.1} parent=73 // loop_header_branch
                  %1577 = sbr.rel (%p1574) target = $region81
                $region78: #{tpu_custom_call.1} parent=73 // loop_body
                  %v1581 = vld [vmem:[%s1579] sm:$0xff]
                  %1582 = vst [vmem:[%s1580] sm:$0xff] %v1581
                  %v1583 = vld [vmem:[%s1579 + $0x8] sm:$0xff]
                  %1584 = vst [vmem:[%s1580 + $0x8] sm:$0xff] %v1583
                  %v1585 = vld [vmem:[%s1579 + $0x10] sm:$0xff]
                  %1586 = vst [vmem:[%s1580 + $0x10] sm:$0xff] %v1585
                  %v1587 = vld [vmem:[%s1579 + $0x18] sm:$0xff]
                  %1588 = vst [vmem:[%s1580 + $0x18] sm:$0xff] %v1587
                  %v1589 = vld [vmem:[%s1579 + $0x20] sm:$0xff]
                  %1590 = vst [vmem:[%s1580 + $0x20] sm:$0xff] %v1589
                  %v1591 = vld [vmem:[%s1579 + $0x28] sm:$0xff]
                  %1592 = vst [vmem:[%s1580 + $0x28] sm:$0xff] %v1591
                  %v1593 = vld [vmem:[%s1579 + $0x30] sm:$0xff]
                  %1594 = vst [vmem:[%s1580 + $0x30] sm:$0xff] %v1593
                  %v1595 = vld [vmem:[%s1579 + $0x38] sm:$0xff]
                  %1596 = vst [vmem:[%s1580 + $0x38] sm:$0xff] %v1595
                  %v1597 = vld [vmem:[%s1579 + $0x40] sm:$0xff]
                  %1598 = vst [vmem:[%s1580 + $0x40] sm:$0xff] %v1597
                  %v1599 = vld [vmem:[%s1579 + $0x48] sm:$0xff]
                  %1600 = vst [vmem:[%s1580 + $0x48] sm:$0xff] %v1599
                  %v1601 = vld [vmem:[%s1579 + $0x50] sm:$0xff]
                  %1602 = vst [vmem:[%s1580 + $0x50] sm:$0xff] %v1601
                  %v1603 = vld [vmem:[%s1579 + $0x58] sm:$0xff]
                  %1604 = vst [vmem:[%s1580 + $0x58] sm:$0xff] %v1603
                  %v1605 = vld [vmem:[%s1579 + $0x60] sm:$0xff]
                  %1606 = vst [vmem:[%s1580 + $0x60] sm:$0xff] %v1605
                  %v1607 = vld [vmem:[%s1579 + $0x68] sm:$0xff]
                  %1608 = vst [vmem:[%s1580 + $0x68] sm:$0xff] %v1607
                  %v1609 = vld [vmem:[%s1579 + $0x70] sm:$0xff]
                  %1610 = vst [vmem:[%s1580 + $0x70] sm:$0xff] %v1609
                  %v1611 = vld [vmem:[%s1579 + $0x78] sm:$0xff]
                  %1612 = vst [vmem:[%s1580 + $0x78] sm:$0xff] %v1611
                  %s1613 = sadd.s32 1, %s1578
                  %p1614 = scmp.ge.s32.totalorder %s1613, %s1571
                  %s1615 = scalar_select %p1614, 0, %s1613
                  %s1616 = smul.u32 %s1615, 128
                  %s1617 = smul.u32 %s1615, 128
                  %s1618 = scalar_lea.vmem %s1474, %s1616 [#allocation2]
                  %s1619 = scalar_lea.vmem %s1485, %s1617
                $region79: #{tpu_custom_call.1} parent=73 // loop_footer
                  %s1575 = sadd.s32 %s1573, 1
                $region80: #{tpu_custom_call.1} parent=73 // loop_footer_branch
                  %1572 = sbr.rel target = $region76
                $region81: #{tpu_custom_call.1} parent=73 // loop_exit
                  _
                %s1620 = sshrl.u32 %s1481, 4
                %s1621 = sand.u32 %s1481, 15
                %s1622 = smul.u32 %s1620, 16
                %s1623 = smul.u32 8, %s1622
                %s1624 = scalar_lea.vmem %s1474, %s1623 [#allocation2]
                %s1625 = smul.u32 8, %s1622
                %s1626 = scalar_lea.vmem %s1485, %s1625
                // While loop
                $region82: #{tpu_custom_call.1} parent=73 // loop_pre_header
                  _
                $region83: #{tpu_custom_call.1} parent=73 // loop_header
                  %s1628 = sphi 0, %s1630
                  %p1629 = scmp.ge.s32.totalorder %s1628, %s1621
                  %s1633 = sphi 0, %s1640
                  %s1634 = sphi %s1624, %s1643
                  %s1635 = sphi %s1626, %s1644
                $region84: #{tpu_custom_call.1} parent=73 // loop_header_branch
                  %1632 = sbr.rel (%p1629) target = $region88
                $region85: #{tpu_custom_call.1} parent=73 // loop_body
                  %v1636 = vld [vmem:[%s1634] sm:$0xff]
                  %1637 = vst [vmem:[%s1635] sm:$0xff] %v1636
                  %s1638 = sadd.s32 1, %s1633
                  %p1639 = scmp.ge.s32.totalorder %s1638, %s1621
                  %s1640 = scalar_select %p1639, 0, %s1638
                  %s1641 = smul.u32 %s1640, 8
                  %s1642 = smul.u32 %s1640, 8
                  %s1643 = scalar_lea.vmem %s1624, %s1641 [#allocation2]
                  %s1644 = scalar_lea.vmem %s1626, %s1642
                $region86: #{tpu_custom_call.1} parent=73 // loop_footer
                  %s1630 = sadd.s32 %s1628, 1
                $region87: #{tpu_custom_call.1} parent=73 // loop_footer_branch
                  %1627 = sbr.rel target = $region83
                $region88: #{tpu_custom_call.1} parent=73 // loop_exit
                  _
              $region74: #{tpu_custom_call.1} parent=51 // pred_fallthru
                _
              // Predicated region
              $region89: #{tpu_custom_call.1} parent=51 // pred_check
                _
              $region90: #{tpu_custom_call.1} parent=51 // pred_check_branch
                %1646 = sbr.rel target = $region92
              $region91: #{tpu_custom_call.1} parent=51 // pred_region
                _
              $region92: #{tpu_custom_call.1} parent=51 // pred_fallthru
                _
            $region52: #{tpu_custom_call.1} parent=47 // pred_fallthru
              _
            // Predicated region
            $region53: #{tpu_custom_call.1} parent=47 // pred_check
              _
            $region54: #{tpu_custom_call.1} parent=47 // pred_check_branch
              %1492 = sbr.rel target = $region56
            $region55: #{tpu_custom_call.1} parent=47 // pred_region
              %s1494 = ssub.s32 256, 1
              %s1495 = sshrl.u32 %s1481, 4
              // While loop
              $region57: #{tpu_custom_call.1} parent=55 // loop_pre_header
                _
              $region58: #{tpu_custom_call.1} parent=55 // loop_header
                %s1497 = sphi 0, %s1499
                %p1498 = scmp.ge.s32.totalorder %s1497, %s1495
                %s1502 = sphi 0, %s1539
                %s1503 = sphi %s1474, %s1542
                %s1504 = sphi %s1485, %s1543
              $region59: #{tpu_custom_call.1} parent=55 // loop_header_branch
                %1501 = sbr.rel (%p1498) target = $region63
              $region60: #{tpu_custom_call.1} parent=55 // loop_body
                %v1505 = vld [vmem:[%s1503] sm:%s1494]
                %1506 = vst [vmem:[%s1504] sm:%s1494] %v1505
                %v1507 = vld [vmem:[%s1503 + $0x8] sm:%s1494]
                %1508 = vst [vmem:[%s1504 + $0x8] sm:%s1494] %v1507
                %v1509 = vld [vmem:[%s1503 + $0x10] sm:%s1494]
                %1510 = vst [vmem:[%s1504 + $0x10] sm:%s1494] %v1509
                %v1511 = vld [vmem:[%s1503 + $0x18] sm:%s1494]
                %1512 = vst [vmem:[%s1504 + $0x18] sm:%s1494] %v1511
                %v1513 = vld [vmem:[%s1503 + $0x20] sm:%s1494]
                %1514 = vst [vmem:[%s1504 + $0x20] sm:%s1494] %v1513
                %v1515 = vld [vmem:[%s1503 + $0x28] sm:%s1494]
                %1516 = vst [vmem:[%s1504 + $0x28] sm:%s1494] %v1515
                %v1517 = vld [vmem:[%s1503 + $0x30] sm:%s1494]
                %1518 = vst [vmem:[%s1504 + $0x30] sm:%s1494] %v1517
                %v1519 = vld [vmem:[%s1503 + $0x38] sm:%s1494]
                %1520 = vst [vmem:[%s1504 + $0x38] sm:%s1494] %v1519
                %v1521 = vld [vmem:[%s1503 + $0x40] sm:%s1494]
                %1522 = vst [vmem:[%s1504 + $0x40] sm:%s1494] %v1521
                %v1523 = vld [vmem:[%s1503 + $0x48] sm:%s1494]
                %1524 = vst [vmem:[%s1504 + $0x48] sm:%s1494] %v1523
                %v1525 = vld [vmem:[%s1503 + $0x50] sm:%s1494]
                %1526 = vst [vmem:[%s1504 + $0x50] sm:%s1494] %v1525
                %v1527 = vld [vmem:[%s1503 + $0x58] sm:%s1494]
                %1528 = vst [vmem:[%s1504 + $0x58] sm:%s1494] %v1527
                %v1529 = vld [vmem:[%s1503 + $0x60] sm:%s1494]
                %1530 = vst [vmem:[%s1504 + $0x60] sm:%s1494] %v1529
                %v1531 = vld [vmem:[%s1503 + $0x68] sm:%s1494]
                %1532 = vst [vmem:[%s1504 + $0x68] sm:%s1494] %v1531
                %v1533 = vld [vmem:[%s1503 + $0x70] sm:%s1494]
                %1534 = vst [vmem:[%s1504 + $0x70] sm:%s1494] %v1533
                %v1535 = vld [vmem:[%s1503 + $0x78] sm:%s1494]
                %1536 = vst [vmem:[%s1504 + $0x78] sm:%s1494] %v1535
                %s1537 = sadd.s32 1, %s1502
                %p1538 = scmp.ge.s32.totalorder %s1537, %s1495
                %s1539 = scalar_select %p1538, 0, %s1537
                %s1540 = smul.u32 %s1539, 128
                %s1541 = smul.u32 %s1539, 128
                %s1542 = scalar_lea.vmem %s1474, %s1540 [#allocation2]
                %s1543 = scalar_lea.vmem %s1485, %s1541
              $region61: #{tpu_custom_call.1} parent=55 // loop_footer
                %s1499 = sadd.s32 %s1497, 1
              $region62: #{tpu_custom_call.1} parent=55 // loop_footer_branch
                %1496 = sbr.rel target = $region58
              $region63: #{tpu_custom_call.1} parent=55 // loop_exit
                _
              %s1544 = sshrl.u32 %s1481, 4
              %s1545 = sand.u32 %s1481, 15
              %s1546 = smul.u32 %s1544, 16
              %s1547 = smul.u32 8, %s1546
              %s1548 = scalar_lea.vmem %s1474, %s1547 [#allocation2]
              %s1549 = smul.u32 8, %s1546
              %s1550 = scalar_lea.vmem %s1485, %s1549
              // While loop
              $region64: #{tpu_custom_call.1} parent=55 // loop_pre_header
                _
              $region65: #{tpu_custom_call.1} parent=55 // loop_header
                %s1552 = sphi 0, %s1554
                %p1553 = scmp.ge.s32.totalorder %s1552, %s1545
                %s1557 = sphi 0, %s1564
                %s1558 = sphi %s1548, %s1567
                %s1559 = sphi %s1550, %s1568
              $region66: #{tpu_custom_call.1} parent=55 // loop_header_branch
                %1556 = sbr.rel (%p1553) target = $region70
              $region67: #{tpu_custom_call.1} parent=55 // loop_body
                %v1560 = vld [vmem:[%s1558] sm:%s1494]
                %1561 = vst [vmem:[%s1559] sm:%s1494] %v1560
                %s1562 = sadd.s32 1, %s1557
                %p1563 = scmp.ge.s32.totalorder %s1562, %s1545
                %s1564 = scalar_select %p1563, 0, %s1562
                %s1565 = smul.u32 %s1564, 8
                %s1566 = smul.u32 %s1564, 8
                %s1567 = scalar_lea.vmem %s1548, %s1565 [#allocation2]
                %s1568 = scalar_lea.vmem %s1550, %s1566
              $region68: #{tpu_custom_call.1} parent=55 // loop_footer
                %s1554 = sadd.s32 %s1552, 1
              $region69: #{tpu_custom_call.1} parent=55 // loop_footer_branch
                %1551 = sbr.rel target = $region65
              $region70: #{tpu_custom_call.1} parent=55 // loop_exit
                _
            $region56: #{tpu_custom_call.1} parent=47 // pred_fallthru
              _
          $region48: #{tpu_custom_call.1} parent=43 // pred_fallthru
            _
          %1647 = vnop
        $region44: #{tpu_custom_call.1} parent=39 // pred_fallthru
          _
      $region40: #{tpu_custom_call.1} parent=5 // pred_fallthru
        _
      %p1648 = scmp.le.s32.totalorder 2, %s11
      // Predicated region
      $region93: #{tpu_custom_call.1} parent=5 // pred_check
        %p1649 = pneg %p1648
      $region94: #{tpu_custom_call.1} parent=5 // pred_check_branch
        %1651 = sbr.rel (%p1649) target = $region96
      $region95: #{tpu_custom_call.1} parent=5 // pred_region
        %s1652 = ssub.s32 %s11, 2
        // Predicated region
        $region97: #{tpu_custom_call.1} parent=95 // pred_check
          %p1653 = pneg %p150
        $region98: #{tpu_custom_call.1} parent=95 // pred_check_branch
          %1655 = sbr.rel (%p1653) target = $region100
        $region99: #{tpu_custom_call.1} parent=95 // pred_region
          %s1656 = sand.u32 %s135, 1
          %s1657 = sand.u32 %s135, 1
          %s1658 = smul.addr %s1657, 128
          %s1659 = scalar_lea.vmem [#allocation2], %s1658
        $region100: #{tpu_custom_call.1} parent=95 // pred_fallthru
          _
      $region96: #{tpu_custom_call.1} parent=5 // pred_fallthru
        _
    $region6: #{tpu_custom_call.1} parent=1 // loop_footer
      %s15 = sadd.s32 1, %s11
    $region7: #{tpu_custom_call.1} parent=1 // loop_footer_branch
      %10 = sbr.rel target = $region3
    $region8: #{tpu_custom_call.1} parent=1 // loop_exit
      _

// kernel: tpu_custom_call.1
$region0: #{tpu_custom_call.1}
  #allocation0 [shape = 'u32[]', space=smem, size = 0x4, offset = 0x4, fixed_abs, tag = 'smem constant byte address 0x4 - core index']
  #allocation1 [shape = 'u32[144,128]{1,0:T(1,128)}', space=vmem, size = 0x12000, scoped, tag = 'internal scratch']
  %s0 = inlined_call_operand.vmem [shape: f32[200,64], index: 0, kind: input, shape index: {}]
  %s1 = inlined_call_operand.vmem [shape: f32[2,64,128], index: 1, kind: input, shape index: {}]
  %s2 = inlined_call_operand.vmem [shape: f32[2,128,128], index: 2, kind: input, shape index: {}]
  %s3 = inlined_call_operand.vmem [shape: f32[2,128,64], index: 3, kind: input, shape index: {}]
  %s4 = inlined_call_operand.vmem [shape: f32[2,1,64], index: 4, kind: input, shape index: {}]
  %s5 = inlined_call_operand.vmem [shape: f32[200,64], index: 5, kind: output, shape index: {}]
  %s6 = sld [smem:[#allocation0]]
  $region101: #{tpu_custom_call.1} parent=0
    _
  %s8 = ssub.s32 1, %s6
  %s9 = scalar_select 0, %s8, %s6
  $region1: #{tpu_custom_call.1} parent=0
    #allocation2 [shape = 'u8[131072]{0}', space=vmem, size = 0x20000, scoped, tag = 'output window, operand 0']
    loop: start=0, step=1, limit=4
    $region2: #{tpu_custom_call.1} parent=1 // loop_pre_header
      _
    $region3: #{tpu_custom_call.1} parent=1 // loop_header
      %s11 = sphi 0, %s15
      %p12 = scmp.ge.s32.totalorder %s11, 4
      %s21 = sphi 0, %s23
      %s24 = sphi 0, %s21
      %s25 = sphi 0, %s24
      %s41 = sphi 0, %s25
      %s45 = sphi 0, %s45
      %s47 = sphi 0, %s45
      %s48 = sphi 0, %s47
      %s62 = sphi 0, %s48
      %s66 = sphi 0, %s66
      %s68 = sphi 0, %s66
      %s69 = sphi 0, %s68
      %s83 = sphi 0, %s69
      %s87 = sphi 0, %s87
      %s89 = sphi 0, %s87
      %s90 = sphi 0, %s89
      %s104 = sphi 0, %s90
      %s108 = sphi 0, %s108
      %s110 = sphi 0, %s108
      %s111 = sphi 0, %s110
      %s125 = sphi 0, %s111
      %s131 = sphi 0, %s133
      %s134 = sphi 0, %s131
      %s135 = sphi 0, %s134
      %s151 = sphi 0, %s135
    $region4: #{tpu_custom_call.1} parent=1 // loop_header_branch
      %14 = sbr.rel (%p12) target = $region8
    $region5: #{tpu_custom_call.1} parent=1 // loop_body
      %s16 = ssub.s32 %s11, 1
      %s17 = ssub.s32 %s11, 2
      %s18 = sadd.s32 %s11, 1
      %s19 = ssub.s32 %s11, %s18
      %p20 = scmp.eq.s32.totalorder %s19, 0
      %s22 = sadd.s32 %s21, 1
      %s23 = scalar_select %p20, %s21, %s22
      %p26 = pneg %p20
      %p27 = scmp.eq.s32.totalorder %s11, 1
      %p28 = por %p26, %p27
      %p29 = scmp.ne.s32.totalorder %s21, %s24
      %p30 = scmp.eq.s32.totalorder %s11, 0
      %p31 = por %p29, %p30
      %p32 = scmp.ne.s32.totalorder %s21, %s24
      %p33 = scmp.eq.s32.totalorder %s16, 1
      %p34 = por %p32, %p33
      %p35 = scmp.ne.s32.totalorder %s24, %s25
      %p36 = scmp.eq.s32.totalorder %s16, 0
      %p37 = por %p35, %p36
      %p38 = scmp.ne.s32.totalorder %s24, %s25
      %p39 = scmp.eq.s32.totalorder %s17, 1
      %p40 = por %p38, %p39
      %p42 = scmp.ne.s32.totalorder %s25, %s41
      %p43 = scmp.eq.s32.totalorder %s17, 0
      %p44 = por %p42, %p43
      %s46 = sadd.s32 %s45, 1
      %p49 = scmp.eq.s32.totalorder %s11, 1
      %p50 = scmp.ne.s32.totalorder %s45, %s47
      %p51 = scmp.eq.s32.totalorder %s11, 0
      %p52 = por %p50, %p51
      %p53 = scmp.ne.s32.totalorder %s45, %s47
      %p54 = scmp.eq.s32.totalorder %s16, 1
      %p55 = por %p53, %p54
      %p56 = scmp.ne.s32.totalorder %s47, %s48
      %p57 = scmp.eq.s32.totalorder %s16, 0
      %p58 = por %p56, %p57
      %p59 = scmp.ne.s32.totalorder %s47, %s48
      %p60 = scmp.eq.s32.totalorder %s17, 1
      %p61 = por %p59, %p60
      %p63 = scmp.ne.s32.totalorder %s48, %s62
      %p64 = scmp.eq.s32.totalorder %s17, 0
      %p65 = por %p63, %p64
      %s67 = sadd.s32 %s66, 1
      %p70 = scmp.eq.s32.totalorder %s11, 1
      %p71 = scmp.ne.s32.totalorder %s66, %s68
      %p72 = scmp.eq.s32.totalorder %s11, 0
      %p73 = por %p71, %p72
      %p74 = scmp.ne.s32.totalorder %s66, %s68
      %p75 = scmp.eq.s32.totalorder %s16, 1
      %p76 = por %p74, %p75
      %p77 = scmp.ne.s32.totalorder %s68, %s69
      %p78 = scmp.eq.s32.totalorder %s16, 0
      %p79 = por %p77, %p78
      %p80 = scmp.ne.s32.totalorder %s68, %s69
      %p81 = scmp.eq.s32.totalorder %s17, 1
      %p82 = por %p80, %p81
      %p84 = scmp.ne.s32.totalorder %s69, %s83
      %p85 = scmp.eq.s32.totalorder %s17, 0
      %p86 = por %p84, %p85
      %s88 = sadd.s32 %s87, 1
      %p91 = scmp.eq.s32.totalorder %s11, 1
      %p92 = scmp.ne.s32.totalorder %s87, %s89
      %p93 = scmp.eq.s32.totalorder %s11, 0
      %p94 = por %p92, %p93
      %p95 = scmp.ne.s32.totalorder %s87, %s89
      %p96 = scmp.eq.s32.totalorder %s16, 1
      %p97 = por %p95, %p96
      %p98 = scmp.ne.s32.totalorder %s89, %s90
      %p99 = scmp.eq.s32.totalorder %s16, 0
      %p100 = por %p98, %p99
      %p101 = scmp.ne.s32.totalorder %s89, %s90
      %p102 = scmp.eq.s32.totalorder %s17, 1
      %p103 = por %p101, %p102
      %p105 = scmp.ne.s32.totalorder %s90, %s104
      %p106 = scmp.eq.s32.totalorder %s17, 0
      %p107 = por %p105, %p106
      %s109 = sadd.s32 %s108, 1
      %p112 = scmp.eq.s32.totalorder %s11, 1
      %p113 = scmp.ne.s32.totalorder %s108, %s110
      %p114 = scmp.eq.s32.totalorder %s11, 0
      %p115 = por %p113, %p114
      %p116 = scmp.ne.s32.totalorder %s108, %s110
      %p117 = scmp.eq.s32.totalorder %s16, 1
      %p118 = por %p116, %p117
      %p119 = scmp.ne.s32.totalorder %s110, %s111
      %p120 = scmp.eq.s32.totalorder %s16, 0
      %p121 = por %p119, %p120
      %p122 = scmp.ne.s32.totalorder %s110, %s111
      %p123 = scmp.eq.s32.totalorder %s17, 1
      %p124 = por %p122, %p123
      %p126 = scmp.ne.s32.totalorder %s111, %s125
      %p127 = scmp.eq.s32.totalorder %s17, 0
      %p128 = por %p126, %p127
      %s129 = ssub.s32 %s11, %s18
      %p130 = scmp.eq.s32.totalorder %s129, 0
      %s132 = sadd.s32 %s131, 1
      %s133 = scalar_select %p130, %s131, %s132
      %p136 = pneg %p130
      %p137 = scmp.eq.s32.totalorder %s11, 1
      %p138 = por %p136, %p137
      %p139 = scmp.ne.s32.totalorder %s131, %s134
      %p140 = scmp.eq.s32.totalorder %s11, 0
      %p141 = por %p139, %p140
      %p142 = scmp.ne.s32.totalorder %s131, %s134
      %p143 = scmp.eq.s32.totalorder %s16, 1
      %p144 = por %p142, %p143
      %p145 = scmp.ne.s32.totalorder %s134, %s135
      %p146 = scmp.eq.s32.totalorder %s16, 0
      %p147 = por %p145, %p146
      %p148 = scmp.ne.s32.totalorder %s134, %s135
      %p149 = scmp.eq.s32.totalorder %s17, 1
      %p150 = por %p148, %p149
      %p152 = scmp.ne.s32.totalorder %s135, %s151
      %p153 = scmp.eq.s32.totalorder %s17, 0
      %p154 = por %p152, %p153
      %p155 = scmp.le.s32.totalorder 1, %s11
      %p156 = scmp.lt.s32.totalorder %s11, 3
      %p157 = pnand %p155, %p156
      %p158 = pneg %p157
      // Predicated region
      $region9: #{tpu_custom_call.1} parent=5 // pred_check
        _
      $region10: #{tpu_custom_call.1} parent=5 // pred_check_branch
        %160 = sbr.rel (%p157) target = $region12
      $region11: #{tpu_custom_call.1} parent=5 // pred_region
        %s161 = ssub.s32 %s11, 1
        // Predicated region
        $region13: #{tpu_custom_call.1} parent=11 // pred_check
          %p162 = pneg %p58
        $region14: #{tpu_custom_call.1} parent=11 // pred_check_branch
          %164 = sbr.rel (%p162) target = $region16
        $region15: #{tpu_custom_call.1} parent=11 // pred_region
          _
        $region16: #{tpu_custom_call.1} parent=11 // pred_fallthru
          _
        // Predicated region
        $region17: #{tpu_custom_call.1} parent=11 // pred_check
          %p165 = pneg %p79
        $region18: #{tpu_custom_call.1} parent=11 // pred_check_branch
          %167 = sbr.rel (%p165) target = $region20
        $region19: #{tpu_custom_call.1} parent=11 // pred_region
          _
        $region20: #{tpu_custom_call.1} parent=11 // pred_fallthru
          _
        // Predicated region
        $region21: #{tpu_custom_call.1} parent=11 // pred_check
          %p168 = pneg %p100
        $region22: #{tpu_custom_call.1} parent=11 // pred_check_branch
          %170 = sbr.rel (%p168) target = $region24
        $region23: #{tpu_custom_call.1} parent=11 // pred_region
          _
        $region24: #{tpu_custom_call.1} parent=11 // pred_fallthru
          _
        // Predicated region
        $region25: #{tpu_custom_call.1} parent=11 // pred_check
          %p171 = pneg %p121
        $region26: #{tpu_custom_call.1} parent=11 // pred_check_branch
          %173 = sbr.rel (%p171) target = $region28
        $region27: #{tpu_custom_call.1} parent=11 // pred_region
          _
        $region28: #{tpu_custom_call.1} parent=11 // pred_fallthru
          _
      $region12: #{tpu_custom_call.1} parent=5 // pred_fallthru
        _
      %p174 = scmp.lt.s32.totalorder %s11, 2
      // Predicated region
      $region29: #{tpu_custom_call.1} parent=5 // pred_check
        %p175 = pneg %p174
      $region30: #{tpu_custom_call.1} parent=5 // pred_check_branch
        %177 = sbr.rel (%p175) target = $region32
      $region31: #{tpu_custom_call.1} parent=5 // pred_region
        // Predicated region
        $region33: #{tpu_custom_call.1} parent=31 // pred_check
          %p178 = pneg %p31
        $region34: #{tpu_custom_call.1} parent=31 // pred_check_branch
          %180 = sbr.rel (%p178) target = $region36
        $region35: #{tpu_custom_call.1} parent=31 // pred_region
          %s181 = smul.u32 16, %s11
          %s182 = ssub.s32 25, %s181
          %p183 = scmp.lt.s32.totalorder %s182, 16
          %s184 = scalar_select %p183, %s182, 16
          %s185 = smul.u32 128, %s184
          %p186 = scmp.lt.s32.totalorder %s181, 24
          %s187 = scalar_select %p186, %s181, 24
          %s188 = smul.addr %s187, 8
          %s189 = scalar_lea.vmem %s0, %s188
          %s190 = smul.u32 16, %s11
          %s191 = ssub.s32 25, %s190
          %p192 = scmp.lt.s32.totalorder %s191, 16
          %s193 = scalar_select %p192, %s191, 16
          %s194 = smul.u32 128, %s193
        $region36: #{tpu_custom_call.1} parent=31 // pred_fallthru
          _
      $region32: #{tpu_custom_call.1} parent=5 // pred_fallthru
        _
      %p195 = scmp.le.s32.totalorder 1, %s11
      %p196 = scmp.lt.s32.totalorder %s11, 3
      %p197 = pnand %p195, %p196
      %p198 = pneg %p197
      // Predicated region
      $region37: #{tpu_custom_call.1} parent=5 // pred_check
        _
      $region38: #{tpu_custom_call.1} parent=5 // pred_check_branch
        %200 = sbr.rel (%p197) target = $region40
      $region39: #{tpu_custom_call.1} parent=5 // pred_region
        %s201 = ssub.s32 %s11, 1
        %s202 = smul.u32 16, %s16
        %s203 = ssub.s32 25, %s202
        %p204 = scmp.lt.s32.totalorder %s203, 16
        %s205 = scalar_select %p204, %s203, 16
        %s206 = smul.u32 128, %s205
        %p207 = scmp.lt.s32.totalorder %s202, 24
        %s208 = scalar_select %p207, %s202, 24
        %s209 = smul.addr %s208, 8
        %s210 = scalar_lea.vmem %s0, %s209
        %p211 = pneg %p37
        %p212 = pneg %p34
        %p213 = pneg %p58
        %p214 = pneg %p55
        %p215 = pneg %p79
        %p216 = pneg %p76
        %p217 = pneg %p100
        %p218 = pneg %p97
        %p219 = pneg %p121
        %p220 = pneg %p118
        %p221 = pneg %p147
        %p222 = pneg %p144
        %s223 = sand.u32 %s134, 1
        %s224 = sand.u32 %s134, 1
        %s225 = smul.addr %s224, 128
        %s226 = scalar_lea.vmem [#allocation2], %s225
        %s227 = smul.u32 16, %s16
        %s228 = ssub.s32 25, %s227
        %p229 = scmp.lt.s32.totalorder %s228, 16
        %s230 = scalar_select %p229, %s228, 16
        %s231 = smul.u32 128, %s230
        %p232 = scmp.lt.s32.totalorder %s227, 24
        %s233 = scalar_select %p232, %s227, 24
        %s234 = smul.addr %s233, 8
        %s235 = scalar_lea.vmem %s0, %s234
        %s236 = smul.u32 16, %s16
        %s237 = ssub.s32 25, %s236
        %p238 = scmp.lt.s32.totalorder %s237, 16
        %s239 = scalar_select %p238, %s237, 16
        %s240 = smul.u32 128, %s239
        %s241 = smul.u32 16, %s16
        %s242 = ssub.s32 25, %s241
        %p243 = scmp.lt.s32.totalorder %s242, 16
        %s244 = scalar_select %p243, %s242, 16
        %s245 = smul.u32 128, %s244
        %v246 = vld [vmem:[%s235] sm:$0xff]
        %v247 = vld [vmem:[%s235 + $0x8] sm:$0xff]
        %v248 = vld [vmem:[%s235 + $0x10] sm:$0xff]
        %v249 = vld [vmem:[%s235 + $0x18] sm:$0xff]
        %v250 = vld [vmem:[%s235 + $0x20] sm:$0xff]
        %v251 = vld [vmem:[%s235 + $0x28] sm:$0xff]
        %v252 = vld [vmem:[%s235 + $0x30] sm:$0xff]
        %v253 = vld [vmem:[%s235 + $0x38] sm:$0xff]
        %v254 = vld [vmem:[%s235 + $0x40] sm:$0xff]
        %v255 = vld [vmem:[%s235 + $0x48] sm:$0xff]
        %v256 = vld [vmem:[%s235 + $0x50] sm:$0xff]
        %v257 = vld [vmem:[%s235 + $0x58] sm:$0xff]
        %v258 = vld [vmem:[%s235 + $0x60] sm:$0xff]
        %v259 = vld [vmem:[%s235 + $0x68] sm:$0xff]
        %v260 = vld [vmem:[%s235 + $0x70] sm:$0xff]
        %v261 = vld [vmem:[%s235 + $0x78] sm:$0xff]
        %v262 = vld [vmem:[%s1] sm:$0xff]
        %v263 = vld [vmem:[%s1 + $0x8] sm:$0xff]
        %v264 = vld [vmem:[%s1 + $0x10] sm:$0xff]
        %v265 = vld [vmem:[%s1 + $0x18] sm:$0xff]
        %v266 = vld [vmem:[%s1 + $0x20] sm:$0xff]
        %v267 = vld [vmem:[%s1 + $0x28] sm:$0xff]
        %v268 = vld [vmem:[%s1 + $0x30] sm:$0xff]
        %v269 = vld [vmem:[%s1 + $0x38] sm:$0xff]
        %vm270 = vcmask 523264
        %v272 = vsel %vm270, %v246, 0
        %v275 = vsel %vm270, %v247, 0
        %v278 = vsel %vm270, %v248, 0
        %v281 = vsel %vm270, %v249, 0
        %v284 = vsel %vm270, %v250, 0
        %v287 = vsel %vm270, %v251, 0
        %v290 = vsel %vm270, %v252, 0
        %v293 = vsel %vm270, %v253, 0
        %v296 = vsel %vm270, %v254, 0
        %v299 = vsel %vm270, %v255, 0
        %v302 = vsel %vm270, %v256, 0
        %v305 = vsel %vm270, %v257, 0
        %v308 = vsel %vm270, %v258, 0
        %v311 = vsel %vm270, %v259, 0
        %v314 = vsel %vm270, %v260, 0
        %v317 = vsel %vm270, %v261, 0
        %319 = vmatprep.subr.mxu0 0.0
        %320 = vmatpush1.msra.mxu0 0.0
        %321 = vmatprep.subr.mxu0 0.0
        %322 = vmatpush1.msra.mxu0 0.0
        %323 = vmatprep.subr.mxu0 0.0
        %324 = vmatpush1.msra.mxu0 0.0
        %325 = vmatprep.subr.mxu0 0.0
        %326 = vmatpush1.msra.mxu0 0.0
        %327 = vmatprep.subr.mxu0 0.0
        %328 = vmatpush1.msra.mxu0 0.0
        %329 = vmatprep.subr.mxu0 0.0
        %330 = vmatpush1.msra.mxu0 0.0
        %331 = vmatprep.subr.mxu0 0.0
        %332 = vmatpush1.msra.mxu0 0.0
        %333 = vmatprep.subr.mxu0 0.0
        %334 = vmatpush1.msra.mxu0 0.0
        %335 = vmatprep.subr.mxu0 0.0
        %336 = vmatpush1.msra.mxu0 %v269
        %337 = vmatprep.subr.mxu0 0.0
        %338 = vmatpush1.msra.mxu0 %v268
        %339 = vmatprep.subr.mxu0 0.0
        %340 = vmatpush1.msra.mxu0 %v267
        %341 = vmatprep.subr.mxu0 0.0
        %342 = vmatpush1.msra.mxu0 %v266
        %343 = vmatprep.subr.mxu0 0.0
        %344 = vmatpush1.msra.mxu0 %v265
        %345 = vmatprep.subr.mxu0 0.0
        %346 = vmatpush1.msra.mxu0 %v264
        %347 = vmatprep.subr.mxu0 0.0
        %348 = vmatpush1.msra.mxu0 %v263
        %349 = vmatprep.subr.mxu0 0.0
        %350 = vmatpush1.msra.mxu0 %v262
        %351 = vmatprep.subr.mxu0 0.0
        %352 = vmatpush2.msra.mxu0 0.0
        %353 = vmatprep.subr.mxu0 0.0
        %354 = vmatpush2.msra.mxu0 0.0
        %355 = vmatprep.subr.mxu0 0.0
        %356 = vmatpush2.msra.mxu0 0.0
        %357 = vmatprep.subr.mxu0 0.0
        %358 = vmatpush2.msra.mxu0 0.0
        %359 = vmatprep.subr.mxu0 0.0
        %360 = vmatpush2.msra.mxu0 0.0
        %361 = vmatprep.subr.mxu0 0.0
        %362 = vmatpush2.msra.mxu0 0.0
        %363 = vmatprep.subr.mxu0 0.0
        %364 = vmatpush2.msra.mxu0 0.0
        %365 = vmatprep.subr.mxu0 0.0
        %366 = vmatpush2.msra.mxu0 0.0
        %367 = vmatprep.subr.mxu0 0.0
        %368 = vmatpush2.msra.mxu0 0.0
        %369 = vmatprep.subr.mxu0 0.0
        %370 = vmatpush2.msra.mxu0 0.0
        %371 = vmatprep.subr.mxu0 0.0
        %372 = vmatpush2.msra.mxu0 0.0
        %373 = vmatprep.subr.mxu0 0.0
        %374 = vmatpush2.msra.mxu0 0.0
        %375 = vmatprep.subr.mxu0 0.0
        %376 = vmatpush2.msra.mxu0 0.0
        %377 = vmatprep.subr.mxu0 0.0
        %378 = vmatpush2.msra.mxu0 0.0
        %379 = vmatprep.subr.mxu0 0.0
        %380 = vmatpush2.msra.mxu0 0.0
        %381 = vmatprep.subr.mxu0 0.0
        %382 = vmatpush2.msra.mxu0 0.0
        %383 = vmatprep.mubr.f32.mxu0 0.0
        %384 = vmatmul.mubr.f32.gmra.mxu0 %v272
        %v385 = vpop.f32.mrf.mxu0
        %v386 = vadd.f32 0.0, %v385
        %v387 = vpop.f32.mrf.mxu0
        %388 = vmatprep.mubr.f32.mxu0 0.0
        %389 = vmatmul.mubr.f32.gmra.mxu0 %v275
        %v390 = vpop.f32.mrf.mxu0
        %v391 = vadd.f32 0.0, %v390
        %v392 = vpop.f32.mrf.mxu0
        %393 = vmatprep.mubr.f32.mxu0 0.0
        %394 = vmatmul.mubr.f32.gmra.mxu0 %v278
        %v395 = vpop.f32.mrf.mxu0
        %v396 = vadd.f32 0.0, %v395
        %v397 = vpop.f32.mrf.mxu0
        %398 = vmatprep.mubr.f32.mxu0 0.0
        %399 = vmatmul.mubr.f32.gmra.mxu0 %v281
        %v400 = vpop.f32.mrf.mxu0
        %v401 = vadd.f32 0.0, %v400
        %v402 = vpop.f32.mrf.mxu0
        %403 = vmatprep.mubr.f32.mxu0 0.0
        %404 = vmatmul.mubr.f32.gmra.mxu0 %v284
        %v405 = vpop.f32.mrf.mxu0
        %v406 = vadd.f32 0.0, %v405
        %v407 = vpop.f32.mrf.mxu0
        %408 = vmatprep.mubr.f32.mxu0 0.0
        %409 = vmatmul.mubr.f32.gmra.mxu0 %v287
        %v410 = vpop.f32.mrf.mxu0
        %v411 = vadd.f32 0.0, %v410
        %v412 = vpop.f32.mrf.mxu0
        %413 = vmatprep.mubr.f32.mxu0 0.0
        %414 = vmatmul.mubr.f32.gmra.mxu0 %v290
        %v415 = vpop.f32.mrf.mxu0
        %v416 = vadd.f32 0.0, %v415
        %v417 = vpop.f32.mrf.mxu0
        %418 = vmatprep.mubr.f32.mxu0 0.0
        %419 = vmatmul.mubr.f32.gmra.mxu0 %v293
        %v420 = vpop.f32.mrf.mxu0
        %v421 = vadd.f32 0.0, %v420
        %v422 = vpop.f32.mrf.mxu0
        %423 = vmatprep.mubr.f32.mxu0 0.0
        %424 = vmatmul.mubr.f32.gmra.mxu0 %v296
        %v425 = vpop.f32.mrf.mxu0
        %v426 = vadd.f32 0.0, %v425
        %v427 = vpop.f32.mrf.mxu0
        %428 = vmatprep.mubr.f32.mxu0 0.0
        %429 = vmatmul.mubr.f32.gmra.mxu0 %v299
        %v430 = vpop.f32.mrf.mxu0
        %v431 = vadd.f32 0.0, %v430
        %v432 = vpop.f32.mrf.mxu0
        %433 = vmatprep.mubr.f32.mxu0 0.0
        %434 = vmatmul.mubr.f32.gmra.mxu0 %v302
        %v435 = vpop.f32.mrf.mxu0
        %v436 = vadd.f32 0.0, %v435
        %v437 = vpop.f32.mrf.mxu0
        %438 = vmatprep.mubr.f32.mxu0 0.0
        %439 = vmatmul.mubr.f32.gmra.mxu0 %v305
        %v440 = vpop.f32.mrf.mxu0
        %v441 = vadd.f32 0.0, %v440
        %v442 = vpop.f32.mrf.mxu0
        %443 = vmatprep.mubr.f32.mxu0 0.0
        %444 = vmatmul.mubr.f32.gmra.mxu0 %v308
        %v445 = vpop.f32.mrf.mxu0
        %v446 = vadd.f32 0.0, %v445
        %v447 = vpop.f32.mrf.mxu0
        %448 = vmatprep.mubr.f32.mxu0 0.0
        %449 = vmatmul.mubr.f32.gmra.mxu0 %v311
        %v450 = vpop.f32.mrf.mxu0
        %v451 = vadd.f32 0.0, %v450
        %v452 = vpop.f32.mrf.mxu0
        %453 = vmatprep.mubr.f32.mxu0 0.0
        %454 = vmatmul.mubr.f32.gmra.mxu0 %v314
        %v455 = vpop.f32.mrf.mxu0
        %v456 = vadd.f32 0.0, %v455
        %v457 = vpop.f32.mrf.mxu0
        %458 = vmatprep.mubr.f32.mxu0 0.0
        %459 = vmatmul.mubr.f32.gmra.mxu0 %v317
        %v460 = vpop.f32.mrf.mxu0
        %v461 = vadd.f32 0.0, %v460
        %v462 = vpop.f32.mrf.mxu0
        %463 = vdwg.mxu0
        %v464 = vtanh.pop %v386
        %v465 = vtanh.pop %v391
        %v466 = vtanh.pop %v396
        %v467 = vtanh.pop %v401
        %v468 = vtanh.pop %v406
        %v469 = vtanh.pop %v411
        %v470 = vtanh.pop %v416
        %v471 = vtanh.pop %v421
        %v472 = vtanh.pop %v426
        %v473 = vtanh.pop %v431
        %v474 = vtanh.pop %v436
        %v475 = vtanh.pop %v441
        %v476 = vtanh.pop %v446
        %v477 = vtanh.pop %v451
        %v478 = vtanh.pop %v456
        %v479 = vtanh.pop %v461
        %v480 = vld [vmem:[%s2] sm:$0xff]
        %v481 = vld [vmem:[%s2 + $0x8] sm:$0xff]
        %v482 = vld [vmem:[%s2 + $0x10] sm:$0xff]
        %v483 = vld [vmem:[%s2 + $0x18] sm:$0xff]
        %v484 = vld [vmem:[%s2 + $0x20] sm:$0xff]
        %v485 = vld [vmem:[%s2 + $0x28] sm:$0xff]
        %v486 = vld [vmem:[%s2 + $0x30] sm:$0xff]
        %v487 = vld [vmem:[%s2 + $0x38] sm:$0xff]
        %v488 = vld [vmem:[%s2 + $0x40] sm:$0xff]
        %v489 = vld [vmem:[%s2 + $0x48] sm:$0xff]
        %v490 = vld [vmem:[%s2 + $0x50] sm:$0xff]
        %v491 = vld [vmem:[%s2 + $0x58] sm:$0xff]
        %v492 = vld [vmem:[%s2 + $0x60] sm:$0xff]
        %v493 = vld [vmem:[%s2 + $0x68] sm:$0xff]
        %v494 = vld [vmem:[%s2 + $0x70] sm:$0xff]
        %v495 = vld [vmem:[%s2 + $0x78] sm:$0xff]
        %496 = vmatprep.subr.mxu0 0.0
        %497 = vmatpush1.msra.mxu0 %v495
        %498 = vmatprep.subr.mxu0 0.0
        %499 = vmatpush1.msra.mxu0 %v494
        %500 = vmatprep.subr.mxu0 0.0
        %501 = vmatpush1.msra.mxu0 %v493
        %502 = vmatprep.subr.mxu0 0.0
        %503 = vmatpush1.msra.mxu0 %v492
        %504 = vmatprep.subr.mxu0 0.0
        %505 = vmatpush1.msra.mxu0 %v491
        %506 = vmatprep.subr.mxu0 0.0
        %507 = vmatpush1.msra.mxu0 %v490
        %508 = vmatprep.subr.mxu0 0.0
        %509 = vmatpush1.msra.mxu0 %v489
        %510 = vmatprep.subr.mxu0 0.0
        %511 = vmatpush1.msra.mxu0 %v488
        %512 = vmatprep.subr.mxu0 0.0
        %513 = vmatpush1.msra.mxu0 %v487
        %514 = vmatprep.subr.mxu0 0.0
        %515 = vmatpush1.msra.mxu0 %v486
        %516 = vmatprep.subr.mxu0 0.0
        %517 = vmatpush1.msra.mxu0 %v485
        %518 = vmatprep.subr.mxu0 0.0
        %519 = vmatpush1.msra.mxu0 %v484
        %520 = vmatprep.subr.mxu0 0.0
        %521 = vmatpush1.msra.mxu0 %v483
        %522 = vmatprep.subr.mxu0 0.0
        %523 = vmatpush1.msra.mxu0 %v482
        %524 = vmatprep.subr.mxu0 0.0
        %525 = vmatpush1.msra.mxu0 %v481
        %526 = vmatprep.subr.mxu0 0.0
        %527 = vmatpush1.msra.mxu0 %v480
        %528 = vmatprep.subr.mxu0 0.0
        %529 = vmatpush2.msra.mxu0 0.0
        %530 = vmatprep.subr.mxu0 0.0
        %531 = vmatpush2.msra.mxu0 0.0
        %532 = vmatprep.subr.mxu0 0.0
        %533 = vmatpush2.msra.mxu0 0.0
        %534 = vmatprep.subr.mxu0 0.0
        %535 = vmatpush2.msra.mxu0 0.0
        %536 = vmatprep.subr.mxu0 0.0
        %537 = vmatpush2.msra.mxu0 0.0
        %538 = vmatprep.subr.mxu0 0.0
        %539 = vmatpush2.msra.mxu0 0.0
        %540 = vmatprep.subr.mxu0 0.0
        %541 = vmatpush2.msra.mxu0 0.0
        %542 = vmatprep.subr.mxu0 0.0
        %543 = vmatpush2.msra.mxu0 0.0
        %544 = vmatprep.subr.mxu0 0.0
        %545 = vmatpush2.msra.mxu0 0.0
        %546 = vmatprep.subr.mxu0 0.0
        %547 = vmatpush2.msra.mxu0 0.0
        %548 = vmatprep.subr.mxu0 0.0
        %549 = vmatpush2.msra.mxu0 0.0
        %550 = vmatprep.subr.mxu0 0.0
        %551 = vmatpush2.msra.mxu0 0.0
        %552 = vmatprep.subr.mxu0 0.0
        %553 = vmatpush2.msra.mxu0 0.0
        %554 = vmatprep.subr.mxu0 0.0
        %555 = vmatpush2.msra.mxu0 0.0
        %556 = vmatprep.subr.mxu0 0.0
        %557 = vmatpush2.msra.mxu0 0.0
        %558 = vmatprep.subr.mxu0 0.0
        %559 = vmatpush2.msra.mxu0 0.0
        %560 = vmatprep.mubr.f32.mxu0 0.0
        %561 = vmatmul.mubr.f32.gmra.mxu0 %v464
        %v562 = vpop.f32.mrf.mxu0
        %v563 = vadd.f32 0.0, %v562
        %v564 = vpop.f32.mrf.mxu0
        %565 = vmatprep.mubr.f32.mxu0 0.0
        %566 = vmatmul.mubr.f32.gmra.mxu0 %v465
        %v567 = vpop.f32.mrf.mxu0
        %v568 = vadd.f32 0.0, %v567
        %v569 = vpop.f32.mrf.mxu0
        %570 = vmatprep.mubr.f32.mxu0 0.0
        %571 = vmatmul.mubr.f32.gmra.mxu0 %v466
        %v572 = vpop.f32.mrf.mxu0
        %v573 = vadd.f32 0.0, %v572
        %v574 = vpop.f32.mrf.mxu0
        %575 = vmatprep.mubr.f32.mxu0 0.0
        %576 = vmatmul.mubr.f32.gmra.mxu0 %v467
        %v577 = vpop.f32.mrf.mxu0
        %v578 = vadd.f32 0.0, %v577
        %v579 = vpop.f32.mrf.mxu0
        %580 = vmatprep.mubr.f32.mxu0 0.0
        %581 = vmatmul.mubr.f32.gmra.mxu0 %v468
        %v582 = vpop.f32.mrf.mxu0
        %v583 = vadd.f32 0.0, %v582
        %v584 = vpop.f32.mrf.mxu0
        %585 = vmatprep.mubr.f32.mxu0 0.0
        %586 = vmatmul.mubr.f32.gmra.mxu0 %v469
        %v587 = vpop.f32.mrf.mxu0
        %v588 = vadd.f32 0.0, %v587
        %v589 = vpop.f32.mrf.mxu0
        %590 = vmatprep.mubr.f32.mxu0 0.0
        %591 = vmatmul.mubr.f32.gmra.mxu0 %v470
        %v592 = vpop.f32.mrf.mxu0
        %v593 = vadd.f32 0.0, %v592
        %v594 = vpop.f32.mrf.mxu0
        %595 = vmatprep.mubr.f32.mxu0 0.0
        %596 = vmatmul.mubr.f32.gmra.mxu0 %v471
        %v597 = vpop.f32.mrf.mxu0
        %v598 = vadd.f32 0.0, %v597
        %v599 = vpop.f32.mrf.mxu0
        %600 = vmatprep.mubr.f32.mxu0 0.0
        %601 = vmatmul.mubr.f32.gmra.mxu0 %v472
        %v602 = vpop.f32.mrf.mxu0
        %v603 = vadd.f32 0.0, %v602
        %v604 = vpop.f32.mrf.mxu0
        %605 = vmatprep.mubr.f32.mxu0 0.0
        %606 = vmatmul.mubr.f32.gmra.mxu0 %v473
        %v607 = vpop.f32.mrf.mxu0
        %v608 = vadd.f32 0.0, %v607
        %v609 = vpop.f32.mrf.mxu0
        %610 = vmatprep.mubr.f32.mxu0 0.0
        %611 = vmatmul.mubr.f32.gmra.mxu0 %v474
        %v612 = vpop.f32.mrf.mxu0
        %v613 = vadd.f32 0.0, %v612
        %v614 = vpop.f32.mrf.mxu0
        %615 = vmatprep.mubr.f32.mxu0 0.0
        %616 = vmatmul.mubr.f32.gmra.mxu0 %v475
        %v617 = vpop.f32.mrf.mxu0
        %v618 = vadd.f32 0.0, %v617
        %v619 = vpop.f32.mrf.mxu0
        %620 = vmatprep.mubr.f32.mxu0 0.0
        %621 = vmatmul.mubr.f32.gmra.mxu0 %v476
        %v622 = vpop.f32.mrf.mxu0
        %v623 = vadd.f32 0.0, %v622
        %v624 = vpop.f32.mrf.mxu0
        %625 = vmatprep.mubr.f32.mxu0 0.0
        %626 = vmatmul.mubr.f32.gmra.mxu0 %v477
        %v627 = vpop.f32.mrf.mxu0
        %v628 = vadd.f32 0.0, %v627
        %v629 = vpop.f32.mrf.mxu0
        %630 = vmatprep.mubr.f32.mxu0 0.0
        %631 = vmatmul.mubr.f32.gmra.mxu0 %v478
        %v632 = vpop.f32.mrf.mxu0
        %v633 = vadd.f32 0.0, %v632
        %v634 = vpop.f32.mrf.mxu0
        %635 = vmatprep.mubr.f32.mxu0 0.0
        %636 = vmatmul.mubr.f32.gmra.mxu0 %v479
        %v637 = vpop.f32.mrf.mxu0
        %v638 = vadd.f32 0.0, %v637
        %v639 = vpop.f32.mrf.mxu0
        %640 = vdwg.mxu0
        %v641 = vtanh.pop %v563
        %v642 = vtanh.pop %v568
        %v643 = vtanh.pop %v573
        %v644 = vtanh.pop %v578
        %v645 = vtanh.pop %v583
        %v646 = vtanh.pop %v588
        %v647 = vtanh.pop %v593
        %v648 = vtanh.pop %v598
        %v649 = vtanh.pop %v603
        %v650 = vtanh.pop %v608
        %v651 = vtanh.pop %v613
        %v652 = vtanh.pop %v618
        %v653 = vtanh.pop %v623
        %v654 = vtanh.pop %v628
        %v655 = vtanh.pop %v633
        %v656 = vtanh.pop %v638
        %v657 = vld [vmem:[%s3] sm:$0xff]
        %v658 = vld [vmem:[%s3 + $0x8] sm:$0xff]
        %v659 = vld [vmem:[%s3 + $0x10] sm:$0xff]
        %v660 = vld [vmem:[%s3 + $0x18] sm:$0xff]
        %v661 = vld [vmem:[%s3 + $0x20] sm:$0xff]
        %v662 = vld [vmem:[%s3 + $0x28] sm:$0xff]
        %v663 = vld [vmem:[%s3 + $0x30] sm:$0xff]
        %v664 = vld [vmem:[%s3 + $0x38] sm:$0xff]
        %v665 = vld [vmem:[%s3 + $0x40] sm:$0xff]
        %v666 = vld [vmem:[%s3 + $0x48] sm:$0xff]
        %v667 = vld [vmem:[%s3 + $0x50] sm:$0xff]
        %v668 = vld [vmem:[%s3 + $0x58] sm:$0xff]
        %v669 = vld [vmem:[%s3 + $0x60] sm:$0xff]
        %v670 = vld [vmem:[%s3 + $0x68] sm:$0xff]
        %v671 = vld [vmem:[%s3 + $0x70] sm:$0xff]
        %v672 = vld [vmem:[%s3 + $0x78] sm:$0xff]
        %v673 = vld [vmem:[%s4] sm:$0x1]
        %v675 = vlaneseq
        %v676 = vshrl.u32 %v675, 7
        %v677 = vsub.s32 0, %v676
        %v678 = vrot.slane %v673, %v677
        %680 = vmatprep.subr.mxu0 0.0
        %681 = vmatpush1.msra.mxu0 %v672
        %682 = vmatprep.subr.mxu0 0.0
        %683 = vmatpush1.msra.mxu0 %v671
        %684 = vmatprep.subr.mxu0 0.0
        %685 = vmatpush1.msra.mxu0 %v670
        %686 = vmatprep.subr.mxu0 0.0
        %687 = vmatpush1.msra.mxu0 %v669
        %688 = vmatprep.subr.mxu0 0.0
        %689 = vmatpush1.msra.mxu0 %v668
        %690 = vmatprep.subr.mxu0 0.0
        %691 = vmatpush1.msra.mxu0 %v667
        %692 = vmatprep.subr.mxu0 0.0
        %693 = vmatpush1.msra.mxu0 %v666
        %694 = vmatprep.subr.mxu0 0.0
        %695 = vmatpush1.msra.mxu0 %v665
        %696 = vmatprep.subr.mxu0 0.0
        %697 = vmatpush1.msra.mxu0 %v664
        %698 = vmatprep.subr.mxu0 0.0
        %699 = vmatpush1.msra.mxu0 %v663
        %700 = vmatprep.subr.mxu0 0.0
        %701 = vmatpush1.msra.mxu0 %v662
        %702 = vmatprep.subr.mxu0 0.0
        %703 = vmatpush1.msra.mxu0 %v661
        %704 = vmatprep.subr.mxu0 0.0
        %705 = vmatpush1.msra.mxu0 %v660
        %706 = vmatprep.subr.mxu0 0.0
        %707 = vmatpush1.msra.mxu0 %v659
        %708 = vmatprep.subr.mxu0 0.0
        %709 = vmatpush1.msra.mxu0 %v658
        %710 = vmatprep.subr.mxu0 0.0
        %711 = vmatpush1.msra.mxu0 %v657
        %712 = vmatprep.subr.mxu0 0.0
        %713 = vmatpush2.msra.mxu0 0.0
        %714 = vmatprep.subr.mxu0 0.0
        %715 = vmatpush2.msra.mxu0 0.0
        %716 = vmatprep.subr.mxu0 0.0
        %717 = vmatpush2.msra.mxu0 0.0
        %718 = vmatprep.subr.mxu0 0.0
        %719 = vmatpush2.msra.mxu0 0.0
        %720 = vmatprep.subr.mxu0 0.0
        %721 = vmatpush2.msra.mxu0 0.0
        %722 = vmatprep.subr.mxu0 0.0
        %723 = vmatpush2.msra.mxu0 0.0
        %724 = vmatprep.subr.mxu0 0.0
        %725 = vmatpush2.msra.mxu0 0.0
        %726 = vmatprep.subr.mxu0 0.0
        %727 = vmatpush2.msra.mxu0 0.0
        %728 = vmatprep.subr.mxu0 0.0
        %729 = vmatpush2.msra.mxu0 0.0
        %730 = vmatprep.subr.mxu0 0.0
        %731 = vmatpush2.msra.mxu0 0.0
        %732 = vmatprep.subr.mxu0 0.0
        %733 = vmatpush2.msra.mxu0 0.0
        %734 = vmatprep.subr.mxu0 0.0
        %735 = vmatpush2.msra.mxu0 0.0
        %736 = vmatprep.subr.mxu0 0.0
        %737 = vmatpush2.msra.mxu0 0.0
        %738 = vmatprep.subr.mxu0 0.0
        %739 = vmatpush2.msra.mxu0 0.0
        %740 = vmatprep.subr.mxu0 0.0
        %741 = vmatpush2.msra.mxu0 0.0
        %742 = vmatprep.subr.mxu0 0.0
        %743 = vmatpush2.msra.mxu0 0.0
        %744 = vmatprep.mubr.f32.mxu0 0.0
        %745 = vmatmul.mubr.f32.gmra.mxu0 %v641
        %v746 = vpop.f32.mrf.mxu0
        %v747 = vadd.f32 %v678, %v746
        %v748 = vpop.f32.mrf.mxu0
        %749 = vmatprep.mubr.f32.mxu0 0.0
        %750 = vmatmul.mubr.f32.gmra.mxu0 %v642
        %v751 = vpop.f32.mrf.mxu0
        %v752 = vadd.f32 %v678, %v751
        %v753 = vpop.f32.mrf.mxu0
        %754 = vmatprep.mubr.f32.mxu0 0.0
        %755 = vmatmul.mubr.f32.gmra.mxu0 %v643
        %v756 = vpop.f32.mrf.mxu0
        %v757 = vadd.f32 %v678, %v756
        %v758 = vpop.f32.mrf.mxu0
        %759 = vmatprep.mubr.f32.mxu0 0.0
        %760 = vmatmul.mubr.f32.gmra.mxu0 %v644
        %v761 = vpop.f32.mrf.mxu0
        %v762 = vadd.f32 %v678, %v761
        %v763 = vpop.f32.mrf.mxu0
        %764 = vmatprep.mubr.f32.mxu0 0.0
        %765 = vmatmul.mubr.f32.gmra.mxu0 %v645
        %v766 = vpop.f32.mrf.mxu0
        %v767 = vadd.f32 %v678, %v766
        %v768 = vpop.f32.mrf.mxu0
        %769 = vmatprep.mubr.f32.mxu0 0.0
        %770 = vmatmul.mubr.f32.gmra.mxu0 %v646
        %v771 = vpop.f32.mrf.mxu0
        %v772 = vadd.f32 %v678, %v771
        %v773 = vpop.f32.mrf.mxu0
        %774 = vmatprep.mubr.f32.mxu0 0.0
        %775 = vmatmul.mubr.f32.gmra.mxu0 %v647
        %v776 = vpop.f32.mrf.mxu0
        %v777 = vadd.f32 %v678, %v776
        %v778 = vpop.f32.mrf.mxu0
        %779 = vmatprep.mubr.f32.mxu0 0.0
        %780 = vmatmul.mubr.f32.gmra.mxu0 %v648
        %v781 = vpop.f32.mrf.mxu0
        %v782 = vadd.f32 %v678, %v781
        %v783 = vpop.f32.mrf.mxu0
        %784 = vmatprep.mubr.f32.mxu0 0.0
        %785 = vmatmul.mubr.f32.gmra.mxu0 %v649
        %v786 = vpop.f32.mrf.mxu0
        %v787 = vadd.f32 %v678, %v786
        %v788 = vpop.f32.mrf.mxu0
        %789 = vmatprep.mubr.f32.mxu0 0.0
        %790 = vmatmul.mubr.f32.gmra.mxu0 %v650
        %v791 = vpop.f32.mrf.mxu0
        %v792 = vadd.f32 %v678, %v791
        %v793 = vpop.f32.mrf.mxu0
        %794 = vmatprep.mubr.f32.mxu0 0.0
        %795 = vmatmul.mubr.f32.gmra.mxu0 %v651
        %v796 = vpop.f32.mrf.mxu0
        %v797 = vadd.f32 %v678, %v796
        %v798 = vpop.f32.mrf.mxu0
        %799 = vmatprep.mubr.f32.mxu0 0.0
        %800 = vmatmul.mubr.f32.gmra.mxu0 %v652
        %v801 = vpop.f32.mrf.mxu0
        %v802 = vadd.f32 %v678, %v801
        %v803 = vpop.f32.mrf.mxu0
        %804 = vmatprep.mubr.f32.mxu0 0.0
        %805 = vmatmul.mubr.f32.gmra.mxu0 %v653
        %v806 = vpop.f32.mrf.mxu0
        %v807 = vadd.f32 %v678, %v806
        %v808 = vpop.f32.mrf.mxu0
        %809 = vmatprep.mubr.f32.mxu0 0.0
        %810 = vmatmul.mubr.f32.gmra.mxu0 %v654
        %v811 = vpop.f32.mrf.mxu0
        %v812 = vadd.f32 %v678, %v811
        %v813 = vpop.f32.mrf.mxu0
        %814 = vmatprep.mubr.f32.mxu0 0.0
        %815 = vmatmul.mubr.f32.gmra.mxu0 %v655
        %v816 = vpop.f32.mrf.mxu0
        %v817 = vadd.f32 %v678, %v816
        %v818 = vpop.f32.mrf.mxu0
        %819 = vmatprep.mubr.f32.mxu0 0.0
        %820 = vmatmul.mubr.f32.gmra.mxu0 %v656
        %v821 = vpop.f32.mrf.mxu0
        %v822 = vadd.f32 %v678, %v821
        %v823 = vpop.f32.mrf.mxu0
        %824 = vdwg.mxu0
        %v825 = vmul.f32 %v246, %v747
        %v826 = vmul.f32 %v247, %v752
        %v827 = vmul.f32 %v248, %v757
        %v828 = vmul.f32 %v249, %v762
        %v829 = vmul.f32 %v250, %v767
        %v830 = vmul.f32 %v251, %v772
        %v831 = vmul.f32 %v252, %v777
        %v832 = vmul.f32 %v253, %v782
        %v833 = vmul.f32 %v254, %v787
        %v834 = vmul.f32 %v255, %v792
        %v835 = vmul.f32 %v256, %v797
        %v836 = vmul.f32 %v257, %v802
        %v837 = vmul.f32 %v258, %v807
        %v838 = vmul.f32 %v259, %v812
        %v839 = vmul.f32 %v260, %v817
        %v840 = vmul.f32 %v261, %v822
        %v841 = vadd.f32 %v825, %v246
        %v842 = vadd.f32 %v826, %v247
        %v843 = vadd.f32 %v827, %v248
        %v844 = vadd.f32 %v828, %v249
        %v845 = vadd.f32 %v829, %v250
        %v846 = vadd.f32 %v830, %v251
        %v847 = vadd.f32 %v831, %v252
        %v848 = vadd.f32 %v832, %v253
        %v849 = vadd.f32 %v833, %v254
        %v850 = vadd.f32 %v834, %v255
        %v851 = vadd.f32 %v835, %v256
        %v852 = vadd.f32 %v836, %v257
        %v853 = vadd.f32 %v837, %v258
        %v854 = vadd.f32 %v838, %v259
        %v855 = vadd.f32 %v839, %v260
        %v856 = vadd.f32 %v840, %v261
        %s857 = scalar_lea.vmem %s1, 64
        %v858 = vld [vmem:[%s857] sm:$0xff]
        %v859 = vld [vmem:[%s857 + $0x8] sm:$0xff]
        %v860 = vld [vmem:[%s857 + $0x10] sm:$0xff]
        %v861 = vld [vmem:[%s857 + $0x18] sm:$0xff]
        %v862 = vld [vmem:[%s857 + $0x20] sm:$0xff]
        %v863 = vld [vmem:[%s857 + $0x28] sm:$0xff]
        %v864 = vld [vmem:[%s857 + $0x30] sm:$0xff]
        %v865 = vld [vmem:[%s857 + $0x38] sm:$0xff]
        %v867 = vsel %vm270, %v841, 0
        %v870 = vsel %vm270, %v842, 0
        %v873 = vsel %vm270, %v843, 0
        %v876 = vsel %vm270, %v844, 0
        %v879 = vsel %vm270, %v845, 0
        %v882 = vsel %vm270, %v846, 0
        %v885 = vsel %vm270, %v847, 0
        %v888 = vsel %vm270, %v848, 0
        %v891 = vsel %vm270, %v849, 0
        %v894 = vsel %vm270, %v850, 0
        %v897 = vsel %vm270, %v851, 0
        %v900 = vsel %vm270, %v852, 0
        %v903 = vsel %vm270, %v853, 0
        %v906 = vsel %vm270, %v854, 0
        %v909 = vsel %vm270, %v855, 0
        %v912 = vsel %vm270, %v856, 0
        %914 = vmatprep.subr.mxu0 0.0
        %915 = vmatpush1.msra.mxu0 0.0
        %916 = vmatprep.subr.mxu0 0.0
        %917 = vmatpush1.msra.mxu0 0.0
        %918 = vmatprep.subr.mxu0 0.0
        %919 = vmatpush1.msra.mxu0 0.0
        %920 = vmatprep.subr.mxu0 0.0
        %921 = vmatpush1.msra.mxu0 0.0
        %922 = vmatprep.subr.mxu0 0.0
        %923 = vmatpush1.msra.mxu0 0.0
        %924 = vmatprep.subr.mxu0 0.0
        %925 = vmatpush1.msra.mxu0 0.0
        %926 = vmatprep.subr.mxu0 0.0
        %927 = vmatpush1.msra.mxu0 0.0
        %928 = vmatprep.subr.mxu0 0.0
        %929 = vmatpush1.msra.mxu0 0.0
        %930 = vmatprep.subr.mxu0 0.0
        %931 = vmatpush1.msra.mxu0 %v865
        %932 = vmatprep.subr.mxu0 0.0
        %933 = vmatpush1.msra.mxu0 %v864
        %934 = vmatprep.subr.mxu0 0.0
        %935 = vmatpush1.msra.mxu0 %v863
        %936 = vmatprep.subr.mxu0 0.0
        %937 = vmatpush1.msra.mxu0 %v862
        %938 = vmatprep.subr.mxu0 0.0
        %939 = vmatpush1.msra.mxu0 %v861
        %940 = vmatprep.subr.mxu0 0.0
        %941 = vmatpush1.msra.mxu0 %v860
        %942 = vmatprep.subr.mxu0 0.0
        %943 = vmatpush1.msra.mxu0 %v859
        %944 = vmatprep.subr.mxu0 0.0
        %945 = vmatpush1.msra.mxu0 %v858
        %946 = vmatprep.subr.mxu0 0.0
        %947 = vmatpush2.msra.mxu0 0.0
        %948 = vmatprep.subr.mxu0 0.0
        %949 = vmatpush2.msra.mxu0 0.0
        %950 = vmatprep.subr.mxu0 0.0
        %951 = vmatpush2.msra.mxu0 0.0
        %952 = vmatprep.subr.mxu0 0.0
        %953 = vmatpush2.msra.mxu0 0.0
        %954 = vmatprep.subr.mxu0 0.0
        %955 = vmatpush2.msra.mxu0 0.0
        %956 = vmatprep.subr.mxu0 0.0
        %957 = vmatpush2.msra.mxu0 0.0
        %958 = vmatprep.subr.mxu0 0.0
        %959 = vmatpush2.msra.mxu0 0.0
        %960 = vmatprep.subr.mxu0 0.0
        %961 = vmatpush2.msra.mxu0 0.0
        %962 = vmatprep.subr.mxu0 0.0
        %963 = vmatpush2.msra.mxu0 0.0
        %964 = vmatprep.subr.mxu0 0.0
        %965 = vmatpush2.msra.mxu0 0.0
        %966 = vmatprep.subr.mxu0 0.0
        %967 = vmatpush2.msra.mxu0 0.0
        %968 = vmatprep.subr.mxu0 0.0
        %969 = vmatpush2.msra.mxu0 0.0
        %970 = vmatprep.subr.mxu0 0.0
        %971 = vmatpush2.msra.mxu0 0.0
        %972 = vmatprep.subr.mxu0 0.0
        %973 = vmatpush2.msra.mxu0 0.0
        %974 = vmatprep.subr.mxu0 0.0
        %975 = vmatpush2.msra.mxu0 0.0
        %976 = vmatprep.subr.mxu0 0.0
        %977 = vmatpush2.msra.mxu0 0.0
        %978 = vmatprep.mubr.f32.mxu0 0.0
        %979 = vmatmul.mubr.f32.gmra.mxu0 %v867
        %v980 = vpop.f32.mrf.mxu0
        %v981 = vadd.f32 0.0, %v980
        %v982 = vpop.f32.mrf.mxu0
        %983 = vmatprep.mubr.f32.mxu0 0.0
        %984 = vmatmul.mubr.f32.gmra.mxu0 %v870
        %v985 = vpop.f32.mrf.mxu0
        %v986 = vadd.f32 0.0, %v985
        %v987 = vpop.f32.mrf.mxu0
        %988 = vmatprep.mubr.f32.mxu0 0.0
        %989 = vmatmul.mubr.f32.gmra.mxu0 %v873
        %v990 = vpop.f32.mrf.mxu0
        %v991 = vadd.f32 0.0, %v990
        %v992 = vpop.f32.mrf.mxu0
        %993 = vmatprep.mubr.f32.mxu0 0.0
        %994 = vmatmul.mubr.f32.gmra.mxu0 %v876
        %v995 = vpop.f32.mrf.mxu0
        %v996 = vadd.f32 0.0, %v995
        %v997 = vpop.f32.mrf.mxu0
        %998 = vmatprep.mubr.f32.mxu0 0.0
        %999 = vmatmul.mubr.f32.gmra.mxu0 %v879
        %v1000 = vpop.f32.mrf.mxu0
        %v1001 = vadd.f32 0.0, %v1000
        %v1002 = vpop.f32.mrf.mxu0
        %1003 = vmatprep.mubr.f32.mxu0 0.0
        %1004 = vmatmul.mubr.f32.gmra.mxu0 %v882
        %v1005 = vpop.f32.mrf.mxu0
        %v1006 = vadd.f32 0.0, %v1005
        %v1007 = vpop.f32.mrf.mxu0
        %1008 = vmatprep.mubr.f32.mxu0 0.0
        %1009 = vmatmul.mubr.f32.gmra.mxu0 %v885
        %v1010 = vpop.f32.mrf.mxu0
        %v1011 = vadd.f32 0.0, %v1010
        %v1012 = vpop.f32.mrf.mxu0
        %1013 = vmatprep.mubr.f32.mxu0 0.0
        %1014 = vmatmul.mubr.f32.gmra.mxu0 %v888
        %v1015 = vpop.f32.mrf.mxu0
        %v1016 = vadd.f32 0.0, %v1015
        %v1017 = vpop.f32.mrf.mxu0
        %1018 = vmatprep.mubr.f32.mxu0 0.0
        %1019 = vmatmul.mubr.f32.gmra.mxu0 %v891
        %v1020 = vpop.f32.mrf.mxu0
        %v1021 = vadd.f32 0.0, %v1020
        %v1022 = vpop.f32.mrf.mxu0
        %1023 = vmatprep.mubr.f32.mxu0 0.0
        %1024 = vmatmul.mubr.f32.gmra.mxu0 %v894
        %v1025 = vpop.f32.mrf.mxu0
        %v1026 = vadd.f32 0.0, %v1025
        %v1027 = vpop.f32.mrf.mxu0
        %1028 = vmatprep.mubr.f32.mxu0 0.0
        %1029 = vmatmul.mubr.f32.gmra.mxu0 %v897
        %v1030 = vpop.f32.mrf.mxu0
        %v1031 = vadd.f32 0.0, %v1030
        %v1032 = vpop.f32.mrf.mxu0
        %1033 = vmatprep.mubr.f32.mxu0 0.0
        %1034 = vmatmul.mubr.f32.gmra.mxu0 %v900
        %v1035 = vpop.f32.mrf.mxu0
        %v1036 = vadd.f32 0.0, %v1035
        %v1037 = vpop.f32.mrf.mxu0
        %1038 = vmatprep.mubr.f32.mxu0 0.0
        %1039 = vmatmul.mubr.f32.gmra.mxu0 %v903
        %v1040 = vpop.f32.mrf.mxu0
        %v1041 = vadd.f32 0.0, %v1040
        %v1042 = vpop.f32.mrf.mxu0
        %1043 = vmatprep.mubr.f32.mxu0 0.0
        %1044 = vmatmul.mubr.f32.gmra.mxu0 %v906
        %v1045 = vpop.f32.mrf.mxu0
        %v1046 = vadd.f32 0.0, %v1045
        %v1047 = vpop.f32.mrf.mxu0
        %1048 = vmatprep.mubr.f32.mxu0 0.0
        %1049 = vmatmul.mubr.f32.gmra.mxu0 %v909
        %v1050 = vpop.f32.mrf.mxu0
        %v1051 = vadd.f32 0.0, %v1050
        %v1052 = vpop.f32.mrf.mxu0
        %1053 = vmatprep.mubr.f32.mxu0 0.0
        %1054 = vmatmul.mubr.f32.gmra.mxu0 %v912
        %v1055 = vpop.f32.mrf.mxu0
        %v1056 = vadd.f32 0.0, %v1055
        %v1057 = vpop.f32.mrf.mxu0
        %1058 = vdwg.mxu0
        %v1059 = vtanh.pop %v981
        %v1060 = vtanh.pop %v986
        %v1061 = vtanh.pop %v991
        %v1062 = vtanh.pop %v996
        %v1063 = vtanh.pop %v1001
        %v1064 = vtanh.pop %v1006
        %v1065 = vtanh.pop %v1011
        %v1066 = vtanh.pop %v1016
        %v1067 = vtanh.pop %v1021
        %v1068 = vtanh.pop %v1026
        %v1069 = vtanh.pop %v1031
        %v1070 = vtanh.pop %v1036
        %v1071 = vtanh.pop %v1041
        %v1072 = vtanh.pop %v1046
        %v1073 = vtanh.pop %v1051
        %v1074 = vtanh.pop %v1056
        %s1075 = scalar_lea.vmem %s2, 128
        %v1076 = vld [vmem:[%s1075] sm:$0xff]
        %v1077 = vld [vmem:[%s1075 + $0x8] sm:$0xff]
        %v1078 = vld [vmem:[%s1075 + $0x10] sm:$0xff]
        %v1079 = vld [vmem:[%s1075 + $0x18] sm:$0xff]
        %v1080 = vld [vmem:[%s1075 + $0x20] sm:$0xff]
        %v1081 = vld [vmem:[%s1075 + $0x28] sm:$0xff]
        %v1082 = vld [vmem:[%s1075 + $0x30] sm:$0xff]
        %v1083 = vld [vmem:[%s1075 + $0x38] sm:$0xff]
        %v1084 = vld [vmem:[%s1075 + $0x40] sm:$0xff]
        %v1085 = vld [vmem:[%s1075 + $0x48] sm:$0xff]
        %v1086 = vld [vmem:[%s1075 + $0x50] sm:$0xff]
        %v1087 = vld [vmem:[%s1075 + $0x58] sm:$0xff]
        %v1088 = vld [vmem:[%s1075 + $0x60] sm:$0xff]
        %v1089 = vld [vmem:[%s1075 + $0x68] sm:$0xff]
        %v1090 = vld [vmem:[%s1075 + $0x70] sm:$0xff]
        %v1091 = vld [vmem:[%s1075 + $0x78] sm:$0xff]
        %1092 = vmatprep.subr.mxu0 0.0
        %1093 = vmatpush1.msra.mxu0 %v1091
        %1094 = vmatprep.subr.mxu0 0.0
        %1095 = vmatpush1.msra.mxu0 %v1090
        %1096 = vmatprep.subr.mxu0 0.0
        %1097 = vmatpush1.msra.mxu0 %v1089
        %1098 = vmatprep.subr.mxu0 0.0
        %1099 = vmatpush1.msra.mxu0 %v1088
        %1100 = vmatprep.subr.mxu0 0.0
        %1101 = vmatpush1.msra.mxu0 %v1087
        %1102 = vmatprep.subr.mxu0 0.0
        %1103 = vmatpush1.msra.mxu0 %v1086
        %1104 = vmatprep.subr.mxu0 0.0
        %1105 = vmatpush1.msra.mxu0 %v1085
        %1106 = vmatprep.subr.mxu0 0.0
        %1107 = vmatpush1.msra.mxu0 %v1084
        %1108 = vmatprep.subr.mxu0 0.0
        %1109 = vmatpush1.msra.mxu0 %v1083
        %1110 = vmatprep.subr.mxu0 0.0
        %1111 = vmatpush1.msra.mxu0 %v1082
        %1112 = vmatprep.subr.mxu0 0.0
        %1113 = vmatpush1.msra.mxu0 %v1081
        %1114 = vmatprep.subr.mxu0 0.0
        %1115 = vmatpush1.msra.mxu0 %v1080
        %1116 = vmatprep.subr.mxu0 0.0
        %1117 = vmatpush1.msra.mxu0 %v1079
        %1118 = vmatprep.subr.mxu0 0.0
        %1119 = vmatpush1.msra.mxu0 %v1078
        %1120 = vmatprep.subr.mxu0 0.0
        %1121 = vmatpush1.msra.mxu0 %v1077
        %1122 = vmatprep.subr.mxu0 0.0
        %1123 = vmatpush1.msra.mxu0 %v1076
        %1124 = vmatprep.subr.mxu0 0.0
        %1125 = vmatpush2.msra.mxu0 0.0
        %1126 = vmatprep.subr.mxu0 0.0
        %1127 = vmatpush2.msra.mxu0 0.0
        %1128 = vmatprep.subr.mxu0 0.0
        %1129 = vmatpush2.msra.mxu0 0.0
        %1130 = vmatprep.subr.mxu0 0.0
        %1131 = vmatpush2.msra.mxu0 0.0
        %1132 = vmatprep.subr.mxu0 0.0
        %1133 = vmatpush2.msra.mxu0 0.0
        %1134 = vmatprep.subr.mxu0 0.0
        %1135 = vmatpush2.msra.mxu0 0.0
        %1136 = vmatprep.subr.mxu0 0.0
        %1137 = vmatpush2.msra.mxu0 0.0
        %1138 = vmatprep.subr.mxu0 0.0
        %1139 = vmatpush2.msra.mxu0 0.0
        %1140 = vmatprep.subr.mxu0 0.0
        %1141 = vmatpush2.msra.mxu0 0.0
        %1142 = vmatprep.subr.mxu0 0.0
        %1143 = vmatpush2.msra.mxu0 0.0
        %1144 = vmatprep.subr.mxu0 0.0
        %1145 = vmatpush2.msra.mxu0 0.0
        %1146 = vmatprep.subr.mxu0 0.0
        %1147 = vmatpush2.msra.mxu0 0.0
        %1148 = vmatprep.subr.mxu0 0.0
        %1149 = vmatpush2.msra.mxu0 0.0
        %1150 = vmatprep.subr.mxu0 0.0
        %1151 = vmatpush2.msra.mxu0 0.0
        %1152 = vmatprep.subr.mxu0 0.0
        %1153 = vmatpush2.msra.mxu0 0.0
        %1154 = vmatprep.subr.mxu0 0.0
        %1155 = vmatpush2.msra.mxu0 0.0
        %1156 = vmatprep.mubr.f32.mxu0 0.0
        %1157 = vmatmul.mubr.f32.gmra.mxu0 %v1059
        %v1158 = vpop.f32.mrf.mxu0
        %v1159 = vadd.f32 0.0, %v1158
        %v1160 = vpop.f32.mrf.mxu0
        %1161 = vmatprep.mubr.f32.mxu0 0.0
        %1162 = vmatmul.mubr.f32.gmra.mxu0 %v1060
        %v1163 = vpop.f32.mrf.mxu0
        %v1164 = vadd.f32 0.0, %v1163
        %v1165 = vpop.f32.mrf.mxu0
        %1166 = vmatprep.mubr.f32.mxu0 0.0
        %1167 = vmatmul.mubr.f32.gmra.mxu0 %v1061
        %v1168 = vpop.f32.mrf.mxu0
        %v1169 = vadd.f32 0.0, %v1168
        %v1170 = vpop.f32.mrf.mxu0
        %1171 = vmatprep.mubr.f32.mxu0 0.0
        %1172 = vmatmul.mubr.f32.gmra.mxu0 %v1062
        %v1173 = vpop.f32.mrf.mxu0
        %v1174 = vadd.f32 0.0, %v1173
        %v1175 = vpop.f32.mrf.mxu0
        %1176 = vmatprep.mubr.f32.mxu0 0.0
        %1177 = vmatmul.mubr.f32.gmra.mxu0 %v1063
        %v1178 = vpop.f32.mrf.mxu0
        %v1179 = vadd.f32 0.0, %v1178
        %v1180 = vpop.f32.mrf.mxu0
        %1181 = vmatprep.mubr.f32.mxu0 0.0
        %1182 = vmatmul.mubr.f32.gmra.mxu0 %v1064
        %v1183 = vpop.f32.mrf.mxu0
        %v1184 = vadd.f32 0.0, %v1183
        %v1185 = vpop.f32.mrf.mxu0
        %1186 = vmatprep.mubr.f32.mxu0 0.0
        %1187 = vmatmul.mubr.f32.gmra.mxu0 %v1065
        %v1188 = vpop.f32.mrf.mxu0
        %v1189 = vadd.f32 0.0, %v1188
        %v1190 = vpop.f32.mrf.mxu0
        %1191 = vmatprep.mubr.f32.mxu0 0.0
        %1192 = vmatmul.mubr.f32.gmra.mxu0 %v1066
        %v1193 = vpop.f32.mrf.mxu0
        %v1194 = vadd.f32 0.0, %v1193
        %v1195 = vpop.f32.mrf.mxu0
        %1196 = vmatprep.mubr.f32.mxu0 0.0
        %1197 = vmatmul.mubr.f32.gmra.mxu0 %v1067
        %v1198 = vpop.f32.mrf.mxu0
        %v1199 = vadd.f32 0.0, %v1198
        %v1200 = vpop.f32.mrf.mxu0
        %1201 = vmatprep.mubr.f32.mxu0 0.0
        %1202 = vmatmul.mubr.f32.gmra.mxu0 %v1068
        %v1203 = vpop.f32.mrf.mxu0
        %v1204 = vadd.f32 0.0, %v1203
        %v1205 = vpop.f32.mrf.mxu0
        %1206 = vmatprep.mubr.f32.mxu0 0.0
        %1207 = vmatmul.mubr.f32.gmra.mxu0 %v1069
        %v1208 = vpop.f32.mrf.mxu0
        %v1209 = vadd.f32 0.0, %v1208
        %v1210 = vpop.f32.mrf.mxu0
        %1211 = vmatprep.mubr.f32.mxu0 0.0
        %1212 = vmatmul.mubr.f32.gmra.mxu0 %v1070
        %v1213 = vpop.f32.mrf.mxu0
        %v1214 = vadd.f32 0.0, %v1213
        %v1215 = vpop.f32.mrf.mxu0
        %1216 = vmatprep.mubr.f32.mxu0 0.0
        %1217 = vmatmul.mubr.f32.gmra.mxu0 %v1071
        %v1218 = vpop.f32.mrf.mxu0
        %v1219 = vadd.f32 0.0, %v1218
        %v1220 = vpop.f32.mrf.mxu0
        %1221 = vmatprep.mubr.f32.mxu0 0.0
        %1222 = vmatmul.mubr.f32.gmra.mxu0 %v1072
        %v1223 = vpop.f32.mrf.mxu0
        %v1224 = vadd.f32 0.0, %v1223
        %v1225 = vpop.f32.mrf.mxu0
        %1226 = vmatprep.mubr.f32.mxu0 0.0
        %1227 = vmatmul.mubr.f32.gmra.mxu0 %v1073
        %v1228 = vpop.f32.mrf.mxu0
        %v1229 = vadd.f32 0.0, %v1228
        %v1230 = vpop.f32.mrf.mxu0
        %1231 = vmatprep.mubr.f32.mxu0 0.0
        %1232 = vmatmul.mubr.f32.gmra.mxu0 %v1074
        %v1233 = vpop.f32.mrf.mxu0
        %v1234 = vadd.f32 0.0, %v1233
        %v1235 = vpop.f32.mrf.mxu0
        %1236 = vdwg.mxu0
        %v1237 = vtanh.pop %v1159
        %v1238 = vtanh.pop %v1164
        %v1239 = vtanh.pop %v1169
        %v1240 = vtanh.pop %v1174
        %v1241 = vtanh.pop %v1179
        %v1242 = vtanh.pop %v1184
        %v1243 = vtanh.pop %v1189
        %v1244 = vtanh.pop %v1194
        %v1245 = vtanh.pop %v1199
        %v1246 = vtanh.pop %v1204
        %v1247 = vtanh.pop %v1209
        %v1248 = vtanh.pop %v1214
        %v1249 = vtanh.pop %v1219
        %v1250 = vtanh.pop %v1224
        %v1251 = vtanh.pop %v1229
        %v1252 = vtanh.pop %v1234
        %s1253 = scalar_lea.vmem %s3, 128
        %v1254 = vld [vmem:[%s1253] sm:$0xff]
        %v1255 = vld [vmem:[%s1253 + $0x8] sm:$0xff]
        %v1256 = vld [vmem:[%s1253 + $0x10] sm:$0xff]
        %v1257 = vld [vmem:[%s1253 + $0x18] sm:$0xff]
        %v1258 = vld [vmem:[%s1253 + $0x20] sm:$0xff]
        %v1259 = vld [vmem:[%s1253 + $0x28] sm:$0xff]
        %v1260 = vld [vmem:[%s1253 + $0x30] sm:$0xff]
        %v1261 = vld [vmem:[%s1253 + $0x38] sm:$0xff]
        %v1262 = vld [vmem:[%s1253 + $0x40] sm:$0xff]
        %v1263 = vld [vmem:[%s1253 + $0x48] sm:$0xff]
        %v1264 = vld [vmem:[%s1253 + $0x50] sm:$0xff]
        %v1265 = vld [vmem:[%s1253 + $0x58] sm:$0xff]
        %v1266 = vld [vmem:[%s1253 + $0x60] sm:$0xff]
        %v1267 = vld [vmem:[%s1253 + $0x68] sm:$0xff]
        %v1268 = vld [vmem:[%s1253 + $0x70] sm:$0xff]
        %v1269 = vld [vmem:[%s1253 + $0x78] sm:$0xff]
        %s1270 = scalar_lea.vmem %s4, 1
        %v1271 = vld [vmem:[%s1270] sm:$0x1]
        %v1273 = vlaneseq
        %v1274 = vshrl.u32 %v1273, 7
        %v1275 = vsub.s32 0, %v1274
        %v1276 = vrot.slane %v1271, %v1275
        %1278 = vmatprep.subr.mxu0 0.0
        %1279 = vmatpush1.msra.mxu0 %v1269
        %1280 = vmatprep.subr.mxu0 0.0
        %1281 = vmatpush1.msra.mxu0 %v1268
        %1282 = vmatprep.subr.mxu0 0.0
        %1283 = vmatpush1.msra.mxu0 %v1267
        %1284 = vmatprep.subr.mxu0 0.0
        %1285 = vmatpush1.msra.mxu0 %v1266
        %1286 = vmatprep.subr.mxu0 0.0
        %1287 = vmatpush1.msra.mxu0 %v1265
        %1288 = vmatprep.subr.mxu0 0.0
        %1289 = vmatpush1.msra.mxu0 %v1264
        %1290 = vmatprep.subr.mxu0 0.0
        %1291 = vmatpush1.msra.mxu0 %v1263
        %1292 = vmatprep.subr.mxu0 0.0
        %1293 = vmatpush1.msra.mxu0 %v1262
        %1294 = vmatprep.subr.mxu0 0.0
        %1295 = vmatpush1.msra.mxu0 %v1261
        %1296 = vmatprep.subr.mxu0 0.0
        %1297 = vmatpush1.msra.mxu0 %v1260
        %1298 = vmatprep.subr.mxu0 0.0
        %1299 = vmatpush1.msra.mxu0 %v1259
        %1300 = vmatprep.subr.mxu0 0.0
        %1301 = vmatpush1.msra.mxu0 %v1258
        %1302 = vmatprep.subr.mxu0 0.0
        %1303 = vmatpush1.msra.mxu0 %v1257
        %1304 = vmatprep.subr.mxu0 0.0
        %1305 = vmatpush1.msra.mxu0 %v1256
        %1306 = vmatprep.subr.mxu0 0.0
        %1307 = vmatpush1.msra.mxu0 %v1255
        %1308 = vmatprep.subr.mxu0 0.0
        %1309 = vmatpush1.msra.mxu0 %v1254
        %1310 = vmatprep.subr.mxu0 0.0
        %1311 = vmatpush2.msra.mxu0 0.0
        %1312 = vmatprep.subr.mxu0 0.0
        %1313 = vmatpush2.msra.mxu0 0.0
        %1314 = vmatprep.subr.mxu0 0.0
        %1315 = vmatpush2.msra.mxu0 0.0
        %1316 = vmatprep.subr.mxu0 0.0
        %1317 = vmatpush2.msra.mxu0 0.0
        %1318 = vmatprep.subr.mxu0 0.0
        %1319 = vmatpush2.msra.mxu0 0.0
        %1320 = vmatprep.subr.mxu0 0.0
        %1321 = vmatpush2.msra.mxu0 0.0
        %1322 = vmatprep.subr.mxu0 0.0
        %1323 = vmatpush2.msra.mxu0 0.0
        %1324 = vmatprep.subr.mxu0 0.0
        %1325 = vmatpush2.msra.mxu0 0.0
        %1326 = vmatprep.subr.mxu0 0.0
        %1327 = vmatpush2.msra.mxu0 0.0
        %1328 = vmatprep.subr.mxu0 0.0
        %1329 = vmatpush2.msra.mxu0 0.0
        %1330 = vmatprep.subr.mxu0 0.0
        %1331 = vmatpush2.msra.mxu0 0.0
        %1332 = vmatprep.subr.mxu0 0.0
        %1333 = vmatpush2.msra.mxu0 0.0
        %1334 = vmatprep.subr.mxu0 0.0
        %1335 = vmatpush2.msra.mxu0 0.0
        %1336 = vmatprep.subr.mxu0 0.0
        %1337 = vmatpush2.msra.mxu0 0.0
        %1338 = vmatprep.subr.mxu0 0.0
        %1339 = vmatpush2.msra.mxu0 0.0
        %1340 = vmatprep.subr.mxu0 0.0
        %1341 = vmatpush2.msra.mxu0 0.0
        %1342 = vmatprep.mubr.f32.mxu0 0.0
        %1343 = vmatmul.mubr.f32.gmra.mxu0 %v1237
        %v1344 = vpop.f32.mrf.mxu0
        %v1345 = vadd.f32 %v1276, %v1344
        %v1346 = vpop.f32.mrf.mxu0
        %1347 = vmatprep.mubr.f32.mxu0 0.0
        %1348 = vmatmul.mubr.f32.gmra.mxu0 %v1238
        %v1349 = vpop.f32.mrf.mxu0
        %v1350 = vadd.f32 %v1276, %v1349
        %v1351 = vpop.f32.mrf.mxu0
        %1352 = vmatprep.mubr.f32.mxu0 0.0
        %1353 = vmatmul.mubr.f32.gmra.mxu0 %v1239
        %v1354 = vpop.f32.mrf.mxu0
        %v1355 = vadd.f32 %v1276, %v1354
        %v1356 = vpop.f32.mrf.mxu0
        %1357 = vmatprep.mubr.f32.mxu0 0.0
        %1358 = vmatmul.mubr.f32.gmra.mxu0 %v1240
        %v1359 = vpop.f32.mrf.mxu0
        %v1360 = vadd.f32 %v1276, %v1359
        %v1361 = vpop.f32.mrf.mxu0
        %1362 = vmatprep.mubr.f32.mxu0 0.0
        %1363 = vmatmul.mubr.f32.gmra.mxu0 %v1241
        %v1364 = vpop.f32.mrf.mxu0
        %v1365 = vadd.f32 %v1276, %v1364
        %v1366 = vpop.f32.mrf.mxu0
        %1367 = vmatprep.mubr.f32.mxu0 0.0
        %1368 = vmatmul.mubr.f32.gmra.mxu0 %v1242
        %v1369 = vpop.f32.mrf.mxu0
        %v1370 = vadd.f32 %v1276, %v1369
        %v1371 = vpop.f32.mrf.mxu0
        %1372 = vmatprep.mubr.f32.mxu0 0.0
        %1373 = vmatmul.mubr.f32.gmra.mxu0 %v1243
        %v1374 = vpop.f32.mrf.mxu0
        %v1375 = vadd.f32 %v1276, %v1374
        %v1376 = vpop.f32.mrf.mxu0
        %1377 = vmatprep.mubr.f32.mxu0 0.0
        %1378 = vmatmul.mubr.f32.gmra.mxu0 %v1244
        %v1379 = vpop.f32.mrf.mxu0
        %v1380 = vadd.f32 %v1276, %v1379
        %v1381 = vpop.f32.mrf.mxu0
        %1382 = vmatprep.mubr.f32.mxu0 0.0
        %1383 = vmatmul.mubr.f32.gmra.mxu0 %v1245
        %v1384 = vpop.f32.mrf.mxu0
        %v1385 = vadd.f32 %v1276, %v1384
        %v1386 = vpop.f32.mrf.mxu0
        %1387 = vmatprep.mubr.f32.mxu0 0.0
        %1388 = vmatmul.mubr.f32.gmra.mxu0 %v1246
        %v1389 = vpop.f32.mrf.mxu0
        %v1390 = vadd.f32 %v1276, %v1389
        %v1391 = vpop.f32.mrf.mxu0
        %1392 = vmatprep.mubr.f32.mxu0 0.0
        %1393 = vmatmul.mubr.f32.gmra.mxu0 %v1247
        %v1394 = vpop.f32.mrf.mxu0
        %v1395 = vadd.f32 %v1276, %v1394
        %v1396 = vpop.f32.mrf.mxu0
        %1397 = vmatprep.mubr.f32.mxu0 0.0
        %1398 = vmatmul.mubr.f32.gmra.mxu0 %v1248
        %v1399 = vpop.f32.mrf.mxu0
        %v1400 = vadd.f32 %v1276, %v1399
        %v1401 = vpop.f32.mrf.mxu0
        %1402 = vmatprep.mubr.f32.mxu0 0.0
        %1403 = vmatmul.mubr.f32.gmra.mxu0 %v1249
        %v1404 = vpop.f32.mrf.mxu0
        %v1405 = vadd.f32 %v1276, %v1404
        %v1406 = vpop.f32.mrf.mxu0
        %1407 = vmatprep.mubr.f32.mxu0 0.0
        %1408 = vmatmul.mubr.f32.gmra.mxu0 %v1250
        %v1409 = vpop.f32.mrf.mxu0
        %v1410 = vadd.f32 %v1276, %v1409
        %v1411 = vpop.f32.mrf.mxu0
        %1412 = vmatprep.mubr.f32.mxu0 0.0
        %1413 = vmatmul.mubr.f32.gmra.mxu0 %v1251
        %v1414 = vpop.f32.mrf.mxu0
        %v1415 = vadd.f32 %v1276, %v1414
        %v1416 = vpop.f32.mrf.mxu0
        %1417 = vmatprep.mubr.f32.mxu0 0.0
        %1418 = vmatmul.mubr.f32.gmra.mxu0 %v1252
        %v1419 = vpop.f32.mrf.mxu0
        %v1420 = vadd.f32 %v1276, %v1419
        %v1421 = vpop.f32.mrf.mxu0
        %1422 = vdwg.mxu0
        %v1423 = vmul.f32 %v246, %v1345
        %v1424 = vmul.f32 %v247, %v1350
        %v1425 = vmul.f32 %v248, %v1355
        %v1426 = vmul.f32 %v249, %v1360
        %v1427 = vmul.f32 %v250, %v1365
        %v1428 = vmul.f32 %v251, %v1370
        %v1429 = vmul.f32 %v252, %v1375
        %v1430 = vmul.f32 %v253, %v1380
        %v1431 = vmul.f32 %v254, %v1385
        %v1432 = vmul.f32 %v255, %v1390
        %v1433 = vmul.f32 %v256, %v1395
        %v1434 = vmul.f32 %v257, %v1400
        %v1435 = vmul.f32 %v258, %v1405
        %v1436 = vmul.f32 %v259, %v1410
        %v1437 = vmul.f32 %v260, %v1415
        %v1438 = vmul.f32 %v261, %v1420
        %v1439 = vadd.f32 %v1423, %v841
        %v1440 = vadd.f32 %v1424, %v842
        %v1441 = vadd.f32 %v1425, %v843
        %v1442 = vadd.f32 %v1426, %v844
        %v1443 = vadd.f32 %v1427, %v845
        %v1444 = vadd.f32 %v1428, %v846
        %v1445 = vadd.f32 %v1429, %v847
        %v1446 = vadd.f32 %v1430, %v848
        %v1447 = vadd.f32 %v1431, %v849
        %v1448 = vadd.f32 %v1432, %v850
        %v1449 = vadd.f32 %v1433, %v851
        %v1450 = vadd.f32 %v1434, %v852
        %v1451 = vadd.f32 %v1435, %v853
        %v1452 = vadd.f32 %v1436, %v854
        %v1453 = vadd.f32 %v1437, %v855
        %v1454 = vadd.f32 %v1438, %v856
        %1455 = vst.msk [vmem:[%s226] sm:$0xff] %vm270, %v1439
        %1456 = vst.msk [vmem:[%s226 + $0x8] sm:$0xff] %vm270, %v1440
        %1457 = vst.msk [vmem:[%s226 + $0x10] sm:$0xff] %vm270, %v1441
        %1458 = vst.msk [vmem:[%s226 + $0x18] sm:$0xff] %vm270, %v1442
        %1459 = vst.msk [vmem:[%s226 + $0x20] sm:$0xff] %vm270, %v1443
        %1460 = vst.msk [vmem:[%s226 + $0x28] sm:$0xff] %vm270, %v1444
        %1461 = vst.msk [vmem:[%s226 + $0x30] sm:$0xff] %vm270, %v1445
        %1462 = vst.msk [vmem:[%s226 + $0x38] sm:$0xff] %vm270, %v1446
        %1463 = vst.msk [vmem:[%s226 + $0x40] sm:$0xff] %vm270, %v1447
        %1464 = vst.msk [vmem:[%s226 + $0x48] sm:$0xff] %vm270, %v1448
        %1465 = vst.msk [vmem:[%s226 + $0x50] sm:$0xff] %vm270, %v1449
        %1466 = vst.msk [vmem:[%s226 + $0x58] sm:$0xff] %vm270, %v1450
        %1467 = vst.msk [vmem:[%s226 + $0x60] sm:$0xff] %vm270, %v1451
        %1468 = vst.msk [vmem:[%s226 + $0x68] sm:$0xff] %vm270, %v1452
        %1469 = vst.msk [vmem:[%s226 + $0x70] sm:$0xff] %vm270, %v1453
        %1470 = vst.msk [vmem:[%s226 + $0x78] sm:$0xff] %vm270, %v1454
        %s1471 = sand.u32 %s134, 1
        %s1472 = sand.u32 %s134, 1
        %s1473 = smul.addr %s1472, 128
        %s1474 = scalar_lea.vmem [#allocation2], %s1473
        // Predicated region
        $region41: #{tpu_custom_call.1} parent=39 // pred_check
          %p1475 = pneg %p144
        $region42: #{tpu_custom_call.1} parent=39 // pred_check_branch
          %1477 = sbr.rel (%p1475) target = $region44
        $region43: #{tpu_custom_call.1} parent=39 // pred_region
          %s1478 = smul.u32 16, %s16
          %s1479 = ssub.s32 25, %s1478
          %p1480 = scmp.lt.s32.totalorder %s1479, 16
          %s1481 = scalar_select %p1480, %s1479, 16
          %s1482 = smul.u32 128, %s1481
          %p1483 = scmp.ne.s32.totalorder 0, %s1482
          %s1484 = smul.addr %s1478, 8
          %s1485 = scalar_lea.vmem %s5, %s1484
          // Predicated region
          $region45: #{tpu_custom_call.1} parent=43 // pred_check
            %p1486 = pneg %p1483
          $region46: #{tpu_custom_call.1} parent=43 // pred_check_branch
            %1488 = sbr.rel (%p1486) target = $region48
          $region47: #{tpu_custom_call.1} parent=43 // pred_region
            // Predicated region
            $region49: #{tpu_custom_call.1} parent=47 // pred_check
              _
            $region50: #{tpu_custom_call.1} parent=47 // pred_check_branch
              %1490 = sbr.rel (0) target = $region52
            $region51: #{tpu_custom_call.1} parent=47 // pred_region
              // Predicated region
              $region71: #{tpu_custom_call.1} parent=51 // pred_check
                _
              $region72: #{tpu_custom_call.1} parent=51 // pred_check_branch
                %1570 = sbr.rel (0) target = $region74
              $region73: #{tpu_custom_call.1} parent=51 // pred_region
                %s1571 = sshrl.u32 %s1481, 4
                // While loop
                $region75: #{tpu_custom_call.1} parent=73 // loop_pre_header
                  _
                $region76: #{tpu_custom_call.1} parent=73 // loop_header
                  %s1573 = sphi 0, %s1575
                  %p1574 = scmp.ge.s32.totalorder %s1573, %s1571
                  %s1578 = sphi 0, %s1615
                  %s1579 = sphi %s1474, %s1618
                  %s1580 = sphi %s1485, %s1619
                $region77: #{tpu_custom_call.1} parent=73 // loop_header_branch
                  %1577 = sbr.rel (%p1574) target = $region81
                $region78: #{tpu_custom_call.1} parent=73 // loop_body
                  %v1581 = vld [vmem:[%s1579] sm:$0xff]
                  %1582 = vst [vmem:[%s1580] sm:$0xff] %v1581
                  %v1583 = vld [vmem:[%s1579 + $0x8] sm:$0xff]
                  %1584 = vst [vmem:[%s1580 + $0x8] sm:$0xff] %v1583
                  %v1585 = vld [vmem:[%s1579 + $0x10] sm:$0xff]
                  %1586 = vst [vmem:[%s1580 + $0x10] sm:$0xff] %v1585
                  %v1587 = vld [vmem:[%s1579 + $0x18] sm:$0xff]
                  %1588 = vst [vmem:[%s1580 + $0x18] sm:$0xff] %v1587
                  %v1589 = vld [vmem:[%s1579 + $0x20] sm:$0xff]
                  %1590 = vst [vmem:[%s1580 + $0x20] sm:$0xff] %v1589
                  %v1591 = vld [vmem:[%s1579 + $0x28] sm:$0xff]
                  %1592 = vst [vmem:[%s1580 + $0x28] sm:$0xff] %v1591
                  %v1593 = vld [vmem:[%s1579 + $0x30] sm:$0xff]
                  %1594 = vst [vmem:[%s1580 + $0x30] sm:$0xff] %v1593
                  %v1595 = vld [vmem:[%s1579 + $0x38] sm:$0xff]
                  %1596 = vst [vmem:[%s1580 + $0x38] sm:$0xff] %v1595
                  %v1597 = vld [vmem:[%s1579 + $0x40] sm:$0xff]
                  %1598 = vst [vmem:[%s1580 + $0x40] sm:$0xff] %v1597
                  %v1599 = vld [vmem:[%s1579 + $0x48] sm:$0xff]
                  %1600 = vst [vmem:[%s1580 + $0x48] sm:$0xff] %v1599
                  %v1601 = vld [vmem:[%s1579 + $0x50] sm:$0xff]
                  %1602 = vst [vmem:[%s1580 + $0x50] sm:$0xff] %v1601
                  %v1603 = vld [vmem:[%s1579 + $0x58] sm:$0xff]
                  %1604 = vst [vmem:[%s1580 + $0x58] sm:$0xff] %v1603
                  %v1605 = vld [vmem:[%s1579 + $0x60] sm:$0xff]
                  %1606 = vst [vmem:[%s1580 + $0x60] sm:$0xff] %v1605
                  %v1607 = vld [vmem:[%s1579 + $0x68] sm:$0xff]
                  %1608 = vst [vmem:[%s1580 + $0x68] sm:$0xff] %v1607
                  %v1609 = vld [vmem:[%s1579 + $0x70] sm:$0xff]
                  %1610 = vst [vmem:[%s1580 + $0x70] sm:$0xff] %v1609
                  %v1611 = vld [vmem:[%s1579 + $0x78] sm:$0xff]
                  %1612 = vst [vmem:[%s1580 + $0x78] sm:$0xff] %v1611
                  %s1613 = sadd.s32 1, %s1578
                  %p1614 = scmp.ge.s32.totalorder %s1613, %s1571
                  %s1615 = scalar_select %p1614, 0, %s1613
                  %s1616 = smul.u32 %s1615, 128
                  %s1617 = smul.u32 %s1615, 128
                  %s1618 = scalar_lea.vmem %s1474, %s1616 [#allocation2]
                  %s1619 = scalar_lea.vmem %s1485, %s1617
                $region79: #{tpu_custom_call.1} parent=73 // loop_footer
                  %s1575 = sadd.s32 %s1573, 1
                $region80: #{tpu_custom_call.1} parent=73 // loop_footer_branch
                  %1572 = sbr.rel target = $region76
                $region81: #{tpu_custom_call.1} parent=73 // loop_exit
                  _
                %s1620 = sshrl.u32 %s1481, 4
                %s1621 = sand.u32 %s1481, 15
                %s1622 = smul.u32 %s1620, 16
                %s1623 = smul.u32 8, %s1622
                %s1624 = scalar_lea.vmem %s1474, %s1623 [#allocation2]
                %s1625 = smul.u32 8, %s1622
                %s1626 = scalar_lea.vmem %s1485, %s1625
                // While loop
                $region82: #{tpu_custom_call.1} parent=73 // loop_pre_header
                  _
                $region83: #{tpu_custom_call.1} parent=73 // loop_header
                  %s1628 = sphi 0, %s1630
                  %p1629 = scmp.ge.s32.totalorder %s1628, %s1621
                  %s1633 = sphi 0, %s1640
                  %s1634 = sphi %s1624, %s1643
                  %s1635 = sphi %s1626, %s1644
                $region84: #{tpu_custom_call.1} parent=73 // loop_header_branch
                  %1632 = sbr.rel (%p1629) target = $region88
                $region85: #{tpu_custom_call.1} parent=73 // loop_body
                  %v1636 = vld [vmem:[%s1634] sm:$0xff]
                  %1637 = vst [vmem:[%s1635] sm:$0xff] %v1636
                  %s1638 = sadd.s32 1, %s1633
                  %p1639 = scmp.ge.s32.totalorder %s1638, %s1621
                  %s1640 = scalar_select %p1639, 0, %s1638
                  %s1641 = smul.u32 %s1640, 8
                  %s1642 = smul.u32 %s1640, 8
                  %s1643 = scalar_lea.vmem %s1624, %s1641 [#allocation2]
                  %s1644 = scalar_lea.vmem %s1626, %s1642
                $region86: #{tpu_custom_call.1} parent=73 // loop_footer
                  %s1630 = sadd.s32 %s1628, 1
                $region87: #{tpu_custom_call.1} parent=73 // loop_footer_branch
                  %1627 = sbr.rel target = $region83
                $region88: #{tpu_custom_call.1} parent=73 // loop_exit
                  _
              $region74: #{tpu_custom_call.1} parent=51 // pred_fallthru
                _
              // Predicated region
              $region89: #{tpu_custom_call.1} parent=51 // pred_check
                _
              $region90: #{tpu_custom_call.1} parent=51 // pred_check_branch
                %1646 = sbr.rel target = $region92
              $region91: #{tpu_custom_call.1} parent=51 // pred_region
                _
              $region92: #{tpu_custom_call.1} parent=51 // pred_fallthru
                _
            $region52: #{tpu_custom_call.1} parent=47 // pred_fallthru
              _
            // Predicated region
            $region53: #{tpu_custom_call.1} parent=47 // pred_check
              _
            $region54: #{tpu_custom_call.1} parent=47 // pred_check_branch
              %1492 = sbr.rel target = $region56
            $region55: #{tpu_custom_call.1} parent=47 // pred_region
              %s1494 = ssub.s32 256, 1
              %s1495 = sshrl.u32 %s1481, 4
              // While loop
              $region57: #{tpu_custom_call.1} parent=55 // loop_pre_header
                _
              $region58: #{tpu_custom_call.1} parent=55 // loop_header
                %s1497 = sphi 0, %s1499
                %p1498 = scmp.ge.s32.totalorder %s1497, %s1495
                %s1502 = sphi 0, %s1539
                %s1503 = sphi %s1474, %s1542
                %s1504 = sphi %s1485, %s1543
              $region59: #{tpu_custom_call.1} parent=55 // loop_header_branch
                %1501 = sbr.rel (%p1498) target = $region63
              $region60: #{tpu_custom_call.1} parent=55 // loop_body
                %v1505 = vld [vmem:[%s1503] sm:%s1494]
                %1506 = vst [vmem:[%s1504] sm:%s1494] %v1505
                %v1507 = vld [vmem:[%s1503 + $0x8] sm:%s1494]
                %1508 = vst [vmem:[%s1504 + $0x8] sm:%s1494] %v1507
                %v1509 = vld [vmem:[%s1503 + $0x10] sm:%s1494]
                %1510 = vst [vmem:[%s1504 + $0x10] sm:%s1494] %v1509
                %v1511 = vld [vmem:[%s1503 + $0x18] sm:%s1494]
                %1512 = vst [vmem:[%s1504 + $0x18] sm:%s1494] %v1511
                %v1513 = vld [vmem:[%s1503 + $0x20] sm:%s1494]
                %1514 = vst [vmem:[%s1504 + $0x20] sm:%s1494] %v1513
                %v1515 = vld [vmem:[%s1503 + $0x28] sm:%s1494]
                %1516 = vst [vmem:[%s1504 + $0x28] sm:%s1494] %v1515
                %v1517 = vld [vmem:[%s1503 + $0x30] sm:%s1494]
                %1518 = vst [vmem:[%s1504 + $0x30] sm:%s1494] %v1517
                %v1519 = vld [vmem:[%s1503 + $0x38] sm:%s1494]
                %1520 = vst [vmem:[%s1504 + $0x38] sm:%s1494] %v1519
                %v1521 = vld [vmem:[%s1503 + $0x40] sm:%s1494]
                %1522 = vst [vmem:[%s1504 + $0x40] sm:%s1494] %v1521
                %v1523 = vld [vmem:[%s1503 + $0x48] sm:%s1494]
                %1524 = vst [vmem:[%s1504 + $0x48] sm:%s1494] %v1523
                %v1525 = vld [vmem:[%s1503 + $0x50] sm:%s1494]
                %1526 = vst [vmem:[%s1504 + $0x50] sm:%s1494] %v1525
                %v1527 = vld [vmem:[%s1503 + $0x58] sm:%s1494]
                %1528 = vst [vmem:[%s1504 + $0x58] sm:%s1494] %v1527
                %v1529 = vld [vmem:[%s1503 + $0x60] sm:%s1494]
                %1530 = vst [vmem:[%s1504 + $0x60] sm:%s1494] %v1529
                %v1531 = vld [vmem:[%s1503 + $0x68] sm:%s1494]
                %1532 = vst [vmem:[%s1504 + $0x68] sm:%s1494] %v1531
                %v1533 = vld [vmem:[%s1503 + $0x70] sm:%s1494]
                %1534 = vst [vmem:[%s1504 + $0x70] sm:%s1494] %v1533
                %v1535 = vld [vmem:[%s1503 + $0x78] sm:%s1494]
                %1536 = vst [vmem:[%s1504 + $0x78] sm:%s1494] %v1535
                %s1537 = sadd.s32 1, %s1502
                %p1538 = scmp.ge.s32.totalorder %s1537, %s1495
                %s1539 = scalar_select %p1538, 0, %s1537
                %s1540 = smul.u32 %s1539, 128
                %s1541 = smul.u32 %s1539, 128
                %s1542 = scalar_lea.vmem %s1474, %s1540 [#allocation2]
                %s1543 = scalar_lea.vmem %s1485, %s1541
              $region61: #{tpu_custom_call.1} parent=55 // loop_footer
                %s1499 = sadd.s32 %s1497, 1
              $region62: #{tpu_custom_call.1} parent=55 // loop_footer_branch
                %1496 = sbr.rel target = $region58
              $region63: #{tpu_custom_call.1} parent=55 // loop_exit
                _
              %s1544 = sshrl.u32 %s1481, 4
              %s1545 = sand.u32 %s1481, 15
              %s1546 = smul.u32 %s1544, 16
              %s1547 = smul.u32 8, %s1546
              %s1548 = scalar_lea.vmem %s1474, %s1547 [#allocation2]
              %s1549 = smul.u32 8, %s1546
              %s1550 = scalar_lea.vmem %s1485, %s1549
              // While loop
              $region64: #{tpu_custom_call.1} parent=55 // loop_pre_header
                _
              $region65: #{tpu_custom_call.1} parent=55 // loop_header
                %s1552 = sphi 0, %s1554
                %p1553 = scmp.ge.s32.totalorder %s1552, %s1545
                %s1557 = sphi 0, %s1564
                %s1558 = sphi %s1548, %s1567
                %s1559 = sphi %s1550, %s1568
              $region66: #{tpu_custom_call.1} parent=55 // loop_header_branch
                %1556 = sbr.rel (%p1553) target = $region70
              $region67: #{tpu_custom_call.1} parent=55 // loop_body
                %v1560 = vld [vmem:[%s1558] sm:%s1494]
                %1561 = vst [vmem:[%s1559] sm:%s1494] %v1560
                %s1562 = sadd.s32 1, %s1557
                %p1563 = scmp.ge.s32.totalorder %s1562, %s1545
                %s1564 = scalar_select %p1563, 0, %s1562
                %s1565 = smul.u32 %s1564, 8
                %s1566 = smul.u32 %s1564, 8
                %s1567 = scalar_lea.vmem %s1548, %s1565 [#allocation2]
                %s1568 = scalar_lea.vmem %s1550, %s1566
              $region68: #{tpu_custom_call.1} parent=55 // loop_footer
                %s1554 = sadd.s32 %s1552, 1
              $region69: #{tpu_custom_call.1} parent=55 // loop_footer_branch
                %1551 = sbr.rel target = $region65
              $region70: #{tpu_custom_call.1} parent=55 // loop_exit
                _
            $region56: #{tpu_custom_call.1} parent=47 // pred_fallthru
              _
          $region48: #{tpu_custom_call.1} parent=43 // pred_fallthru
            _
          %1647 = vnop
        $region44: #{tpu_custom_call.1} parent=39 // pred_fallthru
          _
      $region40: #{tpu_custom_call.1} parent=5 // pred_fallthru
        _
      %p1648 = scmp.le.s32.totalorder 2, %s11
      // Predicated region
      $region93: #{tpu_custom_call.1} parent=5 // pred_check
        %p1649 = pneg %p1648
      $region94: #{tpu_custom_call.1} parent=5 // pred_check_branch
        %1651 = sbr.rel (%p1649) target = $region96
      $region95: #{tpu_custom_call.1} parent=5 // pred_region
        %s1652 = ssub.s32 %s11, 2
        // Predicated region
        $region97: #{tpu_custom_call.1} parent=95 // pred_check
          %p1653 = pneg %p150
        $region98: #{tpu_custom_call.1} parent=95 // pred_check_branch
          %1655 = sbr.rel (%p1653) target = $region100
        $region99: #{tpu_custom_call.1} parent=95 // pred_region
          %s1656 = sand.u32 %s135, 1
          %s1657 = sand.u32 %s135, 1
          %s1658 = smul.addr %s1657, 128
          %s1659 = scalar_lea.vmem [#allocation2], %s1658
        $region100: #{tpu_custom_call.1} parent=95 // pred_fallthru
          _
      $region96: #{tpu_custom_call.1} parent=5 // pred_fallthru
        _
    $region6: #{tpu_custom_call.1} parent=1 // loop_footer
      %s15 = sadd.s32 1, %s11
    $region7: #{tpu_custom_call.1} parent=1 // loop_footer_branch
      %10 = sbr.rel target = $region3
    $region8: #{tpu_custom_call.1} parent=1 // loop_exit
      _

</llo_original>
